<compile_context>
chip_gen: v7x
topology: tpu7x:2x2x1
jax: 0.10.0
libtpu: 0.0.40
codegen_flags: <defaults>
</compile_context>

<pallas_src>
import functools

import jax
import jax.numpy as jnp
from jax.experimental import pallas as pl
from jax.experimental.pallas import tpu as pltpu


def _double_conv_kernel(x_ref, w1_ref, b1_ref, w2_ref, b2_ref, out_ref,
                        xpad_ref, col1_ref, mid_ref, col2_ref, *, H, W):
    """Fused (3x3 conv -> folded BN -> ReLU) x 2 for one image.

    x_ref   : (1, H, W, Cin)        input tile (NHWC)
    w1_ref  : (9*Cin, Cout)  bf16   conv1 weights (BN scale folded), tap-major
    b1_ref  : (1, Cout)      f32    conv1 folded bias
    w2_ref  : (9*Cout, Cout) bf16   conv2 weights (BN folded)
    b2_ref  : (1, Cout)      f32    conv2 folded bias
    out_ref : (1, Cout, H*W)        lane-dense output (spatial on lanes)
    xpad_ref: (H+2, W+2, Cin)  bf16 VMEM scratch, zero-halo conv1 input
    col1_ref: (H*W, 9*Cin)     bf16 VMEM scratch, conv1 im2col operand
    mid_ref : (H+2, W+2, Cout) bf16 VMEM scratch, zero-halo conv1 output
    col2_ref: (H*W, 9*Cout)    bf16 VMEM scratch, conv2 im2col operand
    """
    cin = xpad_ref.shape[-1]
    cout = mid_ref.shape[-1]
    hw = H * W
    bf16 = jnp.bfloat16

    # ---------------- stage 1: halo-pad -> im2col -> one MXU matmul ----------
    # Zero only the 1-pixel halo; the interior is fully overwritten each step.
    xpad_ref[0:1, :, :] = jnp.zeros((1, W + 2, cin), bf16)
    xpad_ref[H + 1:H + 2, :, :] = jnp.zeros((1, W + 2, cin), bf16)
    xpad_ref[:, 0:1, :] = jnp.zeros((H + 2, 1, cin), bf16)
    xpad_ref[:, W + 1:W + 2, :] = jnp.zeros((H + 2, 1, cin), bf16)
    xpad_ref[1:H + 1, 1:W + 1, :] = x_ref[0].astype(bf16)

    xpad = xpad_ref[...]
    # Three W-shifted views computed once (2 sublane shifts instead of 6); the
    # dy slices below are pure address offsets on the outermost axis.
    xsh = [xpad[:, dx:dx + W, :] for dx in range(3)]
    for dy in range(3):
        for dx in range(3):
            tap = dy * 3 + dx
            col1_ref[:, tap * cin:(tap + 1) * cin] = (
                xsh[dx][dy:dy + H].reshape(hw, cin))

    # Single fused-K matmul (bf16 operands, f32 accumulation), then bias+ReLU.
    y1 = jnp.dot(col1_ref[...], w1_ref[...],
                 preferred_element_type=jnp.float32)            # (H*W, Cout)
    y1 = jnp.maximum(y1 + b1_ref[...], 0.0)

    # ---------------- stage 2: intermediate stays in VMEM (bf16) -------------
    mid_ref[0:1, :, :] = jnp.zeros((1, W + 2, cout), bf16)
    mid_ref[H + 1:H + 2, :, :] = jnp.zeros((1, W + 2, cout), bf16)
    mid_ref[:, 0:1, :] = jnp.zeros((H + 2, 1, cout), bf16)
    mid_ref[:, W + 1:W + 2, :] = jnp.zeros((H + 2, 1, cout), bf16)
    mid_ref[1:H + 1, 1:W + 1, :] = y1.reshape(H, W, cout).astype(bf16)

    mid = mid_ref[...]
    msh = [mid[:, dx:dx + W, :] for dx in range(3)]
    for dy in range(3):
        for dx in range(3):
            tap = dy * 3 + dx
            col2_ref[:, tap * cout:(tap + 1) * cout] = (
                msh[dx][dy:dy + H].reshape(hw, cout))

    y2 = jnp.dot(col2_ref[...], w2_ref[...],
                 preferred_element_type=jnp.float32)            # (H*W, Cout)
    y2 = jnp.maximum(y2 + b2_ref[...], 0.0)

    # Lane-dense store: (Cout, H*W) puts the long spatial axis on lanes, so the
    # HBM writeback is unmasked full-lane stores even for small Cout.
    out_ref[0] = jnp.transpose(y2).astype(out_ref.dtype)


def _fold_conv_bn(w_oihw, conv_b, gamma, beta, running_mean, running_var,
                  eps=1e-5):
    """Fold eval-mode BN into the conv weights/bias and repack for fused-K.

    Returns (w_packed, bias) with
      w_packed: (9*Cin, Cout) bf16, row index = (dy*3+dx)*Cin + ci
      bias    : (1, Cout) f32
    """
    s = gamma / jnp.sqrt(running_var + eps)                      # (Cout,)
    w = w_oihw * s[:, None, None, None]                          # scale into W
    bias = (conv_b - running_mean) * s + beta                    # (Cout,)
    cout, cin = w_oihw.shape[0], w_oihw.shape[1]
    # (Cout, Cin, 3, 3) -> (3, 3, Cin, Cout) -> (9*Cin, Cout)
    w_packed = jnp.transpose(w, (2, 3, 1, 0)).reshape(9 * cin, cout)
    # Pre-cast weights to bf16 (MXU-native); bias stays f32 and is added to the
    # f32 accumulator in-kernel.
    return (w_packed.astype(jnp.bfloat16),
            bias.reshape(1, cout).astype(jnp.float32))


def _derive_vmem_limit_bytes(H, W, Cin, Cout, x_itemsize):
    """Scratch + double-buffered block footprint with headroom, capped at ~75%
    of the smallest targeted per-core VMEM (v7x: 64 MiB)."""
    bf = 2  # bf16 bytes
    scratch = bf * ((H + 2) * (W + 2) * (Cin + Cout)
                    + H * W * 9 * (Cin + Cout))
    blocks = 2 * (H * W * Cin * x_itemsize + Cout * H * W * x_itemsize)
    weights = 2 * (bf * 9 * (Cin + Cout) * Cout + 4 * 2 * Cout)
    need = scratch + blocks + weights
    cap = int(0.75 * 64 * 1024 * 1024)
    return int(min(max(2 * need, 16 * 1024 * 1024), cap))


def double_conv_forward(x_nchw, params, eps=1e-5):
    """DoubleConv forward. Input/output NCHW (PyTorch convention)."""
    N, Cin, H, W = x_nchw.shape
    Cout = params["w1"].shape[0]

    w1, b1 = _fold_conv_bn(params["w1"], params["b1"], params["g1"],
                           params["beta1"], params["rm1"], params["rv1"], eps)
    w2, b2 = _fold_conv_bn(params["w2"], params["b2"], params["g2"],
                           params["beta2"], params["rm2"], params["rv2"], eps)

    # Input layout change at the module boundary only.  The kernel's lane-dense
    # (Cout, H*W) output reshapes to NCHW for free (no output transpose).
    x_nhwc = jnp.transpose(x_nchw, (0, 2, 3, 1))

    kernel = functools.partial(_double_conv_kernel, H=H, W=W)
    out = pl.pallas_call(
        kernel,
        out_shape=jax.ShapeDtypeStruct((N, Cout, H * W), x_nchw.dtype),
        grid_spec=pltpu.PrefetchScalarGridSpec(
            num_scalar_prefetch=0,
            grid=(N,),
            in_specs=[
                pl.BlockSpec((1, H, W, Cin), lambda n: (n, 0, 0, 0)),
                pl.BlockSpec((9 * Cin, Cout), lambda n: (0, 0)),
                pl.BlockSpec((1, Cout), lambda n: (0, 0)),
                pl.BlockSpec((9 * Cout, Cout), lambda n: (0, 0)),
                pl.BlockSpec((1, Cout), lambda n: (0, 0)),
            ],
            out_specs=pl.BlockSpec((1, Cout, H * W), lambda n: (n, 0, 0)),
            scratch_shapes=[
                pltpu.VMEM((H + 2, W + 2, Cin), jnp.bfloat16),   # padded input
                pltpu.VMEM((H * W, 9 * Cin), jnp.bfloat16),      # im2col conv1
                pltpu.VMEM((H + 2, W + 2, Cout), jnp.bfloat16),  # padded mid
                pltpu.VMEM((H * W, 9 * Cout), jnp.bfloat16),     # im2col conv2
            ],
        ),
        compiler_params=pltpu.CompilerParams(
            dimension_semantics=("parallel",),   # batch -> both v7x TCs
            vmem_limit_bytes=_derive_vmem_limit_bytes(
                H, W, Cin, Cout, x_nchw.dtype.itemsize),
        ),
    )(x_nhwc, w1, b1, w2, b2)

    return out.reshape(N, Cout, H, W)  # free reshape -> NCHW


def init_double_conv_params(key, in_channels, out_channels):
    ks = jax.random.split(key, 10)
    p = {}
    # Conv weights stored PyTorch-style (Cout, Cin, 3, 3), repacked at call time.
    p["w1"] = 0.1 * jax.random.normal(ks[0], (out_channels, in_channels, 3, 3), jnp.float32)
    p["b1"] = 0.1 * jax.random.normal(ks[1], (out_channels,), jnp.float32)
    p["g1"] = 1.0 + 0.1 * jax.random.normal(ks[2], (out_channels,), jnp.float32)
    p["beta1"] = 0.1 * jax.random.normal(ks[3], (out_channels,), jnp.float32)
    p["rm1"] = 0.1 * jax.random.normal(ks[4], (out_channels,), jnp.float32)
    p["rv1"] = 0.5 + jnp.abs(jax.random.normal(ks[5], (out_channels,), jnp.float32))

    p["w2"] = 0.1 * jax.random.normal(ks[6], (out_channels, out_channels, 3, 3), jnp.float32)
    p["b2"] = 0.1 * jax.random.normal(ks[7], (out_channels,), jnp.float32)
    p["g2"] = 1.0 + 0.1 * jax.random.normal(ks[8], (out_channels,), jnp.float32)
    p["beta2"] = 0.1 * jax.random.normal(ks[9], (out_channels,), jnp.float32)
    p["rm2"] = jnp.zeros((out_channels,), jnp.float32)
    p["rv2"] = jnp.ones((out_channels,), jnp.float32)
    return p


def _reference_forward(x_nchw, params):
    """Pure-JAX reference (lax.conv, f32 end-to-end) for a sanity check."""
    def conv(x, w, b):
        y = jax.lax.conv_general_dilated(
            x, w, window_strides=(1, 1), padding="SAME",
            dimension_numbers=("NCHW", "OIHW", "NCHW"))
        return y + b[None, :, None, None]

    def bn_relu(y, g, beta, rm, rv, eps=1e-5):
        s = g / jnp.sqrt(rv + eps)
        y = (y - rm[None, :, None, None]) * s[None, :, None, None] + beta[None, :, None, None]
        return jnp.maximum(y, 0.0)

    y = bn_relu(conv(x_nchw, params["w1"], params["b1"]),
                params["g1"], params["beta1"], params["rm1"], params["rv1"])
    y = bn_relu(conv(y, params["w2"], params["b2"]),
                params["g2"], params["beta2"], params["rm2"], params["rv2"])
    return y


if __name__ == "__main__":
    key = jax.random.PRNGKey(0)
    k_x, k_p = jax.random.split(key)

    N, Cin, Cout, H, W = 2, 4, 8, 16, 16
    x = jax.random.normal(k_x, (N, Cin, H, W), jnp.float32)
    params = init_double_conv_params(k_p, Cin, Cout)

    out = double_conv_forward(x, params)
    out = jax.block_until_ready(out)

    ref = _reference_forward(x, params)
    assert out.shape == (N, Cout, H, W), out.shape
    # bf16 activations/weights on the MXU -> looser tolerance than pure-f32.
    max_err = float(jnp.max(jnp.abs(out - ref)))
    assert jnp.allclose(out, ref, atol=5e-2, rtol=5e-2), max_err

    print("KERNEL_OK")
</pallas_src>

<mosaic_0001>
module attributes {stable_mosaic.version = 11 : i64} {
  func.func @_double_conv_kernel(%arg0: i32, %arg1: memref<1x16x16x4xf32, #tpu.memory_space<vmem>>, %arg2: memref<36x8xbf16, #tpu.memory_space<vmem>>, %arg3: memref<1x8xf32, #tpu.memory_space<vmem>>, %arg4: memref<72x8xbf16, #tpu.memory_space<vmem>>, %arg5: memref<1x8xf32, #tpu.memory_space<vmem>>, %arg6: memref<1x8x256xf32, #tpu.memory_space<vmem>>, %arg7: memref<18x18x4xbf16, #tpu.memory_space<vmem>>, %arg8: memref<256x36xbf16, #tpu.memory_space<vmem>>, %arg9: memref<18x18x8xbf16, #tpu.memory_space<vmem>>, %arg10: memref<256x72xbf16, #tpu.memory_space<vmem>>) attributes {dimension_semantics = [#tpu.dimension_semantics<parallel>], iteration_bounds = array<i64: 2>, scalar_prefetch = 0 : i64, scratch_operands = 4 : i64, tpu.core_type = #tpu.core_type<tc>, window_params = [{transform_indices = @transform_0, window_bounds = array<i64: 1, 16, 16, 4>}, {pipeline_mode = #tpu.pipeline_mode<synchronous>, transform_indices = @transform_1, window_bounds = array<i64: 36, 8>}, {pipeline_mode = #tpu.pipeline_mode<synchronous>, transform_indices = @transform_2, window_bounds = array<i64: 1, 8>}, {pipeline_mode = #tpu.pipeline_mode<synchronous>, transform_indices = @transform_3, window_bounds = array<i64: 72, 8>}, {pipeline_mode = #tpu.pipeline_mode<synchronous>, transform_indices = @transform_4, window_bounds = array<i64: 1, 8>}, {transform_indices = @transform_5, window_bounds = array<i64: 1, 8, 256>}]} {
    %cst = arith.constant 0.000000e+00 : bf16
    %0 = vector.broadcast %cst : bf16 to vector<1x18x4xbf16>
    %c0 = arith.constant 0 : index
    %c0_0 = arith.constant 0 : index
    %c0_1 = arith.constant 0 : index
    %1 = vector.load %arg7[%c0, %c0_0, %c0_1] : memref<18x18x4xbf16, #tpu.memory_space<vmem>>, vector<1x18x4xbf16>
    tpu.vector_store %arg7[%c0, %c0_0, %c0_1], %0 {strides = array<i32>} : memref<18x18x4xbf16, #tpu.memory_space<vmem>>, vector<1x18x4xbf16>,
    %cst_2 = arith.constant 0.000000e+00 : bf16
    %2 = vector.broadcast %cst_2 : bf16 to vector<1x18x4xbf16>
    %c17 = arith.constant 17 : index
    %c0_3 = arith.constant 0 : index
    %c0_4 = arith.constant 0 : index
    %3 = vector.load %arg7[%c17, %c0_3, %c0_4] : memref<18x18x4xbf16, #tpu.memory_space<vmem>>, vector<1x18x4xbf16>
    tpu.vector_store %arg7[%c17, %c0_3, %c0_4], %2 {strides = array<i32>} : memref<18x18x4xbf16, #tpu.memory_space<vmem>>, vector<1x18x4xbf16>,
    %cst_5 = arith.constant 0.000000e+00 : bf16
    %4 = vector.broadcast %cst_5 : bf16 to vector<18x1x4xbf16>
    %c0_6 = arith.constant 0 : index
    %c0_7 = arith.constant 0 : index
    %c0_8 = arith.constant 0 : index
    %5 = vector.load %arg7[%c0_6, %c0_7, %c0_8] : memref<18x18x4xbf16, #tpu.memory_space<vmem>>, vector<18x1x4xbf16>
    tpu.vector_store %arg7[%c0_6, %c0_7, %c0_8], %4 {strides = array<i32>} : memref<18x18x4xbf16, #tpu.memory_space<vmem>>, vector<18x1x4xbf16>,
    %cst_9 = arith.constant 0.000000e+00 : bf16
    %6 = vector.broadcast %cst_9 : bf16 to vector<18x1x4xbf16>
    %c0_10 = arith.constant 0 : index
    %c17_11 = arith.constant 17 : index
    %c0_12 = arith.constant 0 : index
    %7 = vector.load %arg7[%c0_10, %c17_11, %c0_12] : memref<18x18x4xbf16, #tpu.memory_space<vmem>>, vector<18x1x4xbf16>
    tpu.vector_store %arg7[%c0_10, %c17_11, %c0_12], %6 {strides = array<i32>} : memref<18x18x4xbf16, #tpu.memory_space<vmem>>, vector<18x1x4xbf16>,
    %c0_13 = arith.constant 0 : index
    %c0_14 = arith.constant 0 : index
    %c0_15 = arith.constant 0 : index
    %c0_16 = arith.constant 0 : index
    %8 = vector.load %arg1[%c0_13, %c0_14, %c0_15, %c0_16] : memref<1x16x16x4xf32, #tpu.memory_space<vmem>>, vector<1x16x16x4xf32>
    %9 = vector.shape_cast %8 : vector<1x16x16x4xf32> to vector<16x16x4xf32>
    %10 = arith.truncf %9 : vector<16x16x4xf32> to vector<16x16x4xbf16>
    %c1 = arith.constant 1 : index
    %c1_17 = arith.constant 1 : index
    %c0_18 = arith.constant 0 : index
    %11 = vector.load %arg7[%c1, %c1_17, %c0_18] : memref<18x18x4xbf16, #tpu.memory_space<vmem>>, vector<16x16x4xbf16>
    tpu.vector_store %arg7[%c1, %c1_17, %c0_18], %10 {strides = array<i32>} : memref<18x18x4xbf16, #tpu.memory_space<vmem>>, vector<16x16x4xbf16>,
    %c0_19 = arith.constant 0 : index
    %c0_20 = arith.constant 0 : index
    %c0_21 = arith.constant 0 : index
    %12 = vector.load %arg7[%c0_19, %c0_20, %c0_21] : memref<18x18x4xbf16, #tpu.memory_space<vmem>>, vector<18x18x4xbf16>
    %13 = vector.extract_strided_slice %12 {offsets = [0, 0, 0], sizes = [18, 16, 4], strides = [1, 1, 1]} : vector<18x18x4xbf16> to vector<18x16x4xbf16>
    %14 = vector.extract_strided_slice %12 {offsets = [0, 1, 0], sizes = [18, 16, 4], strides = [1, 1, 1]} : vector<18x18x4xbf16> to vector<18x16x4xbf16>
    %15 = vector.extract_strided_slice %12 {offsets = [0, 2, 0], sizes = [18, 16, 4], strides = [1, 1, 1]} : vector<18x18x4xbf16> to vector<18x16x4xbf16>
    %16 = vector.extract_strided_slice %13 {offsets = [0, 0, 0], sizes = [16, 16, 4], strides = [1, 1, 1]} : vector<18x16x4xbf16> to vector<16x16x4xbf16>
    %17 = vector.shape_cast %16 : vector<16x16x4xbf16> to vector<256x4xbf16>
    %c0_22 = arith.constant 0 : index
    %c0_23 = arith.constant 0 : index
    %18 = vector.load %arg8[%c0_22, %c0_23] : memref<256x36xbf16, #tpu.memory_space<vmem>>, vector<256x4xbf16>
    tpu.vector_store %arg8[%c0_22, %c0_23], %17 {strides = array<i32>} : memref<256x36xbf16, #tpu.memory_space<vmem>>, vector<256x4xbf16>,
    %19 = vector.extract_strided_slice %14 {offsets = [0, 0, 0], sizes = [16, 16, 4], strides = [1, 1, 1]} : vector<18x16x4xbf16> to vector<16x16x4xbf16>
    %20 = vector.shape_cast %19 : vector<16x16x4xbf16> to vector<256x4xbf16>
    %c0_24 = arith.constant 0 : index
    %c4 = arith.constant 4 : index
    %21 = vector.load %arg8[%c0_24, %c4] : memref<256x36xbf16, #tpu.memory_space<vmem>>, vector<256x4xbf16>
    tpu.vector_store %arg8[%c0_24, %c4], %20 {strides = array<i32>} : memref<256x36xbf16, #tpu.memory_space<vmem>>, vector<256x4xbf16>,
    %22 = vector.extract_strided_slice %15 {offsets = [0, 0, 0], sizes = [16, 16, 4], strides = [1, 1, 1]} : vector<18x16x4xbf16> to vector<16x16x4xbf16>
    %23 = vector.shape_cast %22 : vector<16x16x4xbf16> to vector<256x4xbf16>
    %c0_25 = arith.constant 0 : index
    %c8 = arith.constant 8 : index
    %24 = vector.load %arg8[%c0_25, %c8] : memref<256x36xbf16, #tpu.memory_space<vmem>>, vector<256x4xbf16>
    tpu.vector_store %arg8[%c0_25, %c8], %23 {strides = array<i32>} : memref<256x36xbf16, #tpu.memory_space<vmem>>, vector<256x4xbf16>,
    %25 = vector.extract_strided_slice %13 {offsets = [1, 0, 0], sizes = [16, 16, 4], strides = [1, 1, 1]} : vector<18x16x4xbf16> to vector<16x16x4xbf16>
    %26 = vector.shape_cast %25 : vector<16x16x4xbf16> to vector<256x4xbf16>
    %c0_26 = arith.constant 0 : index
    %c12 = arith.constant 12 : index
    %27 = vector.load %arg8[%c0_26, %c12] : memref<256x36xbf16, #tpu.memory_space<vmem>>, vector<256x4xbf16>
    tpu.vector_store %arg8[%c0_26, %c12], %26 {strides = array<i32>} : memref<256x36xbf16, #tpu.memory_space<vmem>>, vector<256x4xbf16>,
    %28 = vector.extract_strided_slice %14 {offsets = [1, 0, 0], sizes = [16, 16, 4], strides = [1, 1, 1]} : vector<18x16x4xbf16> to vector<16x16x4xbf16>
    %29 = vector.shape_cast %28 : vector<16x16x4xbf16> to vector<256x4xbf16>
    %c0_27 = arith.constant 0 : index
    %c16 = arith.constant 16 : index
    %30 = vector.load %arg8[%c0_27, %c16] : memref<256x36xbf16, #tpu.memory_space<vmem>>, vector<256x4xbf16>
    tpu.vector_store %arg8[%c0_27, %c16], %29 {strides = array<i32>} : memref<256x36xbf16, #tpu.memory_space<vmem>>, vector<256x4xbf16>,
    %31 = vector.extract_strided_slice %15 {offsets = [1, 0, 0], sizes = [16, 16, 4], strides = [1, 1, 1]} : vector<18x16x4xbf16> to vector<16x16x4xbf16>
    %32 = vector.shape_cast %31 : vector<16x16x4xbf16> to vector<256x4xbf16>
    %c0_28 = arith.constant 0 : index
    %c20 = arith.constant 20 : index
    %33 = vector.load %arg8[%c0_28, %c20] : memref<256x36xbf16, #tpu.memory_space<vmem>>, vector<256x4xbf16>
    tpu.vector_store %arg8[%c0_28, %c20], %32 {strides = array<i32>} : memref<256x36xbf16, #tpu.memory_space<vmem>>, vector<256x4xbf16>,
    %34 = vector.extract_strided_slice %13 {offsets = [2, 0, 0], sizes = [16, 16, 4], strides = [1, 1, 1]} : vector<18x16x4xbf16> to vector<16x16x4xbf16>
    %35 = vector.shape_cast %34 : vector<16x16x4xbf16> to vector<256x4xbf16>
    %c0_29 = arith.constant 0 : index
    %c24 = arith.constant 24 : index
    %36 = vector.load %arg8[%c0_29, %c24] : memref<256x36xbf16, #tpu.memory_space<vmem>>, vector<256x4xbf16>
    tpu.vector_store %arg8[%c0_29, %c24], %35 {strides = array<i32>} : memref<256x36xbf16, #tpu.memory_space<vmem>>, vector<256x4xbf16>,
    %37 = vector.extract_strided_slice %14 {offsets = [2, 0, 0], sizes = [16, 16, 4], strides = [1, 1, 1]} : vector<18x16x4xbf16> to vector<16x16x4xbf16>
    %38 = vector.shape_cast %37 : vector<16x16x4xbf16> to vector<256x4xbf16>
    %c0_30 = arith.constant 0 : index
    %c28 = arith.constant 28 : index
    %39 = vector.load %arg8[%c0_30, %c28] : memref<256x36xbf16, #tpu.memory_space<vmem>>, vector<256x4xbf16>
    tpu.vector_store %arg8[%c0_30, %c28], %38 {strides = array<i32>} : memref<256x36xbf16, #tpu.memory_space<vmem>>, vector<256x4xbf16>,
    %40 = vector.extract_strided_slice %15 {offsets = [2, 0, 0], sizes = [16, 16, 4], strides = [1, 1, 1]} : vector<18x16x4xbf16> to vector<16x16x4xbf16>
    %41 = vector.shape_cast %40 : vector<16x16x4xbf16> to vector<256x4xbf16>
    %c0_31 = arith.constant 0 : index
    %c32 = arith.constant 32 : index
    %42 = vector.load %arg8[%c0_31, %c32] : memref<256x36xbf16, #tpu.memory_space<vmem>>, vector<256x4xbf16>
    tpu.vector_store %arg8[%c0_31, %c32], %41 {strides = array<i32>} : memref<256x36xbf16, #tpu.memory_space<vmem>>, vector<256x4xbf16>,
    %c0_32 = arith.constant 0 : index
    %c0_33 = arith.constant 0 : index
    %43 = vector.load %arg8[%c0_32, %c0_33] : memref<256x36xbf16, #tpu.memory_space<vmem>>, vector<256x36xbf16>
    %c0_34 = arith.constant 0 : index
    %c0_35 = arith.constant 0 : index
    %44 = vector.load %arg2[%c0_34, %c0_35] : memref<36x8xbf16, #tpu.memory_space<vmem>>, vector<36x8xbf16>
    %cst_36 = arith.constant dense<0.000000e+00> : vector<256x8xf32>
    %45 = tpu.matmul %43, %44, %cst_36 {dimension_numbers = #tpu.dot_dimension_numbers<[1], [0], [0], [1], [0, 0, 1, 1], [], []>} : vector<256x36xbf16>, vector<36x8xbf16>, vector<256x8xf32> -> vector<256x8xf32>
    %c0_37 = arith.constant 0 : index
    %c0_38 = arith.constant 0 : index
    %46 = vector.load %arg3[%c0_37, %c0_38] : memref<1x8xf32, #tpu.memory_space<vmem>>, vector<1x8xf32>
    %47 = vector.broadcast %46 : vector<1x8xf32> to vector<256x8xf32>
    %48 = arith.addf %45, %47 : vector<256x8xf32>
    %cst_39 = arith.constant 0.000000e+00 : f32
    %49 = vector.broadcast %cst_39 : f32 to vector<256x8xf32>
    %50 = arith.maximumf %48, %49 : vector<256x8xf32>
    %cst_40 = arith.constant 0.000000e+00 : bf16
    %51 = vector.broadcast %cst_40 : bf16 to vector<1x18x8xbf16>
    %c0_41 = arith.constant 0 : index
    %c0_42 = arith.constant 0 : index
    %c0_43 = arith.constant 0 : index
    %52 = vector.load %arg9[%c0_41, %c0_42, %c0_43] : memref<18x18x8xbf16, #tpu.memory_space<vmem>>, vector<1x18x8xbf16>
    tpu.vector_store %arg9[%c0_41, %c0_42, %c0_43], %51 {strides = array<i32>} : memref<18x18x8xbf16, #tpu.memory_space<vmem>>, vector<1x18x8xbf16>,
    %cst_44 = arith.constant 0.000000e+00 : bf16
    %53 = vector.broadcast %cst_44 : bf16 to vector<1x18x8xbf16>
    %c17_45 = arith.constant 17 : index
    %c0_46 = arith.constant 0 : index
    %c0_47 = arith.constant 0 : index
    %54 = vector.load %arg9[%c17_45, %c0_46, %c0_47] : memref<18x18x8xbf16, #tpu.memory_space<vmem>>, vector<1x18x8xbf16>
    tpu.vector_store %arg9[%c17_45, %c0_46, %c0_47], %53 {strides = array<i32>} : memref<18x18x8xbf16, #tpu.memory_space<vmem>>, vector<1x18x8xbf16>,
    %cst_48 = arith.constant 0.000000e+00 : bf16
    %55 = vector.broadcast %cst_48 : bf16 to vector<18x1x8xbf16>
    %c0_49 = arith.constant 0 : index
    %c0_50 = arith.constant 0 : index
    %c0_51 = arith.constant 0 : index
    %56 = vector.load %arg9[%c0_49, %c0_50, %c0_51] : memref<18x18x8xbf16, #tpu.memory_space<vmem>>, vector<18x1x8xbf16>
    tpu.vector_store %arg9[%c0_49, %c0_50, %c0_51], %55 {strides = array<i32>} : memref<18x18x8xbf16, #tpu.memory_space<vmem>>, vector<18x1x8xbf16>,
    %cst_52 = arith.constant 0.000000e+00 : bf16
    %57 = vector.broadcast %cst_52 : bf16 to vector<18x1x8xbf16>
    %c0_53 = arith.constant 0 : index
    %c17_54 = arith.constant 17 : index
    %c0_55 = arith.constant 0 : index
    %58 = vector.load %arg9[%c0_53, %c17_54, %c0_55] : memref<18x18x8xbf16, #tpu.memory_space<vmem>>, vector<18x1x8xbf16>
    tpu.vector_store %arg9[%c0_53, %c17_54, %c0_55], %57 {strides = array<i32>} : memref<18x18x8xbf16, #tpu.memory_space<vmem>>, vector<18x1x8xbf16>,
    %59 = vector.shape_cast %50 : vector<256x8xf32> to vector<16x16x8xf32>
    %60 = arith.truncf %59 : vector<16x16x8xf32> to vector<16x16x8xbf16>
    %c1_56 = arith.constant 1 : index
    %c1_57 = arith.constant 1 : index
    %c0_58 = arith.constant 0 : index
    %61 = vector.load %arg9[%c1_56, %c1_57, %c0_58] : memref<18x18x8xbf16, #tpu.memory_space<vmem>>, vector<16x16x8xbf16>
    tpu.vector_store %arg9[%c1_56, %c1_57, %c0_58], %60 {strides = array<i32>} : memref<18x18x8xbf16, #tpu.memory_space<vmem>>, vector<16x16x8xbf16>,
    %c0_59 = arith.constant 0 : index
    %c0_60 = arith.constant 0 : index
    %c0_61 = arith.constant 0 : index
    %62 = vector.load %arg9[%c0_59, %c0_60, %c0_61] : memref<18x18x8xbf16, #tpu.memory_space<vmem>>, vector<18x18x8xbf16>
    %63 = vector.extract_strided_slice %62 {offsets = [0, 0, 0], sizes = [18, 16, 8], strides = [1, 1, 1]} : vector<18x18x8xbf16> to vector<18x16x8xbf16>
    %64 = vector.extract_strided_slice %62 {offsets = [0, 1, 0], sizes = [18, 16, 8], strides = [1, 1, 1]} : vector<18x18x8xbf16> to vector<18x16x8xbf16>
    %65 = vector.extract_strided_slice %62 {offsets = [0, 2, 0], sizes = [18, 16, 8], strides = [1, 1, 1]} : vector<18x18x8xbf16> to vector<18x16x8xbf16>
    %66 = vector.extract_strided_slice %63 {offsets = [0, 0, 0], sizes = [16, 16, 8], strides = [1, 1, 1]} : vector<18x16x8xbf16> to vector<16x16x8xbf16>
    %67 = vector.shape_cast %66 : vector<16x16x8xbf16> to vector<256x8xbf16>
    %c0_62 = arith.constant 0 : index
    %c0_63 = arith.constant 0 : index
    %68 = vector.load %arg10[%c0_62, %c0_63] : memref<256x72xbf16, #tpu.memory_space<vmem>>, vector<256x8xbf16>
    tpu.vector_store %arg10[%c0_62, %c0_63], %67 {strides = array<i32>} : memref<256x72xbf16, #tpu.memory_space<vmem>>, vector<256x8xbf16>,
    %69 = vector.extract_strided_slice %64 {offsets = [0, 0, 0], sizes = [16, 16, 8], strides = [1, 1, 1]} : vector<18x16x8xbf16> to vector<16x16x8xbf16>
    %70 = vector.shape_cast %69 : vector<16x16x8xbf16> to vector<256x8xbf16>
    %c0_64 = arith.constant 0 : index
    %c8_65 = arith.constant 8 : index
    %71 = vector.load %arg10[%c0_64, %c8_65] : memref<256x72xbf16, #tpu.memory_space<vmem>>, vector<256x8xbf16>
    tpu.vector_store %arg10[%c0_64, %c8_65], %70 {strides = array<i32>} : memref<256x72xbf16, #tpu.memory_space<vmem>>, vector<256x8xbf16>,
    %72 = vector.extract_strided_slice %65 {offsets = [0, 0, 0], sizes = [16, 16, 8], strides = [1, 1, 1]} : vector<18x16x8xbf16> to vector<16x16x8xbf16>
    %73 = vector.shape_cast %72 : vector<16x16x8xbf16> to vector<256x8xbf16>
    %c0_66 = arith.constant 0 : index
    %c16_67 = arith.constant 16 : index
    %74 = vector.load %arg10[%c0_66, %c16_67] : memref<256x72xbf16, #tpu.memory_space<vmem>>, vector<256x8xbf16>
    tpu.vector_store %arg10[%c0_66, %c16_67], %73 {strides = array<i32>} : memref<256x72xbf16, #tpu.memory_space<vmem>>, vector<256x8xbf16>,
    %75 = vector.extract_strided_slice %63 {offsets = [1, 0, 0], sizes = [16, 16, 8], strides = [1, 1, 1]} : vector<18x16x8xbf16> to vector<16x16x8xbf16>
    %76 = vector.shape_cast %75 : vector<16x16x8xbf16> to vector<256x8xbf16>
    %c0_68 = arith.constant 0 : index
    %c24_69 = arith.constant 24 : index
    %77 = vector.load %arg10[%c0_68, %c24_69] : memref<256x72xbf16, #tpu.memory_space<vmem>>, vector<256x8xbf16>
    tpu.vector_store %arg10[%c0_68, %c24_69], %76 {strides = array<i32>} : memref<256x72xbf16, #tpu.memory_space<vmem>>, vector<256x8xbf16>,
    %78 = vector.extract_strided_slice %64 {offsets = [1, 0, 0], sizes = [16, 16, 8], strides = [1, 1, 1]} : vector<18x16x8xbf16> to vector<16x16x8xbf16>
    %79 = vector.shape_cast %78 : vector<16x16x8xbf16> to vector<256x8xbf16>
    %c0_70 = arith.constant 0 : index
    %c32_71 = arith.constant 32 : index
    %80 = vector.load %arg10[%c0_70, %c32_71] : memref<256x72xbf16, #tpu.memory_space<vmem>>, vector<256x8xbf16>
    tpu.vector_store %arg10[%c0_70, %c32_71], %79 {strides = array<i32>} : memref<256x72xbf16, #tpu.memory_space<vmem>>, vector<256x8xbf16>,
    %81 = vector.extract_strided_slice %65 {offsets = [1, 0, 0], sizes = [16, 16, 8], strides = [1, 1, 1]} : vector<18x16x8xbf16> to vector<16x16x8xbf16>
    %82 = vector.shape_cast %81 : vector<16x16x8xbf16> to vector<256x8xbf16>
    %c0_72 = arith.constant 0 : index
    %c40 = arith.constant 40 : index
    %83 = vector.load %arg10[%c0_72, %c40] : memref<256x72xbf16, #tpu.memory_space<vmem>>, vector<256x8xbf16>
    tpu.vector_store %arg10[%c0_72, %c40], %82 {strides = array<i32>} : memref<256x72xbf16, #tpu.memory_space<vmem>>, vector<256x8xbf16>,
    %84 = vector.extract_strided_slice %63 {offsets = [2, 0, 0], sizes = [16, 16, 8], strides = [1, 1, 1]} : vector<18x16x8xbf16> to vector<16x16x8xbf16>
    %85 = vector.shape_cast %84 : vector<16x16x8xbf16> to vector<256x8xbf16>
    %c0_73 = arith.constant 0 : index
    %c48 = arith.constant 48 : index
    %86 = vector.load %arg10[%c0_73, %c48] : memref<256x72xbf16, #tpu.memory_space<vmem>>, vector<256x8xbf16>
    tpu.vector_store %arg10[%c0_73, %c48], %85 {strides = array<i32>} : memref<256x72xbf16, #tpu.memory_space<vmem>>, vector<256x8xbf16>,
    %87 = vector.extract_strided_slice %64 {offsets = [2, 0, 0], sizes = [16, 16, 8], strides = [1, 1, 1]} : vector<18x16x8xbf16> to vector<16x16x8xbf16>
    %88 = vector.shape_cast %87 : vector<16x16x8xbf16> to vector<256x8xbf16>
    %c0_74 = arith.constant 0 : index
    %c56 = arith.constant 56 : index
    %89 = vector.load %arg10[%c0_74, %c56] : memref<256x72xbf16, #tpu.memory_space<vmem>>, vector<256x8xbf16>
    tpu.vector_store %arg10[%c0_74, %c56], %88 {strides = array<i32>} : memref<256x72xbf16, #tpu.memory_space<vmem>>, vector<256x8xbf16>,
    %90 = vector.extract_strided_slice %65 {offsets = [2, 0, 0], sizes = [16, 16, 8], strides = [1, 1, 1]} : vector<18x16x8xbf16> to vector<16x16x8xbf16>
    %91 = vector.shape_cast %90 : vector<16x16x8xbf16> to vector<256x8xbf16>
    %c0_75 = arith.constant 0 : index
    %c64 = arith.constant 64 : index
    %92 = vector.load %arg10[%c0_75, %c64] : memref<256x72xbf16, #tpu.memory_space<vmem>>, vector<256x8xbf16>
    tpu.vector_store %arg10[%c0_75, %c64], %91 {strides = array<i32>} : memref<256x72xbf16, #tpu.memory_space<vmem>>, vector<256x8xbf16>,
    %c0_76 = arith.constant 0 : index
    %c0_77 = arith.constant 0 : index
    %93 = vector.load %arg10[%c0_76, %c0_77] : memref<256x72xbf16, #tpu.memory_space<vmem>>, vector<256x72xbf16>
    %c0_78 = arith.constant 0 : index
    %c0_79 = arith.constant 0 : index
    %94 = vector.load %arg4[%c0_78, %c0_79] : memref<72x8xbf16, #tpu.memory_space<vmem>>, vector<72x8xbf16>
    %cst_80 = arith.constant dense<0.000000e+00> : vector<256x8xf32>
    %95 = tpu.matmul %93, %94, %cst_80 {dimension_numbers = #tpu.dot_dimension_numbers<[1], [0], [0], [1], [0, 0, 1, 1], [], []>} : vector<256x72xbf16>, vector<72x8xbf16>, vector<256x8xf32> -> vector<256x8xf32>
    %c0_81 = arith.constant 0 : index
    %c0_82 = arith.constant 0 : index
    %96 = vector.load %arg5[%c0_81, %c0_82] : memref<1x8xf32, #tpu.memory_space<vmem>>, vector<1x8xf32>
    %97 = vector.broadcast %96 : vector<1x8xf32> to vector<256x8xf32>
    %98 = arith.addf %95, %97 : vector<256x8xf32>
    %cst_83 = arith.constant 0.000000e+00 : f32
    %99 = vector.broadcast %cst_83 : f32 to vector<256x8xf32>
    %100 = arith.maximumf %98, %99 : vector<256x8xf32>
    %101 = tpu.transpose %100, [1, 0] : vector<256x8xf32> -> vector<8x256xf32>
    %c0_84 = arith.constant 0 : index
    %c0_85 = arith.constant 0 : index
    %c0_86 = arith.constant 0 : index
    %102 = vector.load %arg6[%c0_84, %c0_85, %c0_86] : memref<1x8x256xf32, #tpu.memory_space<vmem>>, vector<1x8x256xf32>
    %103 = vector.shape_cast %102 : vector<1x8x256xf32> to vector<8x256xf32>
    %104 = vector.shape_cast %101 : vector<8x256xf32> to vector<1x8x256xf32>
    tpu.vector_store %arg6[%c0_84, %c0_85, %c0_86], %104 {strides = array<i32>} : memref<1x8x256xf32, #tpu.memory_space<vmem>>, vector<1x8x256xf32>,
    return
  }
  func.func @transform_0(%arg0: i32) -> (i32, i32, i32, i32) {
    %c0_i32 = arith.constant 0 : i32
    %c0_i32_0 = arith.constant 0 : i32
    %c0_i32_1 = arith.constant 0 : i32
    %c0_i32_2 = arith.constant 0 : i32
    return %arg0, %c0_i32, %c0_i32_0, %c0_i32_1 : i32, i32, i32, i32
  }
  func.func @transform_1(%arg0: i32) -> (i32, i32) {
    %c0_i32 = arith.constant 0 : i32
    %c0_i32_0 = arith.constant 0 : i32
    %c0_i32_1 = arith.constant 0 : i32
    return %c0_i32, %c0_i32_0 : i32, i32
  }
  func.func @transform_2(%arg0: i32) -> (i32, i32) {
    %c0_i32 = arith.constant 0 : i32
    %c0_i32_0 = arith.constant 0 : i32
    %c0_i32_1 = arith.constant 0 : i32
    return %c0_i32, %c0_i32_0 : i32, i32
  }
  func.func @transform_3(%arg0: i32) -> (i32, i32) {
    %c0_i32 = arith.constant 0 : i32
    %c0_i32_0 = arith.constant 0 : i32
    %c0_i32_1 = arith.constant 0 : i32
    return %c0_i32, %c0_i32_0 : i32, i32
  }
  func.func @transform_4(%arg0: i32) -> (i32, i32) {
    %c0_i32 = arith.constant 0 : i32
    %c0_i32_0 = arith.constant 0 : i32
    %c0_i32_1 = arith.constant 0 : i32
    return %c0_i32, %c0_i32_0 : i32, i32
  }
  func.func @transform_5(%arg0: i32) -> (i32, i32, i32) {
    %c0_i32 = arith.constant 0 : i32
    %c0_i32_0 = arith.constant 0 : i32
    %c0_i32_1 = arith.constant 0 : i32
    return %arg0, %c0_i32, %c0_i32_0 : i32, i32, i32
  }
}

</mosaic_0001>

<llo_original>
// kernel: tpu_custom_call.1
$region0: #{tpu_custom_call.1}
  #allocation0 [shape = 'u32[]', space=smem, size = 0x4, offset = 0x4, fixed_abs, tag = 'smem constant byte address 0x4 - core index']
  #allocation1 [shape = 'u32[144,128]{1,0:T(1,128)}', space=vmem, size = 0x12000, scoped, tag = 'internal scratch']
  #allocation2 [shape = 'bf16[18,18,4]{2,1,0:T(8,128)(2,1)}', space=vmem, size = 0x1b000, scoped, tag = 'scratch operand']
  #allocation3 [shape = 'bf16[256,36]{1,0:T(16,128)(2,1)}', space=vmem, size = 0x10000, scoped, tag = 'scratch operand']
  #allocation4 [shape = 'bf16[18,18,8]{2,1,0:T(8,128)(2,1)}', space=vmem, size = 0x1b000, scoped, tag = 'scratch operand']
  #allocation5 [shape = 'bf16[256,72]{1,0:T(16,128)(2,1)}', space=vmem, size = 0x10000, scoped, tag = 'scratch operand']
  %s0 = inlined_call_operand.vmem [shape: f32[2,16,16,4], index: 0, kind: input, shape index: {}]
  %s1 = inlined_call_operand.vmem [shape: bf16[36,8], index: 1, kind: input, shape index: {}]
  %s2 = inlined_call_operand.vmem [shape: f32[1,8], index: 2, kind: input, shape index: {}]
  %s3 = inlined_call_operand.vmem [shape: bf16[72,8], index: 3, kind: input, shape index: {}]
  %s4 = inlined_call_operand.vmem [shape: f32[1,8], index: 4, kind: input, shape index: {}]
  %s5 = inlined_call_operand.hbm [shape: f32[2,8,256], index: 5, kind: output, shape index: {}]
  %s6 = sld [smem:[#allocation0]]
  $region53: #{tpu_custom_call.1} parent=0
    _
  %s8 = ssub.s32 1, %s6
  %s9 = scalar_select 0, %s8, %s6
  $region1: #{tpu_custom_call.1} parent=0
    #allocation6 [shape = 'u8[16384]{0}', space=vmem, size = 0x4000, scoped, tag = 'output window, operand 0']
    #allocation7 [shape = 's32[2]{0}', space=sflag, size = 0x8, scoped, tag = 'scoped memory for tpu_custom_call.1']
    %10 = vsyncpa [#allocation7], 0
    %s11 = scalar_lea.sflag [#allocation7], 1
    %12 = vsyncpa %s11, 0
    loop: start=0, step=1, limit=4
    $region2: #{tpu_custom_call.1} parent=1 // loop_pre_header
      _
    $region3: #{tpu_custom_call.1} parent=1 // loop_header
      %s14 = sphi 0, %s18
      %p15 = scmp.ge.s32.totalorder %s14, 4
      %s24 = sphi 0, %s26
      %s27 = sphi 0, %s24
      %s28 = sphi 0, %s27
      %s44 = sphi 0, %s28
      %s48 = sphi 0, %s48
      %s50 = sphi 0, %s48
      %s51 = sphi 0, %s50
      %s65 = sphi 0, %s51
      %s69 = sphi 0, %s69
      %s71 = sphi 0, %s69
      %s72 = sphi 0, %s71
      %s86 = sphi 0, %s72
      %s90 = sphi 0, %s90
      %s92 = sphi 0, %s90
      %s93 = sphi 0, %s92
      %s107 = sphi 0, %s93
      %s111 = sphi 0, %s111
      %s113 = sphi 0, %s111
      %s114 = sphi 0, %s113
      %s128 = sphi 0, %s114
      %s134 = sphi 0, %s136
      %s137 = sphi 0, %s134
      %s138 = sphi 0, %s137
      %s154 = sphi 0, %s138
    $region4: #{tpu_custom_call.1} parent=1 // loop_header_branch
      %17 = sbr.rel (%p15) target = $region8
    $region5: #{tpu_custom_call.1} parent=1 // loop_body
      %s19 = ssub.s32 %s14, 1
      %s20 = ssub.s32 %s14, 2
      %s21 = sadd.s32 %s14, 1
      %s22 = ssub.s32 %s14, %s21
      %p23 = scmp.eq.s32.totalorder %s22, 0
      %s25 = sadd.s32 %s24, 1
      %s26 = scalar_select %p23, %s24, %s25
      %p29 = pneg %p23
      %p30 = scmp.eq.s32.totalorder %s14, 1
      %p31 = por %p29, %p30
      %p32 = scmp.ne.s32.totalorder %s24, %s27
      %p33 = scmp.eq.s32.totalorder %s14, 0
      %p34 = por %p32, %p33
      %p35 = scmp.ne.s32.totalorder %s24, %s27
      %p36 = scmp.eq.s32.totalorder %s19, 1
      %p37 = por %p35, %p36
      %p38 = scmp.ne.s32.totalorder %s27, %s28
      %p39 = scmp.eq.s32.totalorder %s19, 0
      %p40 = por %p38, %p39
      %p41 = scmp.ne.s32.totalorder %s27, %s28
      %p42 = scmp.eq.s32.totalorder %s20, 1
      %p43 = por %p41, %p42
      %p45 = scmp.ne.s32.totalorder %s28, %s44
      %p46 = scmp.eq.s32.totalorder %s20, 0
      %p47 = por %p45, %p46
      %s49 = sadd.s32 %s48, 1
      %p52 = scmp.eq.s32.totalorder %s14, 1
      %p53 = scmp.ne.s32.totalorder %s48, %s50
      %p54 = scmp.eq.s32.totalorder %s14, 0
      %p55 = por %p53, %p54
      %p56 = scmp.ne.s32.totalorder %s48, %s50
      %p57 = scmp.eq.s32.totalorder %s19, 1
      %p58 = por %p56, %p57
      %p59 = scmp.ne.s32.totalorder %s50, %s51
      %p60 = scmp.eq.s32.totalorder %s19, 0
      %p61 = por %p59, %p60
      %p62 = scmp.ne.s32.totalorder %s50, %s51
      %p63 = scmp.eq.s32.totalorder %s20, 1
      %p64 = por %p62, %p63
      %p66 = scmp.ne.s32.totalorder %s51, %s65
      %p67 = scmp.eq.s32.totalorder %s20, 0
      %p68 = por %p66, %p67
      %s70 = sadd.s32 %s69, 1
      %p73 = scmp.eq.s32.totalorder %s14, 1
      %p74 = scmp.ne.s32.totalorder %s69, %s71
      %p75 = scmp.eq.s32.totalorder %s14, 0
      %p76 = por %p74, %p75
      %p77 = scmp.ne.s32.totalorder %s69, %s71
      %p78 = scmp.eq.s32.totalorder %s19, 1
      %p79 = por %p77, %p78
      %p80 = scmp.ne.s32.totalorder %s71, %s72
      %p81 = scmp.eq.s32.totalorder %s19, 0
      %p82 = por %p80, %p81
      %p83 = scmp.ne.s32.totalorder %s71, %s72
      %p84 = scmp.eq.s32.totalorder %s20, 1
      %p85 = por %p83, %p84
      %p87 = scmp.ne.s32.totalorder %s72, %s86
      %p88 = scmp.eq.s32.totalorder %s20, 0
      %p89 = por %p87, %p88
      %s91 = sadd.s32 %s90, 1
      %p94 = scmp.eq.s32.totalorder %s14, 1
      %p95 = scmp.ne.s32.totalorder %s90, %s92
      %p96 = scmp.eq.s32.totalorder %s14, 0
      %p97 = por %p95, %p96
      %p98 = scmp.ne.s32.totalorder %s90, %s92
      %p99 = scmp.eq.s32.totalorder %s19, 1
      %p100 = por %p98, %p99
      %p101 = scmp.ne.s32.totalorder %s92, %s93
      %p102 = scmp.eq.s32.totalorder %s19, 0
      %p103 = por %p101, %p102
      %p104 = scmp.ne.s32.totalorder %s92, %s93
      %p105 = scmp.eq.s32.totalorder %s20, 1
      %p106 = por %p104, %p105
      %p108 = scmp.ne.s32.totalorder %s93, %s107
      %p109 = scmp.eq.s32.totalorder %s20, 0
      %p110 = por %p108, %p109
      %s112 = sadd.s32 %s111, 1
      %p115 = scmp.eq.s32.totalorder %s14, 1
      %p116 = scmp.ne.s32.totalorder %s111, %s113
      %p117 = scmp.eq.s32.totalorder %s14, 0
      %p118 = por %p116, %p117
      %p119 = scmp.ne.s32.totalorder %s111, %s113
      %p120 = scmp.eq.s32.totalorder %s19, 1
      %p121 = por %p119, %p120
      %p122 = scmp.ne.s32.totalorder %s113, %s114
      %p123 = scmp.eq.s32.totalorder %s19, 0
      %p124 = por %p122, %p123
      %p125 = scmp.ne.s32.totalorder %s113, %s114
      %p126 = scmp.eq.s32.totalorder %s20, 1
      %p127 = por %p125, %p126
      %p129 = scmp.ne.s32.totalorder %s114, %s128
      %p130 = scmp.eq.s32.totalorder %s20, 0
      %p131 = por %p129, %p130
      %s132 = ssub.s32 %s14, %s21
      %p133 = scmp.eq.s32.totalorder %s132, 0
      %s135 = sadd.s32 %s134, 1
      %s136 = scalar_select %p133, %s134, %s135
      %p139 = pneg %p133
      %p140 = scmp.eq.s32.totalorder %s14, 1
      %p141 = por %p139, %p140
      %p142 = scmp.ne.s32.totalorder %s134, %s137
      %p143 = scmp.eq.s32.totalorder %s14, 0
      %p144 = por %p142, %p143
      %p145 = scmp.ne.s32.totalorder %s134, %s137
      %p146 = scmp.eq.s32.totalorder %s19, 1
      %p147 = por %p145, %p146
      %p148 = scmp.ne.s32.totalorder %s137, %s138
      %p149 = scmp.eq.s32.totalorder %s19, 0
      %p150 = por %p148, %p149
      %p151 = scmp.ne.s32.totalorder %s137, %s138
      %p152 = scmp.eq.s32.totalorder %s20, 1
      %p153 = por %p151, %p152
      %p155 = scmp.ne.s32.totalorder %s138, %s154
      %p156 = scmp.eq.s32.totalorder %s20, 0
      %p157 = por %p155, %p156
      %p158 = scmp.le.s32.totalorder 1, %s14
      %p159 = scmp.lt.s32.totalorder %s14, 3
      %p160 = pnand %p158, %p159
      %p161 = pneg %p160
      // Predicated region
      $region9: #{tpu_custom_call.1} parent=5 // pred_check
        _
      $region10: #{tpu_custom_call.1} parent=5 // pred_check_branch
        %163 = sbr.rel (%p160) target = $region12
      $region11: #{tpu_custom_call.1} parent=5 // pred_region
        %s164 = ssub.s32 %s14, 1
        // Predicated region
        $region13: #{tpu_custom_call.1} parent=11 // pred_check
          %p165 = pneg %p61
        $region14: #{tpu_custom_call.1} parent=11 // pred_check_branch
          %167 = sbr.rel (%p165) target = $region16
        $region15: #{tpu_custom_call.1} parent=11 // pred_region
          _
        $region16: #{tpu_custom_call.1} parent=11 // pred_fallthru
          _
        // Predicated region
        $region17: #{tpu_custom_call.1} parent=11 // pred_check
          %p168 = pneg %p82
        $region18: #{tpu_custom_call.1} parent=11 // pred_check_branch
          %170 = sbr.rel (%p168) target = $region20
        $region19: #{tpu_custom_call.1} parent=11 // pred_region
          _
        $region20: #{tpu_custom_call.1} parent=11 // pred_fallthru
          _
        // Predicated region
        $region21: #{tpu_custom_call.1} parent=11 // pred_check
          %p171 = pneg %p103
        $region22: #{tpu_custom_call.1} parent=11 // pred_check_branch
          %173 = sbr.rel (%p171) target = $region24
        $region23: #{tpu_custom_call.1} parent=11 // pred_region
          _
        $region24: #{tpu_custom_call.1} parent=11 // pred_fallthru
          _
        // Predicated region
        $region25: #{tpu_custom_call.1} parent=11 // pred_check
          %p174 = pneg %p124
        $region26: #{tpu_custom_call.1} parent=11 // pred_check_branch
          %176 = sbr.rel (%p174) target = $region28
        $region27: #{tpu_custom_call.1} parent=11 // pred_region
          _
        $region28: #{tpu_custom_call.1} parent=11 // pred_fallthru
          _
      $region12: #{tpu_custom_call.1} parent=5 // pred_fallthru
        _
      %p177 = scmp.lt.s32.totalorder %s14, 2
      // Predicated region
      $region29: #{tpu_custom_call.1} parent=5 // pred_check
        %p178 = pneg %p177
      $region30: #{tpu_custom_call.1} parent=5 // pred_check_branch
        %180 = sbr.rel (%p178) target = $region32
      $region31: #{tpu_custom_call.1} parent=5 // pred_region
        // Predicated region
        $region33: #{tpu_custom_call.1} parent=31 // pred_check
          %p181 = pneg %p34
        $region34: #{tpu_custom_call.1} parent=31 // pred_check_branch
          %183 = sbr.rel (%p181) target = $region36
        $region35: #{tpu_custom_call.1} parent=31 // pred_region
          %p184 = scmp.lt.s32.totalorder %s14, 1
          %s185 = scalar_select %p184, %s14, 1
          %s186 = smul.addr %s185, 32
          %s187 = smul.addr %s186, 8
          %s188 = scalar_lea.vmem %s0, %s187
        $region36: #{tpu_custom_call.1} parent=31 // pred_fallthru
          _
      $region32: #{tpu_custom_call.1} parent=5 // pred_fallthru
        _
      %p189 = scmp.le.s32.totalorder 1, %s14
      %p190 = scmp.lt.s32.totalorder %s14, 3
      %p191 = pnand %p189, %p190
      %p192 = pneg %p191
      // Predicated region
      $region37: #{tpu_custom_call.1} parent=5 // pred_check
        _
      $region38: #{tpu_custom_call.1} parent=5 // pred_check_branch
        %194 = sbr.rel (%p191) target = $region40
      $region39: #{tpu_custom_call.1} parent=5 // pred_region
        %s195 = ssub.s32 %s14, 1
        %p196 = scmp.lt.s32.totalorder %s19, 1
        %s197 = scalar_select %p196, %s19, 1
        %s198 = smul.addr %s197, 32
        %s199 = smul.addr %s198, 8
        %s200 = scalar_lea.vmem %s0, %s199
        %p201 = pneg %p40
        %p202 = pneg %p37
        %p203 = pneg %p61
        %p204 = pneg %p58
        %p205 = pneg %p82
        %p206 = pneg %p79
        %p207 = pneg %p103
        %p208 = pneg %p100
        %p209 = pneg %p124
        %p210 = pneg %p121
        %p211 = pneg %p150
        %p212 = pneg %p147
        %s213 = sand.u32 %s137, 1
        %s214 = scalar_lea.sflag [#allocation7], %s213
        %s215 = sand.u32 %s137, 1
        %s216 = smul.addr %s215, 16
        %s217 = scalar_lea.vmem [#allocation6], %s216
        %p218 = scmp.lt.s32.totalorder %s19, 1
        %s219 = scalar_select %p218, %s19, 1
        %s220 = smul.addr %s219, 32
        %s221 = smul.addr %s220, 8
        %s222 = scalar_lea.vmem %s0, %s221
        %vm224 = vcmask 27648
        %225 = vst.msk [vmem:[#allocation2] sm:$0xf] %vm224, 0
        %226 = vst.msk [vmem:[#allocation2 + $0x4] sm:$0xf] %vm224, 0
        %vm227 = vcmask 24576
        %228 = vst.msk [vmem:[#allocation2 + $0x8] sm:$0x1] %vm227, 0
        %s229 = scalar_lea.vmem [#allocation2], 204
        %230 = vst.msk [vmem:[%s229] sm:$0xf] %vm224, 0
        %231 = vst.msk [vmem:[%s229 + $0x4] sm:$0xf] %vm224, 0
        %232 = vst.msk [vmem:[%s229 + $0x8] sm:$0x1] %vm227, 0
        %vm233 = vcmask 24576
        %vm234 = vsmask.f32 256
        %vm235 = vmand %vm233, %vm234
        %v236 = vld [vmem:[#allocation2] sm:$0x1]
        %v237 = vsel %vm235, 0, %v236
        %238 = vst [vmem:[#allocation2] sm:$0x1] %v237
        %v239 = vld [vmem:[#allocation2 + $0xc] sm:$0x1]
        %v240 = vsel %vm235, 0, %v239
        %241 = vst [vmem:[#allocation2 + $0xc] sm:$0x1] %v240
        %v242 = vld [vmem:[#allocation2 + $0x18] sm:$0x1]
        %v243 = vsel %vm235, 0, %v242
        %244 = vst [vmem:[#allocation2 + $0x18] sm:$0x1] %v243
        %v245 = vld [vmem:[#allocation2 + $0x24] sm:$0x1]
        %v246 = vsel %vm235, 0, %v245
        %247 = vst [vmem:[#allocation2 + $0x24] sm:$0x1] %v246
        %v248 = vld [vmem:[#allocation2 + $0x30] sm:$0x1]
        %v249 = vsel %vm235, 0, %v248
        %250 = vst [vmem:[#allocation2 + $0x30] sm:$0x1] %v249
        %v251 = vld [vmem:[#allocation2 + $0x3c] sm:$0x1]
        %v252 = vsel %vm235, 0, %v251
        %253 = vst [vmem:[#allocation2 + $0x3c] sm:$0x1] %v252
        %v254 = vld [vmem:[#allocation2 + $0x48] sm:$0x1]
        %v255 = vsel %vm235, 0, %v254
        %256 = vst [vmem:[#allocation2 + $0x48] sm:$0x1] %v255
        %v257 = vld [vmem:[#allocation2 + $0x54] sm:$0x1]
        %v258 = vsel %vm235, 0, %v257
        %259 = vst [vmem:[#allocation2 + $0x54] sm:$0x1] %v258
        %v260 = vld [vmem:[#allocation2 + $0x60] sm:$0x1]
        %v261 = vsel %vm235, 0, %v260
        %262 = vst [vmem:[#allocation2 + $0x60] sm:$0x1] %v261
        %v263 = vld [vmem:[#allocation2 + $0x6c] sm:$0x1]
        %v264 = vsel %vm235, 0, %v263
        %265 = vst [vmem:[#allocation2 + $0x6c] sm:$0x1] %v264
        %v266 = vld [vmem:[#allocation2 + $0x78] sm:$0x1]
        %v267 = vsel %vm235, 0, %v266
        %268 = vst [vmem:[#allocation2 + $0x78] sm:$0x1] %v267
        %v269 = vld [vmem:[#allocation2 + $0x84] sm:$0x1]
        %v270 = vsel %vm235, 0, %v269
        %271 = vst [vmem:[#allocation2 + $0x84] sm:$0x1] %v270
        %v272 = vld [vmem:[#allocation2 + $0x90] sm:$0x1]
        %v273 = vsel %vm235, 0, %v272
        %274 = vst [vmem:[#allocation2 + $0x90] sm:$0x1] %v273
        %v275 = vld [vmem:[#allocation2 + $0x9c] sm:$0x1]
        %v276 = vsel %vm235, 0, %v275
        %277 = vst [vmem:[#allocation2 + $0x9c] sm:$0x1] %v276
        %v278 = vld [vmem:[#allocation2 + $0xa8] sm:$0x1]
        %v279 = vsel %vm235, 0, %v278
        %280 = vst [vmem:[#allocation2 + $0xa8] sm:$0x1] %v279
        %v281 = vld [vmem:[#allocation2 + $0xb4] sm:$0x1]
        %v282 = vsel %vm235, 0, %v281
        %283 = vst [vmem:[#allocation2 + $0xb4] sm:$0x1] %v282
        %v284 = vld [vmem:[#allocation2 + $0xc0] sm:$0x1]
        %v285 = vsel %vm235, 0, %v284
        %286 = vst [vmem:[#allocation2 + $0xc0] sm:$0x1] %v285
        %v287 = vld [vmem:[#allocation2 + $0xcc] sm:$0x1]
        %v288 = vsel %vm235, 0, %v287
        %289 = vst [vmem:[#allocation2 + $0xcc] sm:$0x1] %v288
        %vm290 = vsmask.f32 7938
        %vm291 = vmand %vm233, %vm290
        %v292 = vld [vmem:[#allocation2 + $0x8] sm:$0x1]
        %v293 = vsel %vm291, 0, %v292
        %294 = vst [vmem:[#allocation2 + $0x8] sm:$0x1] %v293
        %v295 = vld [vmem:[#allocation2 + $0x14] sm:$0x1]
        %v296 = vsel %vm291, 0, %v295
        %297 = vst [vmem:[#allocation2 + $0x14] sm:$0x1] %v296
        %v298 = vld [vmem:[#allocation2 + $0x20] sm:$0x1]
        %v299 = vsel %vm291, 0, %v298
        %300 = vst [vmem:[#allocation2 + $0x20] sm:$0x1] %v299
        %v301 = vld [vmem:[#allocation2 + $0x2c] sm:$0x1]
        %v302 = vsel %vm291, 0, %v301
        %303 = vst [vmem:[#allocation2 + $0x2c] sm:$0x1] %v302
        %v304 = vld [vmem:[#allocation2 + $0x38] sm:$0x1]
        %v305 = vsel %vm291, 0, %v304
        %306 = vst [vmem:[#allocation2 + $0x38] sm:$0x1] %v305
        %v307 = vld [vmem:[#allocation2 + $0x44] sm:$0x1]
        %v308 = vsel %vm291, 0, %v307
        %309 = vst [vmem:[#allocation2 + $0x44] sm:$0x1] %v308
        %v310 = vld [vmem:[#allocation2 + $0x50] sm:$0x1]
        %v311 = vsel %vm291, 0, %v310
        %312 = vst [vmem:[#allocation2 + $0x50] sm:$0x1] %v311
        %v313 = vld [vmem:[#allocation2 + $0x5c] sm:$0x1]
        %v314 = vsel %vm291, 0, %v313
        %315 = vst [vmem:[#allocation2 + $0x5c] sm:$0x1] %v314
        %v316 = vld [vmem:[#allocation2 + $0x68] sm:$0x1]
        %v317 = vsel %vm291, 0, %v316
        %318 = vst [vmem:[#allocation2 + $0x68] sm:$0x1] %v317
        %v319 = vld [vmem:[#allocation2 + $0x74] sm:$0x1]
        %v320 = vsel %vm291, 0, %v319
        %321 = vst [vmem:[#allocation2 + $0x74] sm:$0x1] %v320
        %v322 = vld [vmem:[#allocation2 + $0x80] sm:$0x1]
        %v323 = vsel %vm291, 0, %v322
        %324 = vst [vmem:[#allocation2 + $0x80] sm:$0x1] %v323
        %v325 = vld [vmem:[#allocation2 + $0x8c] sm:$0x1]
        %v326 = vsel %vm291, 0, %v325
        %327 = vst [vmem:[#allocation2 + $0x8c] sm:$0x1] %v326
        %v328 = vld [vmem:[#allocation2 + $0x98] sm:$0x1]
        %v329 = vsel %vm291, 0, %v328
        %330 = vst [vmem:[#allocation2 + $0x98] sm:$0x1] %v329
        %v331 = vld [vmem:[#allocation2 + $0xa4] sm:$0x1]
        %v332 = vsel %vm291, 0, %v331
        %333 = vst [vmem:[#allocation2 + $0xa4] sm:$0x1] %v332
        %v334 = vld [vmem:[#allocation2 + $0xb0] sm:$0x1]
        %v335 = vsel %vm291, 0, %v334
        %336 = vst [vmem:[#allocation2 + $0xb0] sm:$0x1] %v335
        %v337 = vld [vmem:[#allocation2 + $0xbc] sm:$0x1]
        %v338 = vsel %vm291, 0, %v337
        %339 = vst [vmem:[#allocation2 + $0xbc] sm:$0x1] %v338
        %v340 = vld [vmem:[#allocation2 + $0xc8] sm:$0x1]
        %v341 = vsel %vm291, 0, %v340
        %342 = vst [vmem:[#allocation2 + $0xc8] sm:$0x1] %v341
        %v343 = vld [vmem:[#allocation2 + $0xd4] sm:$0x1]
        %v344 = vsel %vm291, 0, %v343
        %345 = vst [vmem:[#allocation2 + $0xd4] sm:$0x1] %v344
        %v346 = vld [vmem:[%s222] sm:$0xff]
        %v347 = vld [vmem:[%s222 + $0x8] sm:$0xff]
        %v348 = vld [vmem:[%s222 + $0x10] sm:$0xff]
        %v349 = vld [vmem:[%s222 + $0x18] sm:$0xff]
        %v350 = vld [vmem:[%s222 + $0x20] sm:$0xff]
        %v351 = vld [vmem:[%s222 + $0x28] sm:$0xff]
        %v352 = vld [vmem:[%s222 + $0x30] sm:$0xff]
        %v353 = vld [vmem:[%s222 + $0x38] sm:$0xff]
        %v354 = vld [vmem:[%s222 + $0x40] sm:$0xff]
        %v355 = vld [vmem:[%s222 + $0x48] sm:$0xff]
        %v356 = vld [vmem:[%s222 + $0x50] sm:$0xff]
        %v357 = vld [vmem:[%s222 + $0x58] sm:$0xff]
        %v358 = vld [vmem:[%s222 + $0x60] sm:$0xff]
        %v359 = vld [vmem:[%s222 + $0x68] sm:$0xff]
        %v360 = vld [vmem:[%s222 + $0x70] sm:$0xff]
        %v361 = vld [vmem:[%s222 + $0x78] sm:$0xff]
        %v362 = vld [vmem:[%s222 + $0x80] sm:$0xff]
        %v363 = vld [vmem:[%s222 + $0x88] sm:$0xff]
        %v364 = vld [vmem:[%s222 + $0x90] sm:$0xff]
        %v365 = vld [vmem:[%s222 + $0x98] sm:$0xff]
        %v366 = vld [vmem:[%s222 + $0xa0] sm:$0xff]
        %v367 = vld [vmem:[%s222 + $0xa8] sm:$0xff]
        %v368 = vld [vmem:[%s222 + $0xb0] sm:$0xff]
        %v369 = vld [vmem:[%s222 + $0xb8] sm:$0xff]
        %v370 = vld [vmem:[%s222 + $0xc0] sm:$0xff]
        %v371 = vld [vmem:[%s222 + $0xc8] sm:$0xff]
        %v372 = vld [vmem:[%s222 + $0xd0] sm:$0xff]
        %v373 = vld [vmem:[%s222 + $0xd8] sm:$0xff]
        %v374 = vld [vmem:[%s222 + $0xe0] sm:$0xff]
        %v375 = vld [vmem:[%s222 + $0xe8] sm:$0xff]
        %v376 = vld [vmem:[%s222 + $0xf0] sm:$0xff]
        %v377 = vld [vmem:[%s222 + $0xf8] sm:$0xff]
        %v378 = vpack.c.bf16 %v347, %v346
        %v379 = vpack.c.bf16 %v349, %v348
        %v380 = vpack.c.bf16 %v351, %v350
        %v381 = vpack.c.bf16 %v353, %v352
        %v382 = vpack.c.bf16 %v355, %v354
        %v383 = vpack.c.bf16 %v357, %v356
        %v384 = vpack.c.bf16 %v359, %v358
        %v385 = vpack.c.bf16 %v361, %v360
        %v386 = vpack.c.bf16 %v363, %v362
        %v387 = vpack.c.bf16 %v365, %v364
        %v388 = vpack.c.bf16 %v367, %v366
        %v389 = vpack.c.bf16 %v369, %v368
        %v390 = vpack.c.bf16 %v371, %v370
        %v391 = vpack.c.bf16 %v373, %v372
        %v392 = vpack.c.bf16 %v375, %v374
        %v393 = vpack.c.bf16 %v377, %v376
        %v410 = vunpack.c.l.b16 %v378
        %v411 = vunpack.c.h.b16 %v378
        %v412 = vunpack.c.l.b16 %v379
        %v413 = vunpack.c.h.b16 %v379
        %v414 = vunpack.c.l.b16 %v380
        %v415 = vunpack.c.h.b16 %v380
        %v416 = vunpack.c.l.b16 %v381
        %v417 = vunpack.c.h.b16 %v381
        %v418 = vunpack.c.l.b16 %v382
        %v419 = vunpack.c.h.b16 %v382
        %v420 = vunpack.c.l.b16 %v383
        %v421 = vunpack.c.h.b16 %v383
        %v422 = vunpack.c.l.b16 %v384
        %v423 = vunpack.c.h.b16 %v384
        %v424 = vunpack.c.l.b16 %v385
        %v425 = vunpack.c.h.b16 %v385
        %v426 = vunpack.c.l.b16 %v386
        %v427 = vunpack.c.h.b16 %v386
        %v428 = vunpack.c.l.b16 %v387
        %v429 = vunpack.c.h.b16 %v387
        %v430 = vunpack.c.l.b16 %v388
        %v431 = vunpack.c.h.b16 %v388
        %v432 = vunpack.c.l.b16 %v389
        %v433 = vunpack.c.h.b16 %v389
        %v434 = vunpack.c.l.b16 %v390
        %v435 = vunpack.c.h.b16 %v390
        %v436 = vunpack.c.l.b16 %v391
        %v437 = vunpack.c.h.b16 %v391
        %v438 = vunpack.c.l.b16 %v392
        %v439 = vunpack.c.h.b16 %v392
        %v440 = vunpack.c.l.b16 %v393
        %v441 = vunpack.c.h.b16 %v393
        %v442 = vpack.c.b16 %v410, %v410
        %v443 = vpack.c.b16 %v411, %v411
        %v444 = vpack.c.b16 %v412, %v412
        %v445 = vpack.c.b16 %v413, %v413
        %v446 = vpack.c.b16 %v414, %v414
        %v447 = vpack.c.b16 %v415, %v415
        %v448 = vpack.c.b16 %v416, %v416
        %v449 = vpack.c.b16 %v417, %v417
        %v450 = vpack.c.b16 %v418, %v418
        %v451 = vpack.c.b16 %v419, %v419
        %v452 = vpack.c.b16 %v420, %v420
        %v453 = vpack.c.b16 %v421, %v421
        %v454 = vpack.c.b16 %v422, %v422
        %v455 = vpack.c.b16 %v423, %v423
        %v456 = vpack.c.b16 %v424, %v424
        %v457 = vpack.c.b16 %v425, %v425
        %v458 = vpack.c.b16 %v426, %v426
        %v459 = vpack.c.b16 %v427, %v427
        %v460 = vpack.c.b16 %v428, %v428
        %v461 = vpack.c.b16 %v429, %v429
        %v462 = vpack.c.b16 %v430, %v430
        %v463 = vpack.c.b16 %v431, %v431
        %v464 = vpack.c.b16 %v432, %v432
        %v465 = vpack.c.b16 %v433, %v433
        %v466 = vpack.c.b16 %v434, %v434
        %v467 = vpack.c.b16 %v435, %v435
        %v468 = vpack.c.b16 %v436, %v436
        %v469 = vpack.c.b16 %v437, %v437
        %v470 = vpack.c.b16 %v438, %v438
        %v471 = vpack.c.b16 %v439, %v439
        %v472 = vpack.c.b16 %v440, %v440
        %v473 = vpack.c.b16 %v441, %v441
        %vm474 = vsmask.f32 4368
        %vm475 = vmor %vm234, %vm474
        %v477 = vshrl.u32 %v442, 16
        %v479 = vrot.slane %v477, 7
        %v480 = vshll.u32 %v442, 16
        %v482 = vor.u32 %v479, %v480
        %v483 = vrot.slane %v479, 4
        %v485 = vshrl.u32 %v443, 16
        %v487 = vrot.slane %v485, 7
        %v488 = vshll.u32 %v443, 16
        %v490 = vor.u32 %v487, %v488
        %v491 = vsel %vm475, %v483, %v490
        %v492 = vrot.slane %v487, 4
        %v494 = vshrl.u32 %v444, 16
        %v496 = vrot.slane %v494, 7
        %v497 = vshll.u32 %v444, 16
        %v499 = vor.u32 %v496, %v497
        %v500 = vrot.slane %v496, 4
        %v502 = vshrl.u32 %v445, 16
        %v504 = vrot.slane %v502, 7
        %v505 = vshll.u32 %v445, 16
        %v507 = vor.u32 %v504, %v505
        %v508 = vsel %vm475, %v500, %v507
        %v509 = vrot.slane %v504, 4
        %v511 = vshrl.u32 %v446, 16
        %v513 = vrot.slane %v511, 7
        %v514 = vshll.u32 %v446, 16
        %v516 = vor.u32 %v513, %v514
        %v517 = vrot.slane %v513, 4
        %v519 = vshrl.u32 %v447, 16
        %v521 = vrot.slane %v519, 7
        %v522 = vshll.u32 %v447, 16
        %v524 = vor.u32 %v521, %v522
        %v525 = vsel %vm475, %v517, %v524
        %v526 = vrot.slane %v521, 4
        %v528 = vshrl.u32 %v448, 16
        %v530 = vrot.slane %v528, 7
        %v531 = vshll.u32 %v448, 16
        %v533 = vor.u32 %v530, %v531
        %v534 = vrot.slane %v530, 4
        %v536 = vshrl.u32 %v449, 16
        %v538 = vrot.slane %v536, 7
        %v539 = vshll.u32 %v449, 16
        %v541 = vor.u32 %v538, %v539
        %v542 = vsel %vm475, %v534, %v541
        %v543 = vrot.slane %v538, 4
        %v545 = vshrl.u32 %v450, 16
        %v547 = vrot.slane %v545, 7
        %v548 = vshll.u32 %v450, 16
        %v550 = vor.u32 %v547, %v548
        %v551 = vrot.slane %v547, 4
        %v553 = vshrl.u32 %v451, 16
        %v555 = vrot.slane %v553, 7
        %v556 = vshll.u32 %v451, 16
        %v558 = vor.u32 %v555, %v556
        %v559 = vsel %vm475, %v551, %v558
        %v560 = vrot.slane %v555, 4
        %v562 = vshrl.u32 %v452, 16
        %v564 = vrot.slane %v562, 7
        %v565 = vshll.u32 %v452, 16
        %v567 = vor.u32 %v564, %v565
        %v568 = vrot.slane %v564, 4
        %v570 = vshrl.u32 %v453, 16
        %v572 = vrot.slane %v570, 7
        %v573 = vshll.u32 %v453, 16
        %v575 = vor.u32 %v572, %v573
        %v576 = vsel %vm475, %v568, %v575
        %v577 = vrot.slane %v572, 4
        %v579 = vshrl.u32 %v454, 16
        %v581 = vrot.slane %v579, 7
        %v582 = vshll.u32 %v454, 16
        %v584 = vor.u32 %v581, %v582
        %v585 = vrot.slane %v581, 4
        %v587 = vshrl.u32 %v455, 16
        %v589 = vrot.slane %v587, 7
        %v590 = vshll.u32 %v455, 16
        %v592 = vor.u32 %v589, %v590
        %v593 = vsel %vm475, %v585, %v592
        %v594 = vrot.slane %v589, 4
        %v596 = vshrl.u32 %v456, 16
        %v598 = vrot.slane %v596, 7
        %v599 = vshll.u32 %v456, 16
        %v601 = vor.u32 %v598, %v599
        %v602 = vrot.slane %v598, 4
        %v604 = vshrl.u32 %v457, 16
        %v606 = vrot.slane %v604, 7
        %v607 = vshll.u32 %v457, 16
        %v609 = vor.u32 %v606, %v607
        %v610 = vsel %vm475, %v602, %v609
        %v611 = vrot.slane %v606, 4
        %v613 = vshrl.u32 %v458, 16
        %v615 = vrot.slane %v613, 7
        %v616 = vshll.u32 %v458, 16
        %v618 = vor.u32 %v615, %v616
        %v619 = vrot.slane %v615, 4
        %v621 = vshrl.u32 %v459, 16
        %v623 = vrot.slane %v621, 7
        %v624 = vshll.u32 %v459, 16
        %v626 = vor.u32 %v623, %v624
        %v627 = vsel %vm475, %v619, %v626
        %v628 = vrot.slane %v623, 4
        %v630 = vshrl.u32 %v460, 16
        %v632 = vrot.slane %v630, 7
        %v633 = vshll.u32 %v460, 16
        %v635 = vor.u32 %v632, %v633
        %v636 = vrot.slane %v632, 4
        %v638 = vshrl.u32 %v461, 16
        %v640 = vrot.slane %v638, 7
        %v641 = vshll.u32 %v461, 16
        %v643 = vor.u32 %v640, %v641
        %v644 = vsel %vm475, %v636, %v643
        %v645 = vrot.slane %v640, 4
        %v647 = vshrl.u32 %v462, 16
        %v649 = vrot.slane %v647, 7
        %v650 = vshll.u32 %v462, 16
        %v652 = vor.u32 %v649, %v650
        %v653 = vrot.slane %v649, 4
        %v655 = vshrl.u32 %v463, 16
        %v657 = vrot.slane %v655, 7
        %v658 = vshll.u32 %v463, 16
        %v660 = vor.u32 %v657, %v658
        %v661 = vsel %vm475, %v653, %v660
        %v662 = vrot.slane %v657, 4
        %v664 = vshrl.u32 %v464, 16
        %v666 = vrot.slane %v664, 7
        %v667 = vshll.u32 %v464, 16
        %v669 = vor.u32 %v666, %v667
        %v670 = vrot.slane %v666, 4
        %v672 = vshrl.u32 %v465, 16
        %v674 = vrot.slane %v672, 7
        %v675 = vshll.u32 %v465, 16
        %v677 = vor.u32 %v674, %v675
        %v678 = vsel %vm475, %v670, %v677
        %v679 = vrot.slane %v674, 4
        %v681 = vshrl.u32 %v466, 16
        %v683 = vrot.slane %v681, 7
        %v684 = vshll.u32 %v466, 16
        %v686 = vor.u32 %v683, %v684
        %v687 = vrot.slane %v683, 4
        %v689 = vshrl.u32 %v467, 16
        %v691 = vrot.slane %v689, 7
        %v692 = vshll.u32 %v467, 16
        %v694 = vor.u32 %v691, %v692
        %v695 = vsel %vm475, %v687, %v694
        %v696 = vrot.slane %v691, 4
        %v698 = vshrl.u32 %v468, 16
        %v700 = vrot.slane %v698, 7
        %v701 = vshll.u32 %v468, 16
        %v703 = vor.u32 %v700, %v701
        %v704 = vrot.slane %v700, 4
        %v706 = vshrl.u32 %v469, 16
        %v708 = vrot.slane %v706, 7
        %v709 = vshll.u32 %v469, 16
        %v711 = vor.u32 %v708, %v709
        %v712 = vsel %vm475, %v704, %v711
        %v713 = vrot.slane %v708, 4
        %v715 = vshrl.u32 %v470, 16
        %v717 = vrot.slane %v715, 7
        %v718 = vshll.u32 %v470, 16
        %v720 = vor.u32 %v717, %v718
        %v721 = vrot.slane %v717, 4
        %v723 = vshrl.u32 %v471, 16
        %v725 = vrot.slane %v723, 7
        %v726 = vshll.u32 %v471, 16
        %v728 = vor.u32 %v725, %v726
        %v729 = vsel %vm475, %v721, %v728
        %v730 = vrot.slane %v725, 4
        %v732 = vshrl.u32 %v472, 16
        %v734 = vrot.slane %v732, 7
        %v735 = vshll.u32 %v472, 16
        %v737 = vor.u32 %v734, %v735
        %v738 = vrot.slane %v734, 4
        %v740 = vshrl.u32 %v473, 16
        %v742 = vrot.slane %v740, 7
        %v743 = vshll.u32 %v473, 16
        %v745 = vor.u32 %v742, %v743
        %v746 = vsel %vm475, %v738, %v745
        %v747 = vrot.slane %v742, 4
        %s796 = scalar_lea.vmem [#allocation2], 12
        %vm797 = vcmask 27648
        %vm798 = vmand %vm797, %vm290
        %v799 = vld [vmem:[%s796] sm:$0xf]
        %v800 = vsel %vm798, %v482, %v799
        %801 = vst [vmem:[%s796] sm:$0xf] %v800
        %802 = vst.msk [vmem:[%s796 + $0x4] sm:$0xf] %vm224, %v491
        %v803 = vld [vmem:[%s796 + $0x8] sm:$0x1]
        %v804 = vsel %vm235, %v492, %v803
        %805 = vst [vmem:[%s796 + $0x8] sm:$0x1] %v804
        %v806 = vld [vmem:[%s796 + $0xc] sm:$0xf]
        %v807 = vsel %vm798, %v499, %v806
        %808 = vst [vmem:[%s796 + $0xc] sm:$0xf] %v807
        %809 = vst.msk [vmem:[%s796 + $0x10] sm:$0xf] %vm224, %v508
        %v810 = vld [vmem:[%s796 + $0x14] sm:$0x1]
        %v811 = vsel %vm235, %v509, %v810
        %812 = vst [vmem:[%s796 + $0x14] sm:$0x1] %v811
        %v813 = vld [vmem:[%s796 + $0x18] sm:$0xf]
        %v814 = vsel %vm798, %v516, %v813
        %815 = vst [vmem:[%s796 + $0x18] sm:$0xf] %v814
        %816 = vst.msk [vmem:[%s796 + $0x1c] sm:$0xf] %vm224, %v525
        %v817 = vld [vmem:[%s796 + $0x20] sm:$0x1]
        %v818 = vsel %vm235, %v526, %v817
        %819 = vst [vmem:[%s796 + $0x20] sm:$0x1] %v818
        %v820 = vld [vmem:[%s796 + $0x24] sm:$0xf]
        %v821 = vsel %vm798, %v533, %v820
        %822 = vst [vmem:[%s796 + $0x24] sm:$0xf] %v821
        %823 = vst.msk [vmem:[%s796 + $0x28] sm:$0xf] %vm224, %v542
        %v824 = vld [vmem:[%s796 + $0x2c] sm:$0x1]
        %v825 = vsel %vm235, %v543, %v824
        %826 = vst [vmem:[%s796 + $0x2c] sm:$0x1] %v825
        %v827 = vld [vmem:[%s796 + $0x30] sm:$0xf]
        %v828 = vsel %vm798, %v550, %v827
        %829 = vst [vmem:[%s796 + $0x30] sm:$0xf] %v828
        %830 = vst.msk [vmem:[%s796 + $0x34] sm:$0xf] %vm224, %v559
        %v831 = vld [vmem:[%s796 + $0x38] sm:$0x1]
        %v832 = vsel %vm235, %v560, %v831
        %833 = vst [vmem:[%s796 + $0x38] sm:$0x1] %v832
        %v834 = vld [vmem:[%s796 + $0x3c] sm:$0xf]
        %v835 = vsel %vm798, %v567, %v834
        %836 = vst [vmem:[%s796 + $0x3c] sm:$0xf] %v835
        %837 = vst.msk [vmem:[%s796 + $0x40] sm:$0xf] %vm224, %v576
        %v838 = vld [vmem:[%s796 + $0x44] sm:$0x1]
        %v839 = vsel %vm235, %v577, %v838
        %840 = vst [vmem:[%s796 + $0x44] sm:$0x1] %v839
        %v841 = vld [vmem:[%s796 + $0x48] sm:$0xf]
        %v842 = vsel %vm798, %v584, %v841
        %843 = vst [vmem:[%s796 + $0x48] sm:$0xf] %v842
        %844 = vst.msk [vmem:[%s796 + $0x4c] sm:$0xf] %vm224, %v593
        %v845 = vld [vmem:[%s796 + $0x50] sm:$0x1]
        %v846 = vsel %vm235, %v594, %v845
        %847 = vst [vmem:[%s796 + $0x50] sm:$0x1] %v846
        %v848 = vld [vmem:[%s796 + $0x54] sm:$0xf]
        %v849 = vsel %vm798, %v601, %v848
        %850 = vst [vmem:[%s796 + $0x54] sm:$0xf] %v849
        %851 = vst.msk [vmem:[%s796 + $0x58] sm:$0xf] %vm224, %v610
        %v852 = vld [vmem:[%s796 + $0x5c] sm:$0x1]
        %v853 = vsel %vm235, %v611, %v852
        %854 = vst [vmem:[%s796 + $0x5c] sm:$0x1] %v853
        %v855 = vld [vmem:[%s796 + $0x60] sm:$0xf]
        %v856 = vsel %vm798, %v618, %v855
        %857 = vst [vmem:[%s796 + $0x60] sm:$0xf] %v856
        %858 = vst.msk [vmem:[%s796 + $0x64] sm:$0xf] %vm224, %v627
        %v859 = vld [vmem:[%s796 + $0x68] sm:$0x1]
        %v860 = vsel %vm235, %v628, %v859
        %861 = vst [vmem:[%s796 + $0x68] sm:$0x1] %v860
        %v862 = vld [vmem:[%s796 + $0x6c] sm:$0xf]
        %v863 = vsel %vm798, %v635, %v862
        %864 = vst [vmem:[%s796 + $0x6c] sm:$0xf] %v863
        %865 = vst.msk [vmem:[%s796 + $0x70] sm:$0xf] %vm224, %v644
        %v866 = vld [vmem:[%s796 + $0x74] sm:$0x1]
        %v867 = vsel %vm235, %v645, %v866
        %868 = vst [vmem:[%s796 + $0x74] sm:$0x1] %v867
        %v869 = vld [vmem:[%s796 + $0x78] sm:$0xf]
        %v870 = vsel %vm798, %v652, %v869
        %871 = vst [vmem:[%s796 + $0x78] sm:$0xf] %v870
        %872 = vst.msk [vmem:[%s796 + $0x7c] sm:$0xf] %vm224, %v661
        %v873 = vld [vmem:[%s796 + $0x80] sm:$0x1]
        %v874 = vsel %vm235, %v662, %v873
        %875 = vst [vmem:[%s796 + $0x80] sm:$0x1] %v874
        %v876 = vld [vmem:[%s796 + $0x84] sm:$0xf]
        %v877 = vsel %vm798, %v669, %v876
        %878 = vst [vmem:[%s796 + $0x84] sm:$0xf] %v877
        %879 = vst.msk [vmem:[%s796 + $0x88] sm:$0xf] %vm224, %v678
        %v880 = vld [vmem:[%s796 + $0x8c] sm:$0x1]
        %v881 = vsel %vm235, %v679, %v880
        %882 = vst [vmem:[%s796 + $0x8c] sm:$0x1] %v881
        %v883 = vld [vmem:[%s796 + $0x90] sm:$0xf]
        %v884 = vsel %vm798, %v686, %v883
        %885 = vst [vmem:[%s796 + $0x90] sm:$0xf] %v884
        %886 = vst.msk [vmem:[%s796 + $0x94] sm:$0xf] %vm224, %v695
        %v887 = vld [vmem:[%s796 + $0x98] sm:$0x1]
        %v888 = vsel %vm235, %v696, %v887
        %889 = vst [vmem:[%s796 + $0x98] sm:$0x1] %v888
        %v890 = vld [vmem:[%s796 + $0x9c] sm:$0xf]
        %v891 = vsel %vm798, %v703, %v890
        %892 = vst [vmem:[%s796 + $0x9c] sm:$0xf] %v891
        %893 = vst.msk [vmem:[%s796 + $0xa0] sm:$0xf] %vm224, %v712
        %v894 = vld [vmem:[%s796 + $0xa4] sm:$0x1]
        %v895 = vsel %vm235, %v713, %v894
        %896 = vst [vmem:[%s796 + $0xa4] sm:$0x1] %v895
        %v897 = vld [vmem:[%s796 + $0xa8] sm:$0xf]
        %v898 = vsel %vm798, %v720, %v897
        %899 = vst [vmem:[%s796 + $0xa8] sm:$0xf] %v898
        %900 = vst.msk [vmem:[%s796 + $0xac] sm:$0xf] %vm224, %v729
        %v901 = vld [vmem:[%s796 + $0xb0] sm:$0x1]
        %v902 = vsel %vm235, %v730, %v901
        %903 = vst [vmem:[%s796 + $0xb0] sm:$0x1] %v902
        %v904 = vld [vmem:[%s796 + $0xb4] sm:$0xf]
        %v905 = vsel %vm798, %v737, %v904
        %906 = vst [vmem:[%s796 + $0xb4] sm:$0xf] %v905
        %907 = vst.msk [vmem:[%s796 + $0xb8] sm:$0xf] %vm224, %v746
        %v908 = vld [vmem:[%s796 + $0xbc] sm:$0x1]
        %v909 = vsel %vm235, %v747, %v908
        %910 = vst [vmem:[%s796 + $0xbc] sm:$0x1] %v909
        %v911 = vld [vmem:[#allocation2] sm:$0xf]
        %v912 = vld [vmem:[#allocation2 + $0x4] sm:$0xf]
        %v913 = vld [vmem:[#allocation2 + $0x8] sm:$0x1]
        %v914 = vld [vmem:[#allocation2 + $0xc] sm:$0xf]
        %v915 = vld [vmem:[#allocation2 + $0x10] sm:$0xf]
        %v916 = vld [vmem:[#allocation2 + $0x14] sm:$0x1]
        %v917 = vld [vmem:[#allocation2 + $0x18] sm:$0xf]
        %v918 = vld [vmem:[#allocation2 + $0x1c] sm:$0xf]
        %v919 = vld [vmem:[#allocation2 + $0x20] sm:$0x1]
        %v920 = vld [vmem:[#allocation2 + $0x24] sm:$0xf]
        %v921 = vld [vmem:[#allocation2 + $0x28] sm:$0xf]
        %v922 = vld [vmem:[#allocation2 + $0x2c] sm:$0x1]
        %v923 = vld [vmem:[#allocation2 + $0x30] sm:$0xf]
        %v924 = vld [vmem:[#allocation2 + $0x34] sm:$0xf]
        %v925 = vld [vmem:[#allocation2 + $0x38] sm:$0x1]
        %v926 = vld [vmem:[#allocation2 + $0x3c] sm:$0xf]
        %v927 = vld [vmem:[#allocation2 + $0x40] sm:$0xf]
        %v928 = vld [vmem:[#allocation2 + $0x44] sm:$0x1]
        %v929 = vld [vmem:[#allocation2 + $0x48] sm:$0xf]
        %v930 = vld [vmem:[#allocation2 + $0x4c] sm:$0xf]
        %v931 = vld [vmem:[#allocation2 + $0x50] sm:$0x1]
        %v932 = vld [vmem:[#allocation2 + $0x54] sm:$0xf]
        %v933 = vld [vmem:[#allocation2 + $0x58] sm:$0xf]
        %v934 = vld [vmem:[#allocation2 + $0x5c] sm:$0x1]
        %v935 = vld [vmem:[#allocation2 + $0x60] sm:$0xf]
        %v936 = vld [vmem:[#allocation2 + $0x64] sm:$0xf]
        %v937 = vld [vmem:[#allocation2 + $0x68] sm:$0x1]
        %v938 = vld [vmem:[#allocation2 + $0x6c] sm:$0xf]
        %v939 = vld [vmem:[#allocation2 + $0x70] sm:$0xf]
        %v940 = vld [vmem:[#allocation2 + $0x74] sm:$0x1]
        %v941 = vld [vmem:[#allocation2 + $0x78] sm:$0xf]
        %v942 = vld [vmem:[#allocation2 + $0x7c] sm:$0xf]
        %v943 = vld [vmem:[#allocation2 + $0x80] sm:$0x1]
        %v944 = vld [vmem:[#allocation2 + $0x84] sm:$0xf]
        %v945 = vld [vmem:[#allocation2 + $0x88] sm:$0xf]
        %v946 = vld [vmem:[#allocation2 + $0x8c] sm:$0x1]
        %v947 = vld [vmem:[#allocation2 + $0x90] sm:$0xf]
        %v948 = vld [vmem:[#allocation2 + $0x94] sm:$0xf]
        %v949 = vld [vmem:[#allocation2 + $0x98] sm:$0x1]
        %v950 = vld [vmem:[#allocation2 + $0x9c] sm:$0xf]
        %v951 = vld [vmem:[#allocation2 + $0xa0] sm:$0xf]
        %v952 = vld [vmem:[#allocation2 + $0xa4] sm:$0x1]
        %v953 = vld [vmem:[#allocation2 + $0xa8] sm:$0xf]
        %v954 = vld [vmem:[#allocation2 + $0xac] sm:$0xf]
        %v955 = vld [vmem:[#allocation2 + $0xb0] sm:$0x1]
        %v956 = vld [vmem:[#allocation2 + $0xb4] sm:$0xf]
        %v957 = vld [vmem:[#allocation2 + $0xb8] sm:$0xf]
        %v958 = vld [vmem:[#allocation2 + $0xbc] sm:$0x1]
        %v959 = vld [vmem:[#allocation2 + $0xc0] sm:$0xf]
        %v960 = vld [vmem:[#allocation2 + $0xc4] sm:$0xf]
        %v961 = vld [vmem:[#allocation2 + $0xc8] sm:$0x1]
        %v962 = vld [vmem:[#allocation2 + $0xcc] sm:$0xf]
        %v963 = vld [vmem:[#allocation2 + $0xd0] sm:$0xf]
        %v964 = vld [vmem:[#allocation2 + $0xd4] sm:$0x1]
        %v997 = vunpack.c.l.b16 %v911
        %v998 = vunpack.c.l.b16 %v912
        %v999 = vunpack.c.l.b16 %v914
        %v1000 = vunpack.c.l.b16 %v915
        %v1001 = vunpack.c.l.b16 %v917
        %v1002 = vunpack.c.l.b16 %v918
        %v1003 = vunpack.c.l.b16 %v920
        %v1004 = vunpack.c.l.b16 %v921
        %v1005 = vunpack.c.l.b16 %v923
        %v1006 = vunpack.c.l.b16 %v924
        %v1007 = vunpack.c.l.b16 %v926
        %v1008 = vunpack.c.l.b16 %v927
        %v1009 = vunpack.c.l.b16 %v929
        %v1010 = vunpack.c.l.b16 %v930
        %v1011 = vunpack.c.l.b16 %v932
        %v1012 = vunpack.c.l.b16 %v933
        %v1013 = vunpack.c.l.b16 %v935
        %v1014 = vunpack.c.l.b16 %v936
        %v1015 = vunpack.c.l.b16 %v938
        %v1016 = vunpack.c.l.b16 %v939
        %v1017 = vunpack.c.l.b16 %v941
        %v1018 = vunpack.c.l.b16 %v942
        %v1019 = vunpack.c.l.b16 %v944
        %v1020 = vunpack.c.l.b16 %v945
        %v1021 = vunpack.c.l.b16 %v947
        %v1022 = vunpack.c.l.b16 %v948
        %v1023 = vunpack.c.l.b16 %v950
        %v1024 = vunpack.c.l.b16 %v951
        %v1025 = vunpack.c.l.b16 %v953
        %v1026 = vunpack.c.l.b16 %v954
        %v1027 = vunpack.c.l.b16 %v956
        %v1028 = vunpack.c.l.b16 %v957
        %v1029 = vpack.c.b16 %v998, %v997
        %v1030 = vpack.c.b16 %v1000, %v999
        %v1031 = vpack.c.b16 %v1002, %v1001
        %v1032 = vpack.c.b16 %v1004, %v1003
        %v1033 = vpack.c.b16 %v1006, %v1005
        %v1034 = vpack.c.b16 %v1008, %v1007
        %v1035 = vpack.c.b16 %v1010, %v1009
        %v1036 = vpack.c.b16 %v1012, %v1011
        %v1037 = vpack.c.b16 %v1014, %v1013
        %v1038 = vpack.c.b16 %v1016, %v1015
        %v1039 = vpack.c.b16 %v1018, %v1017
        %v1040 = vpack.c.b16 %v1020, %v1019
        %v1041 = vpack.c.b16 %v1022, %v1021
        %v1042 = vpack.c.b16 %v1024, %v1023
        %v1043 = vpack.c.b16 %v1026, %v1025
        %v1044 = vpack.c.b16 %v1028, %v1027
        %vm1061 = vcmask 31744
        %1062 = vst.msk [vmem:[#allocation3] sm:$0xff] %vm1061, %v1029
        %1063 = vst.msk [vmem:[#allocation3 + $0x8] sm:$0xff] %vm1061, %v1030
        %1064 = vst.msk [vmem:[#allocation3 + $0x10] sm:$0xff] %vm1061, %v1031
        %1065 = vst.msk [vmem:[#allocation3 + $0x18] sm:$0xff] %vm1061, %v1032
        %1066 = vst.msk [vmem:[#allocation3 + $0x20] sm:$0xff] %vm1061, %v1033
        %1067 = vst.msk [vmem:[#allocation3 + $0x28] sm:$0xff] %vm1061, %v1034
        %1068 = vst.msk [vmem:[#allocation3 + $0x30] sm:$0xff] %vm1061, %v1035
        %1069 = vst.msk [vmem:[#allocation3 + $0x38] sm:$0xff] %vm1061, %v1036
        %1070 = vst.msk [vmem:[#allocation3 + $0x40] sm:$0xff] %vm1061, %v1037
        %1071 = vst.msk [vmem:[#allocation3 + $0x48] sm:$0xff] %vm1061, %v1038
        %1072 = vst.msk [vmem:[#allocation3 + $0x50] sm:$0xff] %vm1061, %v1039
        %1073 = vst.msk [vmem:[#allocation3 + $0x58] sm:$0xff] %vm1061, %v1040
        %1074 = vst.msk [vmem:[#allocation3 + $0x60] sm:$0xff] %vm1061, %v1041
        %1075 = vst.msk [vmem:[#allocation3 + $0x68] sm:$0xff] %vm1061, %v1042
        %1076 = vst.msk [vmem:[#allocation3 + $0x70] sm:$0xff] %vm1061, %v1043
        %1077 = vst.msk [vmem:[#allocation3 + $0x78] sm:$0xff] %vm1061, %v1044
        %vm1078 = vsmask.f32 3328
        %vm1079 = vsmask.f32 7440
        %vm1080 = vmor %vm1078, %vm1079
        %v1082 = vshrl.u32 %v911, 16
        %v1084 = vrot.slane %v1082, 4
        %v1085 = vshll.u32 %v911, 16
        %v1087 = vrot.slane %v1085, 5
        %v1088 = vor.u32 %v1084, %v1087
        %v1089 = vrot.slane %v1088, 4
        %v1091 = vshll.u32 %v912, 16
        %v1093 = vrot.slane %v1091, 5
        %v1094 = vsel %vm1080, %v1089, %v1093
        %v1095 = vshrl.u32 %v912, 16
        %v1097 = vrot.slane %v1095, 4
        %v1098 = vor.u32 %v1097, %v1093
        %v1099 = vrot.slane %v1098, 4
        %v1101 = vshll.u32 %v913, 16
        %v1103 = vrot.slane %v1101, 5
        %v1104 = vsel %vm1080, %v1099, %v1103
        %v1106 = vshrl.u32 %v914, 16
        %v1108 = vrot.slane %v1106, 4
        %v1109 = vshll.u32 %v914, 16
        %v1111 = vrot.slane %v1109, 5
        %v1112 = vor.u32 %v1108, %v1111
        %v1113 = vrot.slane %v1112, 4
        %v1115 = vshll.u32 %v915, 16
        %v1117 = vrot.slane %v1115, 5
        %v1118 = vsel %vm1080, %v1113, %v1117
        %v1119 = vshrl.u32 %v915, 16
        %v1121 = vrot.slane %v1119, 4
        %v1122 = vor.u32 %v1121, %v1117
        %v1123 = vrot.slane %v1122, 4
        %v1125 = vshll.u32 %v916, 16
        %v1127 = vrot.slane %v1125, 5
        %v1128 = vsel %vm1080, %v1123, %v1127
        %v1130 = vshrl.u32 %v917, 16
        %v1132 = vrot.slane %v1130, 4
        %v1133 = vshll.u32 %v917, 16
        %v1135 = vrot.slane %v1133, 5
        %v1136 = vor.u32 %v1132, %v1135
        %v1137 = vrot.slane %v1136, 4
        %v1139 = vshll.u32 %v918, 16
        %v1141 = vrot.slane %v1139, 5
        %v1142 = vsel %vm1080, %v1137, %v1141
        %v1143 = vshrl.u32 %v918, 16
        %v1145 = vrot.slane %v1143, 4
        %v1146 = vor.u32 %v1145, %v1141
        %v1147 = vrot.slane %v1146, 4
        %v1149 = vshll.u32 %v919, 16
        %v1151 = vrot.slane %v1149, 5
        %v1152 = vsel %vm1080, %v1147, %v1151
        %v1154 = vshrl.u32 %v920, 16
        %v1156 = vrot.slane %v1154, 4
        %v1157 = vshll.u32 %v920, 16
        %v1159 = vrot.slane %v1157, 5
        %v1160 = vor.u32 %v1156, %v1159
        %v1161 = vrot.slane %v1160, 4
        %v1163 = vshll.u32 %v921, 16
        %v1165 = vrot.slane %v1163, 5
        %v1166 = vsel %vm1080, %v1161, %v1165
        %v1167 = vshrl.u32 %v921, 16
        %v1169 = vrot.slane %v1167, 4
        %v1170 = vor.u32 %v1169, %v1165
        %v1171 = vrot.slane %v1170, 4
        %v1173 = vshll.u32 %v922, 16
        %v1175 = vrot.slane %v1173, 5
        %v1176 = vsel %vm1080, %v1171, %v1175
        %v1178 = vshrl.u32 %v923, 16
        %v1180 = vrot.slane %v1178, 4
        %v1181 = vshll.u32 %v923, 16
        %v1183 = vrot.slane %v1181, 5
        %v1184 = vor.u32 %v1180, %v1183
        %v1185 = vrot.slane %v1184, 4
        %v1187 = vshll.u32 %v924, 16
        %v1189 = vrot.slane %v1187, 5
        %v1190 = vsel %vm1080, %v1185, %v1189
        %v1191 = vshrl.u32 %v924, 16
        %v1193 = vrot.slane %v1191, 4
        %v1194 = vor.u32 %v1193, %v1189
        %v1195 = vrot.slane %v1194, 4
        %v1197 = vshll.u32 %v925, 16
        %v1199 = vrot.slane %v1197, 5
        %v1200 = vsel %vm1080, %v1195, %v1199
        %v1202 = vshrl.u32 %v926, 16
        %v1204 = vrot.slane %v1202, 4
        %v1205 = vshll.u32 %v926, 16
        %v1207 = vrot.slane %v1205, 5
        %v1208 = vor.u32 %v1204, %v1207
        %v1209 = vrot.slane %v1208, 4
        %v1211 = vshll.u32 %v927, 16
        %v1213 = vrot.slane %v1211, 5
        %v1214 = vsel %vm1080, %v1209, %v1213
        %v1215 = vshrl.u32 %v927, 16
        %v1217 = vrot.slane %v1215, 4
        %v1218 = vor.u32 %v1217, %v1213
        %v1219 = vrot.slane %v1218, 4
        %v1221 = vshll.u32 %v928, 16
        %v1223 = vrot.slane %v1221, 5
        %v1224 = vsel %vm1080, %v1219, %v1223
        %v1226 = vshrl.u32 %v929, 16
        %v1228 = vrot.slane %v1226, 4
        %v1229 = vshll.u32 %v929, 16
        %v1231 = vrot.slane %v1229, 5
        %v1232 = vor.u32 %v1228, %v1231
        %v1233 = vrot.slane %v1232, 4
        %v1235 = vshll.u32 %v930, 16
        %v1237 = vrot.slane %v1235, 5
        %v1238 = vsel %vm1080, %v1233, %v1237
        %v1239 = vshrl.u32 %v930, 16
        %v1241 = vrot.slane %v1239, 4
        %v1242 = vor.u32 %v1241, %v1237
        %v1243 = vrot.slane %v1242, 4
        %v1245 = vshll.u32 %v931, 16
        %v1247 = vrot.slane %v1245, 5
        %v1248 = vsel %vm1080, %v1243, %v1247
        %v1250 = vshrl.u32 %v932, 16
        %v1252 = vrot.slane %v1250, 4
        %v1253 = vshll.u32 %v932, 16
        %v1255 = vrot.slane %v1253, 5
        %v1256 = vor.u32 %v1252, %v1255
        %v1257 = vrot.slane %v1256, 4
        %v1259 = vshll.u32 %v933, 16
        %v1261 = vrot.slane %v1259, 5
        %v1262 = vsel %vm1080, %v1257, %v1261
        %v1263 = vshrl.u32 %v933, 16
        %v1265 = vrot.slane %v1263, 4
        %v1266 = vor.u32 %v1265, %v1261
        %v1267 = vrot.slane %v1266, 4
        %v1269 = vshll.u32 %v934, 16
        %v1271 = vrot.slane %v1269, 5
        %v1272 = vsel %vm1080, %v1267, %v1271
        %v1274 = vshrl.u32 %v935, 16
        %v1276 = vrot.slane %v1274, 4
        %v1277 = vshll.u32 %v935, 16
        %v1279 = vrot.slane %v1277, 5
        %v1280 = vor.u32 %v1276, %v1279
        %v1281 = vrot.slane %v1280, 4
        %v1283 = vshll.u32 %v936, 16
        %v1285 = vrot.slane %v1283, 5
        %v1286 = vsel %vm1080, %v1281, %v1285
        %v1287 = vshrl.u32 %v936, 16
        %v1289 = vrot.slane %v1287, 4
        %v1290 = vor.u32 %v1289, %v1285
        %v1291 = vrot.slane %v1290, 4
        %v1293 = vshll.u32 %v937, 16
        %v1295 = vrot.slane %v1293, 5
        %v1296 = vsel %vm1080, %v1291, %v1295
        %v1298 = vshrl.u32 %v938, 16
        %v1300 = vrot.slane %v1298, 4
        %v1301 = vshll.u32 %v938, 16
        %v1303 = vrot.slane %v1301, 5
        %v1304 = vor.u32 %v1300, %v1303
        %v1305 = vrot.slane %v1304, 4
        %v1307 = vshll.u32 %v939, 16
        %v1309 = vrot.slane %v1307, 5
        %v1310 = vsel %vm1080, %v1305, %v1309
        %v1311 = vshrl.u32 %v939, 16
        %v1313 = vrot.slane %v1311, 4
        %v1314 = vor.u32 %v1313, %v1309
        %v1315 = vrot.slane %v1314, 4
        %v1317 = vshll.u32 %v940, 16
        %v1319 = vrot.slane %v1317, 5
        %v1320 = vsel %vm1080, %v1315, %v1319
        %v1322 = vshrl.u32 %v941, 16
        %v1324 = vrot.slane %v1322, 4
        %v1325 = vshll.u32 %v941, 16
        %v1327 = vrot.slane %v1325, 5
        %v1328 = vor.u32 %v1324, %v1327
        %v1329 = vrot.slane %v1328, 4
        %v1331 = vshll.u32 %v942, 16
        %v1333 = vrot.slane %v1331, 5
        %v1334 = vsel %vm1080, %v1329, %v1333
        %v1335 = vshrl.u32 %v942, 16
        %v1337 = vrot.slane %v1335, 4
        %v1338 = vor.u32 %v1337, %v1333
        %v1339 = vrot.slane %v1338, 4
        %v1341 = vshll.u32 %v943, 16
        %v1343 = vrot.slane %v1341, 5
        %v1344 = vsel %vm1080, %v1339, %v1343
        %v1346 = vshrl.u32 %v944, 16
        %v1348 = vrot.slane %v1346, 4
        %v1349 = vshll.u32 %v944, 16
        %v1351 = vrot.slane %v1349, 5
        %v1352 = vor.u32 %v1348, %v1351
        %v1353 = vrot.slane %v1352, 4
        %v1355 = vshll.u32 %v945, 16
        %v1357 = vrot.slane %v1355, 5
        %v1358 = vsel %vm1080, %v1353, %v1357
        %v1359 = vshrl.u32 %v945, 16
        %v1361 = vrot.slane %v1359, 4
        %v1362 = vor.u32 %v1361, %v1357
        %v1363 = vrot.slane %v1362, 4
        %v1365 = vshll.u32 %v946, 16
        %v1367 = vrot.slane %v1365, 5
        %v1368 = vsel %vm1080, %v1363, %v1367
        %v1370 = vshrl.u32 %v947, 16
        %v1372 = vrot.slane %v1370, 4
        %v1373 = vshll.u32 %v947, 16
        %v1375 = vrot.slane %v1373, 5
        %v1376 = vor.u32 %v1372, %v1375
        %v1377 = vrot.slane %v1376, 4
        %v1379 = vshll.u32 %v948, 16
        %v1381 = vrot.slane %v1379, 5
        %v1382 = vsel %vm1080, %v1377, %v1381
        %v1383 = vshrl.u32 %v948, 16
        %v1385 = vrot.slane %v1383, 4
        %v1386 = vor.u32 %v1385, %v1381
        %v1387 = vrot.slane %v1386, 4
        %v1389 = vshll.u32 %v949, 16
        %v1391 = vrot.slane %v1389, 5
        %v1392 = vsel %vm1080, %v1387, %v1391
        %v1394 = vshrl.u32 %v950, 16
        %v1396 = vrot.slane %v1394, 4
        %v1397 = vshll.u32 %v950, 16
        %v1399 = vrot.slane %v1397, 5
        %v1400 = vor.u32 %v1396, %v1399
        %v1401 = vrot.slane %v1400, 4
        %v1403 = vshll.u32 %v951, 16
        %v1405 = vrot.slane %v1403, 5
        %v1406 = vsel %vm1080, %v1401, %v1405
        %v1407 = vshrl.u32 %v951, 16
        %v1409 = vrot.slane %v1407, 4
        %v1410 = vor.u32 %v1409, %v1405
        %v1411 = vrot.slane %v1410, 4
        %v1413 = vshll.u32 %v952, 16
        %v1415 = vrot.slane %v1413, 5
        %v1416 = vsel %vm1080, %v1411, %v1415
        %v1418 = vshrl.u32 %v953, 16
        %v1420 = vrot.slane %v1418, 4
        %v1421 = vshll.u32 %v953, 16
        %v1423 = vrot.slane %v1421, 5
        %v1424 = vor.u32 %v1420, %v1423
        %v1425 = vrot.slane %v1424, 4
        %v1427 = vshll.u32 %v954, 16
        %v1429 = vrot.slane %v1427, 5
        %v1430 = vsel %vm1080, %v1425, %v1429
        %v1431 = vshrl.u32 %v954, 16
        %v1433 = vrot.slane %v1431, 4
        %v1434 = vor.u32 %v1433, %v1429
        %v1435 = vrot.slane %v1434, 4
        %v1437 = vshll.u32 %v955, 16
        %v1439 = vrot.slane %v1437, 5
        %v1440 = vsel %vm1080, %v1435, %v1439
        %v1442 = vshrl.u32 %v956, 16
        %v1444 = vrot.slane %v1442, 4
        %v1445 = vshll.u32 %v956, 16
        %v1447 = vrot.slane %v1445, 5
        %v1448 = vor.u32 %v1444, %v1447
        %v1449 = vrot.slane %v1448, 4
        %v1451 = vshll.u32 %v957, 16
        %v1453 = vrot.slane %v1451, 5
        %v1454 = vsel %vm1080, %v1449, %v1453
        %v1455 = vshrl.u32 %v957, 16
        %v1457 = vrot.slane %v1455, 4
        %v1458 = vor.u32 %v1457, %v1453
        %v1459 = vrot.slane %v1458, 4
        %v1461 = vshll.u32 %v958, 16
        %v1463 = vrot.slane %v1461, 5
        %v1464 = vsel %vm1080, %v1459, %v1463
        %v1465 = vunpack.c.l.b16 %v1094
        %v1466 = vunpack.c.l.b16 %v1104
        %v1467 = vunpack.c.l.b16 %v1118
        %v1468 = vunpack.c.l.b16 %v1128
        %v1469 = vunpack.c.l.b16 %v1142
        %v1470 = vunpack.c.l.b16 %v1152
        %v1471 = vunpack.c.l.b16 %v1166
        %v1472 = vunpack.c.l.b16 %v1176
        %v1473 = vunpack.c.l.b16 %v1190
        %v1474 = vunpack.c.l.b16 %v1200
        %v1475 = vunpack.c.l.b16 %v1214
        %v1476 = vunpack.c.l.b16 %v1224
        %v1477 = vunpack.c.l.b16 %v1238
        %v1478 = vunpack.c.l.b16 %v1248
        %v1479 = vunpack.c.l.b16 %v1262
        %v1480 = vunpack.c.l.b16 %v1272
        %v1481 = vunpack.c.l.b16 %v1286
        %v1482 = vunpack.c.l.b16 %v1296
        %v1483 = vunpack.c.l.b16 %v1310
        %v1484 = vunpack.c.l.b16 %v1320
        %v1485 = vunpack.c.l.b16 %v1334
        %v1486 = vunpack.c.l.b16 %v1344
        %v1487 = vunpack.c.l.b16 %v1358
        %v1488 = vunpack.c.l.b16 %v1368
        %v1489 = vunpack.c.l.b16 %v1382
        %v1490 = vunpack.c.l.b16 %v1392
        %v1491 = vunpack.c.l.b16 %v1406
        %v1492 = vunpack.c.l.b16 %v1416
        %v1493 = vunpack.c.l.b16 %v1430
        %v1494 = vunpack.c.l.b16 %v1440
        %v1495 = vunpack.c.l.b16 %v1454
        %v1496 = vunpack.c.l.b16 %v1464
        %v1497 = vpack.c.b16 %v1466, %v1465
        %v1498 = vpack.c.b16 %v1468, %v1467
        %v1499 = vpack.c.b16 %v1470, %v1469
        %v1500 = vpack.c.b16 %v1472, %v1471
        %v1501 = vpack.c.b16 %v1474, %v1473
        %v1502 = vpack.c.b16 %v1476, %v1475
        %v1503 = vpack.c.b16 %v1478, %v1477
        %v1504 = vpack.c.b16 %v1480, %v1479
        %v1505 = vpack.c.b16 %v1482, %v1481
        %v1506 = vpack.c.b16 %v1484, %v1483
        %v1507 = vpack.c.b16 %v1486, %v1485
        %v1508 = vpack.c.b16 %v1488, %v1487
        %v1509 = vpack.c.b16 %v1490, %v1489
        %v1510 = vpack.c.b16 %v1492, %v1491
        %v1511 = vpack.c.b16 %v1494, %v1493
        %v1512 = vpack.c.b16 %v1496, %v1495
        %1513 = vrot.lane.b32.xlu0 %v1497, 4
        %v1514 = vpop.permute.xlu0 %1513
        %1515 = vrot.lane.b32.xlu0 %v1498, 4
        %v1516 = vpop.permute.xlu0 %1515
        %1517 = vrot.lane.b32.xlu0 %v1499, 4
        %v1518 = vpop.permute.xlu0 %1517
        %1519 = vrot.lane.b32.xlu0 %v1500, 4
        %v1520 = vpop.permute.xlu0 %1519
        %1521 = vrot.lane.b32.xlu0 %v1501, 4
        %v1522 = vpop.permute.xlu0 %1521
        %1523 = vrot.lane.b32.xlu0 %v1502, 4
        %v1524 = vpop.permute.xlu0 %1523
        %1525 = vrot.lane.b32.xlu0 %v1503, 4
        %v1526 = vpop.permute.xlu0 %1525
        %1527 = vrot.lane.b32.xlu0 %v1504, 4
        %v1528 = vpop.permute.xlu0 %1527
        %1529 = vrot.lane.b32.xlu0 %v1505, 4
        %v1530 = vpop.permute.xlu0 %1529
        %1531 = vrot.lane.b32.xlu0 %v1506, 4
        %v1532 = vpop.permute.xlu0 %1531
        %1533 = vrot.lane.b32.xlu0 %v1507, 4
        %v1534 = vpop.permute.xlu0 %1533
        %1535 = vrot.lane.b32.xlu0 %v1508, 4
        %v1536 = vpop.permute.xlu0 %1535
        %1537 = vrot.lane.b32.xlu0 %v1509, 4
        %v1538 = vpop.permute.xlu0 %1537
        %1539 = vrot.lane.b32.xlu0 %v1510, 4
        %v1540 = vpop.permute.xlu0 %1539
        %1541 = vrot.lane.b32.xlu0 %v1511, 4
        %v1542 = vpop.permute.xlu0 %1541
        %1543 = vrot.lane.b32.xlu0 %v1512, 4
        %v1544 = vpop.permute.xlu0 %1543
        %vm1561 = vcmask 64544
        %1562 = vst.msk [vmem:[#allocation3] sm:$0xff] %vm1561, %v1514
        %1563 = vst.msk [vmem:[#allocation3 + $0x8] sm:$0xff] %vm1561, %v1516
        %1564 = vst.msk [vmem:[#allocation3 + $0x10] sm:$0xff] %vm1561, %v1518
        %1565 = vst.msk [vmem:[#allocation3 + $0x18] sm:$0xff] %vm1561, %v1520
        %1566 = vst.msk [vmem:[#allocation3 + $0x20] sm:$0xff] %vm1561, %v1522
        %1567 = vst.msk [vmem:[#allocation3 + $0x28] sm:$0xff] %vm1561, %v1524
        %1568 = vst.msk [vmem:[#allocation3 + $0x30] sm:$0xff] %vm1561, %v1526
        %1569 = vst.msk [vmem:[#allocation3 + $0x38] sm:$0xff] %vm1561, %v1528
        %1570 = vst.msk [vmem:[#allocation3 + $0x40] sm:$0xff] %vm1561, %v1530
        %1571 = vst.msk [vmem:[#allocation3 + $0x48] sm:$0xff] %vm1561, %v1532
        %1572 = vst.msk [vmem:[#allocation3 + $0x50] sm:$0xff] %vm1561, %v1534
        %1573 = vst.msk [vmem:[#allocation3 + $0x58] sm:$0xff] %vm1561, %v1536
        %1574 = vst.msk [vmem:[#allocation3 + $0x60] sm:$0xff] %vm1561, %v1538
        %1575 = vst.msk [vmem:[#allocation3 + $0x68] sm:$0xff] %vm1561, %v1540
        %1576 = vst.msk [vmem:[#allocation3 + $0x70] sm:$0xff] %vm1561, %v1542
        %1577 = vst.msk [vmem:[#allocation3 + $0x78] sm:$0xff] %vm1561, %v1544
        %vm1594 = vcmask 1042432
        %vm1595 = vcmask 1046532
        %vm1596 = vmor %vm1594, %vm1595
        %v1597 = vrot.slane %v911, 5
        %v1598 = vrot.slane %v1597, 4
        %v1599 = vrot.slane %v912, 5
        %v1600 = vsel %vm1596, %v1598, %v1599
        %v1601 = vrot.slane %v1599, 4
        %v1602 = vrot.slane %v913, 5
        %v1603 = vsel %vm1596, %v1601, %v1602
        %v1604 = vrot.slane %v914, 5
        %v1605 = vrot.slane %v1604, 4
        %v1606 = vrot.slane %v915, 5
        %v1607 = vsel %vm1596, %v1605, %v1606
        %v1608 = vrot.slane %v1606, 4
        %v1609 = vrot.slane %v916, 5
        %v1610 = vsel %vm1596, %v1608, %v1609
        %v1611 = vrot.slane %v917, 5
        %v1612 = vrot.slane %v1611, 4
        %v1613 = vrot.slane %v918, 5
        %v1614 = vsel %vm1596, %v1612, %v1613
        %v1615 = vrot.slane %v1613, 4
        %v1616 = vrot.slane %v919, 5
        %v1617 = vsel %vm1596, %v1615, %v1616
        %v1618 = vrot.slane %v920, 5
        %v1619 = vrot.slane %v1618, 4
        %v1620 = vrot.slane %v921, 5
        %v1621 = vsel %vm1596, %v1619, %v1620
        %v1622 = vrot.slane %v1620, 4
        %v1623 = vrot.slane %v922, 5
        %v1624 = vsel %vm1596, %v1622, %v1623
        %v1625 = vrot.slane %v923, 5
        %v1626 = vrot.slane %v1625, 4
        %v1627 = vrot.slane %v924, 5
        %v1628 = vsel %vm1596, %v1626, %v1627
        %v1629 = vrot.slane %v1627, 4
        %v1630 = vrot.slane %v925, 5
        %v1631 = vsel %vm1596, %v1629, %v1630
        %v1632 = vrot.slane %v926, 5
        %v1633 = vrot.slane %v1632, 4
        %v1634 = vrot.slane %v927, 5
        %v1635 = vsel %vm1596, %v1633, %v1634
        %v1636 = vrot.slane %v1634, 4
        %v1637 = vrot.slane %v928, 5
        %v1638 = vsel %vm1596, %v1636, %v1637
        %v1639 = vrot.slane %v929, 5
        %v1640 = vrot.slane %v1639, 4
        %v1641 = vrot.slane %v930, 5
        %v1642 = vsel %vm1596, %v1640, %v1641
        %v1643 = vrot.slane %v1641, 4
        %v1644 = vrot.slane %v931, 5
        %v1645 = vsel %vm1596, %v1643, %v1644
        %v1646 = vrot.slane %v932, 5
        %v1647 = vrot.slane %v1646, 4
        %v1648 = vrot.slane %v933, 5
        %v1649 = vsel %vm1596, %v1647, %v1648
        %v1650 = vrot.slane %v1648, 4
        %v1651 = vrot.slane %v934, 5
        %v1652 = vsel %vm1596, %v1650, %v1651
        %v1653 = vrot.slane %v935, 5
        %v1654 = vrot.slane %v1653, 4
        %v1655 = vrot.slane %v936, 5
        %v1656 = vsel %vm1596, %v1654, %v1655
        %v1657 = vrot.slane %v1655, 4
        %v1658 = vrot.slane %v937, 5
        %v1659 = vsel %vm1596, %v1657, %v1658
        %v1660 = vrot.slane %v938, 5
        %v1661 = vrot.slane %v1660, 4
        %v1662 = vrot.slane %v939, 5
        %v1663 = vsel %vm1596, %v1661, %v1662
        %v1664 = vrot.slane %v1662, 4
        %v1665 = vrot.slane %v940, 5
        %v1666 = vsel %vm1596, %v1664, %v1665
        %v1667 = vrot.slane %v941, 5
        %v1668 = vrot.slane %v1667, 4
        %v1669 = vrot.slane %v942, 5
        %v1670 = vsel %vm1596, %v1668, %v1669
        %v1671 = vrot.slane %v1669, 4
        %v1672 = vrot.slane %v943, 5
        %v1673 = vsel %vm1596, %v1671, %v1672
        %v1674 = vrot.slane %v944, 5
        %v1675 = vrot.slane %v1674, 4
        %v1676 = vrot.slane %v945, 5
        %v1677 = vsel %vm1596, %v1675, %v1676
        %v1678 = vrot.slane %v1676, 4
        %v1679 = vrot.slane %v946, 5
        %v1680 = vsel %vm1596, %v1678, %v1679
        %v1681 = vrot.slane %v947, 5
        %v1682 = vrot.slane %v1681, 4
        %v1683 = vrot.slane %v948, 5
        %v1684 = vsel %vm1596, %v1682, %v1683
        %v1685 = vrot.slane %v1683, 4
        %v1686 = vrot.slane %v949, 5
        %v1687 = vsel %vm1596, %v1685, %v1686
        %v1688 = vrot.slane %v950, 5
        %v1689 = vrot.slane %v1688, 4
        %v1690 = vrot.slane %v951, 5
        %v1691 = vsel %vm1596, %v1689, %v1690
        %v1692 = vrot.slane %v1690, 4
        %v1693 = vrot.slane %v952, 5
        %v1694 = vsel %vm1596, %v1692, %v1693
        %v1695 = vrot.slane %v953, 5
        %v1696 = vrot.slane %v1695, 4
        %v1697 = vrot.slane %v954, 5
        %v1698 = vsel %vm1596, %v1696, %v1697
        %v1699 = vrot.slane %v1697, 4
        %v1700 = vrot.slane %v955, 5
        %v1701 = vsel %vm1596, %v1699, %v1700
        %v1702 = vrot.slane %v956, 5
        %v1703 = vrot.slane %v1702, 4
        %v1704 = vrot.slane %v957, 5
        %v1705 = vsel %vm1596, %v1703, %v1704
        %v1706 = vrot.slane %v1704, 4
        %v1707 = vrot.slane %v958, 5
        %v1708 = vsel %vm1596, %v1706, %v1707
        %v1709 = vunpack.c.l.b16 %v1600
        %v1710 = vunpack.c.l.b16 %v1603
        %v1711 = vunpack.c.l.b16 %v1607
        %v1712 = vunpack.c.l.b16 %v1610
        %v1713 = vunpack.c.l.b16 %v1614
        %v1714 = vunpack.c.l.b16 %v1617
        %v1715 = vunpack.c.l.b16 %v1621
        %v1716 = vunpack.c.l.b16 %v1624
        %v1717 = vunpack.c.l.b16 %v1628
        %v1718 = vunpack.c.l.b16 %v1631
        %v1719 = vunpack.c.l.b16 %v1635
        %v1720 = vunpack.c.l.b16 %v1638
        %v1721 = vunpack.c.l.b16 %v1642
        %v1722 = vunpack.c.l.b16 %v1645
        %v1723 = vunpack.c.l.b16 %v1649
        %v1724 = vunpack.c.l.b16 %v1652
        %v1725 = vunpack.c.l.b16 %v1656
        %v1726 = vunpack.c.l.b16 %v1659
        %v1727 = vunpack.c.l.b16 %v1663
        %v1728 = vunpack.c.l.b16 %v1666
        %v1729 = vunpack.c.l.b16 %v1670
        %v1730 = vunpack.c.l.b16 %v1673
        %v1731 = vunpack.c.l.b16 %v1677
        %v1732 = vunpack.c.l.b16 %v1680
        %v1733 = vunpack.c.l.b16 %v1684
        %v1734 = vunpack.c.l.b16 %v1687
        %v1735 = vunpack.c.l.b16 %v1691
        %v1736 = vunpack.c.l.b16 %v1694
        %v1737 = vunpack.c.l.b16 %v1698
        %v1738 = vunpack.c.l.b16 %v1701
        %v1739 = vunpack.c.l.b16 %v1705
        %v1740 = vunpack.c.l.b16 %v1708
        %v1741 = vpack.c.b16 %v1710, %v1709
        %v1742 = vpack.c.b16 %v1712, %v1711
        %v1743 = vpack.c.b16 %v1714, %v1713
        %v1744 = vpack.c.b16 %v1716, %v1715
        %v1745 = vpack.c.b16 %v1718, %v1717
        %v1746 = vpack.c.b16 %v1720, %v1719
        %v1747 = vpack.c.b16 %v1722, %v1721
        %v1748 = vpack.c.b16 %v1724, %v1723
        %v1749 = vpack.c.b16 %v1726, %v1725
        %v1750 = vpack.c.b16 %v1728, %v1727
        %v1751 = vpack.c.b16 %v1730, %v1729
        %v1752 = vpack.c.b16 %v1732, %v1731
        %v1753 = vpack.c.b16 %v1734, %v1733
        %v1754 = vpack.c.b16 %v1736, %v1735
        %v1755 = vpack.c.b16 %v1738, %v1737
        %v1756 = vpack.c.b16 %v1740, %v1739
        %1757 = vrot.lane.b32.xlu0 %v1741, 8
        %v1758 = vpop.permute.xlu0 %1757
        %1759 = vrot.lane.b32.xlu0 %v1742, 8
        %v1760 = vpop.permute.xlu0 %1759
        %1761 = vrot.lane.b32.xlu0 %v1743, 8
        %v1762 = vpop.permute.xlu0 %1761
        %1763 = vrot.lane.b32.xlu0 %v1744, 8
        %v1764 = vpop.permute.xlu0 %1763
        %1765 = vrot.lane.b32.xlu0 %v1745, 8
        %v1766 = vpop.permute.xlu0 %1765
        %1767 = vrot.lane.b32.xlu0 %v1746, 8
        %v1768 = vpop.permute.xlu0 %1767
        %1769 = vrot.lane.b32.xlu0 %v1747, 8
        %v1770 = vpop.permute.xlu0 %1769
        %1771 = vrot.lane.b32.xlu0 %v1748, 8
        %v1772 = vpop.permute.xlu0 %1771
        %1773 = vrot.lane.b32.xlu0 %v1749, 8
        %v1774 = vpop.permute.xlu0 %1773
        %1775 = vrot.lane.b32.xlu0 %v1750, 8
        %v1776 = vpop.permute.xlu0 %1775
        %1777 = vrot.lane.b32.xlu0 %v1751, 8
        %v1778 = vpop.permute.xlu0 %1777
        %1779 = vrot.lane.b32.xlu0 %v1752, 8
        %v1780 = vpop.permute.xlu0 %1779
        %1781 = vrot.lane.b32.xlu0 %v1753, 8
        %v1782 = vpop.permute.xlu0 %1781
        %1783 = vrot.lane.b32.xlu0 %v1754, 8
        %v1784 = vpop.permute.xlu0 %1783
        %1785 = vrot.lane.b32.xlu0 %v1755, 8
        %v1786 = vpop.permute.xlu0 %1785
        %1787 = vrot.lane.b32.xlu0 %v1756, 8
        %v1788 = vpop.permute.xlu0 %1787
        %vm1805 = vcmask 97344
        %1806 = vst.msk [vmem:[#allocation3] sm:$0xff] %vm1805, %v1758
        %1807 = vst.msk [vmem:[#allocation3 + $0x8] sm:$0xff] %vm1805, %v1760
        %1808 = vst.msk [vmem:[#allocation3 + $0x10] sm:$0xff] %vm1805, %v1762
        %1809 = vst.msk [vmem:[#allocation3 + $0x18] sm:$0xff] %vm1805, %v1764
        %1810 = vst.msk [vmem:[#allocation3 + $0x20] sm:$0xff] %vm1805, %v1766
        %1811 = vst.msk [vmem:[#allocation3 + $0x28] sm:$0xff] %vm1805, %v1768
        %1812 = vst.msk [vmem:[#allocation3 + $0x30] sm:$0xff] %vm1805, %v1770
        %1813 = vst.msk [vmem:[#allocation3 + $0x38] sm:$0xff] %vm1805, %v1772
        %1814 = vst.msk [vmem:[#allocation3 + $0x40] sm:$0xff] %vm1805, %v1774
        %1815 = vst.msk [vmem:[#allocation3 + $0x48] sm:$0xff] %vm1805, %v1776
        %1816 = vst.msk [vmem:[#allocation3 + $0x50] sm:$0xff] %vm1805, %v1778
        %1817 = vst.msk [vmem:[#allocation3 + $0x58] sm:$0xff] %vm1805, %v1780
        %1818 = vst.msk [vmem:[#allocation3 + $0x60] sm:$0xff] %vm1805, %v1782
        %1819 = vst.msk [vmem:[#allocation3 + $0x68] sm:$0xff] %vm1805, %v1784
        %1820 = vst.msk [vmem:[#allocation3 + $0x70] sm:$0xff] %vm1805, %v1786
        %1821 = vst.msk [vmem:[#allocation3 + $0x78] sm:$0xff] %vm1805, %v1788
        %v1824 = vunpack.c.l.b16 %v959
        %v1825 = vunpack.c.l.b16 %v960
        %v1826 = vpack.c.b16 %v1825, %v1824
        %1827 = vrot.lane.b32.xlu0 %v1030, 12
        %v1828 = vpop.permute.xlu0 %1827
        %1829 = vrot.lane.b32.xlu0 %v1031, 12
        %v1830 = vpop.permute.xlu0 %1829
        %1831 = vrot.lane.b32.xlu0 %v1032, 12
        %v1832 = vpop.permute.xlu0 %1831
        %1833 = vrot.lane.b32.xlu0 %v1033, 12
        %v1834 = vpop.permute.xlu0 %1833
        %1835 = vrot.lane.b32.xlu0 %v1034, 12
        %v1836 = vpop.permute.xlu0 %1835
        %1837 = vrot.lane.b32.xlu0 %v1035, 12
        %v1838 = vpop.permute.xlu0 %1837
        %1839 = vrot.lane.b32.xlu0 %v1036, 12
        %v1840 = vpop.permute.xlu0 %1839
        %1841 = vrot.lane.b32.xlu0 %v1037, 12
        %v1842 = vpop.permute.xlu0 %1841
        %1843 = vrot.lane.b32.xlu0 %v1038, 12
        %v1844 = vpop.permute.xlu0 %1843
        %1845 = vrot.lane.b32.xlu0 %v1039, 12
        %v1846 = vpop.permute.xlu0 %1845
        %1847 = vrot.lane.b32.xlu0 %v1040, 12
        %v1848 = vpop.permute.xlu0 %1847
        %1849 = vrot.lane.b32.xlu0 %v1041, 12
        %v1850 = vpop.permute.xlu0 %1849
        %1851 = vrot.lane.b32.xlu0 %v1042, 12
        %v1852 = vpop.permute.xlu0 %1851
        %1853 = vrot.lane.b32.xlu0 %v1043, 12
        %v1854 = vpop.permute.xlu0 %1853
        %1855 = vrot.lane.b32.xlu0 %v1044, 12
        %v1856 = vpop.permute.xlu0 %1855
        %1857 = vrot.lane.b32.xlu0 %v1826, 12
        %v1858 = vpop.permute.xlu0 %1857
        %vm1875 = vcmask 130144
        %1876 = vst.msk [vmem:[#allocation3] sm:$0xff] %vm1875, %v1828
        %1877 = vst.msk [vmem:[#allocation3 + $0x8] sm:$0xff] %vm1875, %v1830
        %1878 = vst.msk [vmem:[#allocation3 + $0x10] sm:$0xff] %vm1875, %v1832
        %1879 = vst.msk [vmem:[#allocation3 + $0x18] sm:$0xff] %vm1875, %v1834
        %1880 = vst.msk [vmem:[#allocation3 + $0x20] sm:$0xff] %vm1875, %v1836
        %1881 = vst.msk [vmem:[#allocation3 + $0x28] sm:$0xff] %vm1875, %v1838
        %1882 = vst.msk [vmem:[#allocation3 + $0x30] sm:$0xff] %vm1875, %v1840
        %1883 = vst.msk [vmem:[#allocation3 + $0x38] sm:$0xff] %vm1875, %v1842
        %1884 = vst.msk [vmem:[#allocation3 + $0x40] sm:$0xff] %vm1875, %v1844
        %1885 = vst.msk [vmem:[#allocation3 + $0x48] sm:$0xff] %vm1875, %v1846
        %1886 = vst.msk [vmem:[#allocation3 + $0x50] sm:$0xff] %vm1875, %v1848
        %1887 = vst.msk [vmem:[#allocation3 + $0x58] sm:$0xff] %vm1875, %v1850
        %1888 = vst.msk [vmem:[#allocation3 + $0x60] sm:$0xff] %vm1875, %v1852
        %1889 = vst.msk [vmem:[#allocation3 + $0x68] sm:$0xff] %vm1875, %v1854
        %1890 = vst.msk [vmem:[#allocation3 + $0x70] sm:$0xff] %vm1875, %v1856
        %1891 = vst.msk [vmem:[#allocation3 + $0x78] sm:$0xff] %vm1875, %v1858
        %v1893 = vshrl.u32 %v959, 16
        %v1895 = vrot.slane %v1893, 4
        %v1896 = vshll.u32 %v959, 16
        %v1898 = vrot.slane %v1896, 5
        %v1899 = vor.u32 %v1895, %v1898
        %v1900 = vrot.slane %v1899, 4
        %v1902 = vshll.u32 %v960, 16
        %v1904 = vrot.slane %v1902, 5
        %v1905 = vsel %vm1080, %v1900, %v1904
        %v1906 = vshrl.u32 %v960, 16
        %v1908 = vrot.slane %v1906, 4
        %v1909 = vor.u32 %v1908, %v1904
        %v1910 = vrot.slane %v1909, 4
        %v1912 = vshll.u32 %v961, 16
        %v1914 = vrot.slane %v1912, 5
        %v1915 = vsel %vm1080, %v1910, %v1914
        %v1916 = vunpack.c.l.b16 %v1905
        %v1917 = vunpack.c.l.b16 %v1915
        %v1918 = vpack.c.b16 %v1917, %v1916
        %1919 = vrot.lane.b32.xlu0 %v1498, 16
        %v1920 = vpop.permute.xlu0 %1919
        %1921 = vrot.lane.b32.xlu0 %v1499, 16
        %v1922 = vpop.permute.xlu0 %1921
        %1923 = vrot.lane.b32.xlu0 %v1500, 16
        %v1924 = vpop.permute.xlu0 %1923
        %1925 = vrot.lane.b32.xlu0 %v1501, 16
        %v1926 = vpop.permute.xlu0 %1925
        %1927 = vrot.lane.b32.xlu0 %v1502, 16
        %v1928 = vpop.permute.xlu0 %1927
        %1929 = vrot.lane.b32.xlu0 %v1503, 16
        %v1930 = vpop.permute.xlu0 %1929
        %1931 = vrot.lane.b32.xlu0 %v1504, 16
        %v1932 = vpop.permute.xlu0 %1931
        %1933 = vrot.lane.b32.xlu0 %v1505, 16
        %v1934 = vpop.permute.xlu0 %1933
        %1935 = vrot.lane.b32.xlu0 %v1506, 16
        %v1936 = vpop.permute.xlu0 %1935
        %1937 = vrot.lane.b32.xlu0 %v1507, 16
        %v1938 = vpop.permute.xlu0 %1937
        %1939 = vrot.lane.b32.xlu0 %v1508, 16
        %v1940 = vpop.permute.xlu0 %1939
        %1941 = vrot.lane.b32.xlu0 %v1509, 16
        %v1942 = vpop.permute.xlu0 %1941
        %1943 = vrot.lane.b32.xlu0 %v1510, 16
        %v1944 = vpop.permute.xlu0 %1943
        %1945 = vrot.lane.b32.xlu0 %v1511, 16
        %v1946 = vpop.permute.xlu0 %1945
        %1947 = vrot.lane.b32.xlu0 %v1512, 16
        %v1948 = vpop.permute.xlu0 %1947
        %1949 = vrot.lane.b32.xlu0 %v1918, 16
        %v1950 = vpop.permute.xlu0 %1949
        %vm1967 = vcmask 162944
        %1968 = vst.msk [vmem:[#allocation3] sm:$0xff] %vm1967, %v1920
        %1969 = vst.msk [vmem:[#allocation3 + $0x8] sm:$0xff] %vm1967, %v1922
        %1970 = vst.msk [vmem:[#allocation3 + $0x10] sm:$0xff] %vm1967, %v1924
        %1971 = vst.msk [vmem:[#allocation3 + $0x18] sm:$0xff] %vm1967, %v1926
        %1972 = vst.msk [vmem:[#allocation3 + $0x20] sm:$0xff] %vm1967, %v1928
        %1973 = vst.msk [vmem:[#allocation3 + $0x28] sm:$0xff] %vm1967, %v1930
        %1974 = vst.msk [vmem:[#allocation3 + $0x30] sm:$0xff] %vm1967, %v1932
        %1975 = vst.msk [vmem:[#allocation3 + $0x38] sm:$0xff] %vm1967, %v1934
        %1976 = vst.msk [vmem:[#allocation3 + $0x40] sm:$0xff] %vm1967, %v1936
        %1977 = vst.msk [vmem:[#allocation3 + $0x48] sm:$0xff] %vm1967, %v1938
        %1978 = vst.msk [vmem:[#allocation3 + $0x50] sm:$0xff] %vm1967, %v1940
        %1979 = vst.msk [vmem:[#allocation3 + $0x58] sm:$0xff] %vm1967, %v1942
        %1980 = vst.msk [vmem:[#allocation3 + $0x60] sm:$0xff] %vm1967, %v1944
        %1981 = vst.msk [vmem:[#allocation3 + $0x68] sm:$0xff] %vm1967, %v1946
        %1982 = vst.msk [vmem:[#allocation3 + $0x70] sm:$0xff] %vm1967, %v1948
        %1983 = vst.msk [vmem:[#allocation3 + $0x78] sm:$0xff] %vm1967, %v1950
        %v1985 = vrot.slane %v959, 5
        %v1986 = vrot.slane %v1985, 4
        %v1987 = vrot.slane %v960, 5
        %v1988 = vsel %vm1596, %v1986, %v1987
        %v1989 = vrot.slane %v1987, 4
        %v1990 = vrot.slane %v961, 5
        %v1991 = vsel %vm1596, %v1989, %v1990
        %v1992 = vunpack.c.l.b16 %v1988
        %v1993 = vunpack.c.l.b16 %v1991
        %v1994 = vpack.c.b16 %v1993, %v1992
        %1995 = vrot.lane.b32.xlu0 %v1742, 20
        %v1996 = vpop.permute.xlu0 %1995
        %1997 = vrot.lane.b32.xlu0 %v1743, 20
        %v1998 = vpop.permute.xlu0 %1997
        %1999 = vrot.lane.b32.xlu0 %v1744, 20
        %v2000 = vpop.permute.xlu0 %1999
        %2001 = vrot.lane.b32.xlu0 %v1745, 20
        %v2002 = vpop.permute.xlu0 %2001
        %2003 = vrot.lane.b32.xlu0 %v1746, 20
        %v2004 = vpop.permute.xlu0 %2003
        %2005 = vrot.lane.b32.xlu0 %v1747, 20
        %v2006 = vpop.permute.xlu0 %2005
        %2007 = vrot.lane.b32.xlu0 %v1748, 20
        %v2008 = vpop.permute.xlu0 %2007
        %2009 = vrot.lane.b32.xlu0 %v1749, 20
        %v2010 = vpop.permute.xlu0 %2009
        %2011 = vrot.lane.b32.xlu0 %v1750, 20
        %v2012 = vpop.permute.xlu0 %2011
        %2013 = vrot.lane.b32.xlu0 %v1751, 20
        %v2014 = vpop.permute.xlu0 %2013
        %2015 = vrot.lane.b32.xlu0 %v1752, 20
        %v2016 = vpop.permute.xlu0 %2015
        %2017 = vrot.lane.b32.xlu0 %v1753, 20
        %v2018 = vpop.permute.xlu0 %2017
        %2019 = vrot.lane.b32.xlu0 %v1754, 20
        %v2020 = vpop.permute.xlu0 %2019
        %2021 = vrot.lane.b32.xlu0 %v1755, 20
        %v2022 = vpop.permute.xlu0 %2021
        %2023 = vrot.lane.b32.xlu0 %v1756, 20
        %v2024 = vpop.permute.xlu0 %2023
        %2025 = vrot.lane.b32.xlu0 %v1994, 20
        %v2026 = vpop.permute.xlu0 %2025
        %vm2043 = vcmask 195744
        %2044 = vst.msk [vmem:[#allocation3] sm:$0xff] %vm2043, %v1996
        %2045 = vst.msk [vmem:[#allocation3 + $0x8] sm:$0xff] %vm2043, %v1998
        %2046 = vst.msk [vmem:[#allocation3 + $0x10] sm:$0xff] %vm2043, %v2000
        %2047 = vst.msk [vmem:[#allocation3 + $0x18] sm:$0xff] %vm2043, %v2002
        %2048 = vst.msk [vmem:[#allocation3 + $0x20] sm:$0xff] %vm2043, %v2004
        %2049 = vst.msk [vmem:[#allocation3 + $0x28] sm:$0xff] %vm2043, %v2006
        %2050 = vst.msk [vmem:[#allocation3 + $0x30] sm:$0xff] %vm2043, %v2008
        %2051 = vst.msk [vmem:[#allocation3 + $0x38] sm:$0xff] %vm2043, %v2010
        %2052 = vst.msk [vmem:[#allocation3 + $0x40] sm:$0xff] %vm2043, %v2012
        %2053 = vst.msk [vmem:[#allocation3 + $0x48] sm:$0xff] %vm2043, %v2014
        %2054 = vst.msk [vmem:[#allocation3 + $0x50] sm:$0xff] %vm2043, %v2016
        %2055 = vst.msk [vmem:[#allocation3 + $0x58] sm:$0xff] %vm2043, %v2018
        %2056 = vst.msk [vmem:[#allocation3 + $0x60] sm:$0xff] %vm2043, %v2020
        %2057 = vst.msk [vmem:[#allocation3 + $0x68] sm:$0xff] %vm2043, %v2022
        %2058 = vst.msk [vmem:[#allocation3 + $0x70] sm:$0xff] %vm2043, %v2024
        %2059 = vst.msk [vmem:[#allocation3 + $0x78] sm:$0xff] %vm2043, %v2026
        %v2062 = vunpack.c.l.b16 %v962
        %v2063 = vunpack.c.l.b16 %v963
        %v2064 = vpack.c.b16 %v2063, %v2062
        %2065 = vrot.lane.b32.xlu0 %v1031, 24
        %v2066 = vpop.permute.xlu0 %2065
        %2067 = vrot.lane.b32.xlu0 %v1032, 24
        %v2068 = vpop.permute.xlu0 %2067
        %2069 = vrot.lane.b32.xlu0 %v1033, 24
        %v2070 = vpop.permute.xlu0 %2069
        %2071 = vrot.lane.b32.xlu0 %v1034, 24
        %v2072 = vpop.permute.xlu0 %2071
        %2073 = vrot.lane.b32.xlu0 %v1035, 24
        %v2074 = vpop.permute.xlu0 %2073
        %2075 = vrot.lane.b32.xlu0 %v1036, 24
        %v2076 = vpop.permute.xlu0 %2075
        %2077 = vrot.lane.b32.xlu0 %v1037, 24
        %v2078 = vpop.permute.xlu0 %2077
        %2079 = vrot.lane.b32.xlu0 %v1038, 24
        %v2080 = vpop.permute.xlu0 %2079
        %2081 = vrot.lane.b32.xlu0 %v1039, 24
        %v2082 = vpop.permute.xlu0 %2081
        %2083 = vrot.lane.b32.xlu0 %v1040, 24
        %v2084 = vpop.permute.xlu0 %2083
        %2085 = vrot.lane.b32.xlu0 %v1041, 24
        %v2086 = vpop.permute.xlu0 %2085
        %2087 = vrot.lane.b32.xlu0 %v1042, 24
        %v2088 = vpop.permute.xlu0 %2087
        %2089 = vrot.lane.b32.xlu0 %v1043, 24
        %v2090 = vpop.permute.xlu0 %2089
        %2091 = vrot.lane.b32.xlu0 %v1044, 24
        %v2092 = vpop.permute.xlu0 %2091
        %2093 = vrot.lane.b32.xlu0 %v1826, 24
        %v2094 = vpop.permute.xlu0 %2093
        %2095 = vrot.lane.b32.xlu0 %v2064, 24
        %v2096 = vpop.permute.xlu0 %2095
        %vm2113 = vcmask 228544
        %2114 = vst.msk [vmem:[#allocation3] sm:$0xff] %vm2113, %v2066
        %2115 = vst.msk [vmem:[#allocation3 + $0x8] sm:$0xff] %vm2113, %v2068
        %2116 = vst.msk [vmem:[#allocation3 + $0x10] sm:$0xff] %vm2113, %v2070
        %2117 = vst.msk [vmem:[#allocation3 + $0x18] sm:$0xff] %vm2113, %v2072
        %2118 = vst.msk [vmem:[#allocation3 + $0x20] sm:$0xff] %vm2113, %v2074
        %2119 = vst.msk [vmem:[#allocation3 + $0x28] sm:$0xff] %vm2113, %v2076
        %2120 = vst.msk [vmem:[#allocation3 + $0x30] sm:$0xff] %vm2113, %v2078
        %2121 = vst.msk [vmem:[#allocation3 + $0x38] sm:$0xff] %vm2113, %v2080
        %2122 = vst.msk [vmem:[#allocation3 + $0x40] sm:$0xff] %vm2113, %v2082
        %2123 = vst.msk [vmem:[#allocation3 + $0x48] sm:$0xff] %vm2113, %v2084
        %2124 = vst.msk [vmem:[#allocation3 + $0x50] sm:$0xff] %vm2113, %v2086
        %2125 = vst.msk [vmem:[#allocation3 + $0x58] sm:$0xff] %vm2113, %v2088
        %2126 = vst.msk [vmem:[#allocation3 + $0x60] sm:$0xff] %vm2113, %v2090
        %2127 = vst.msk [vmem:[#allocation3 + $0x68] sm:$0xff] %vm2113, %v2092
        %2128 = vst.msk [vmem:[#allocation3 + $0x70] sm:$0xff] %vm2113, %v2094
        %2129 = vst.msk [vmem:[#allocation3 + $0x78] sm:$0xff] %vm2113, %v2096
        %v2131 = vshrl.u32 %v962, 16
        %v2133 = vrot.slane %v2131, 4
        %v2134 = vshll.u32 %v962, 16
        %v2136 = vrot.slane %v2134, 5
        %v2137 = vor.u32 %v2133, %v2136
        %v2138 = vrot.slane %v2137, 4
        %v2140 = vshll.u32 %v963, 16
        %v2142 = vrot.slane %v2140, 5
        %v2143 = vsel %vm1080, %v2138, %v2142
        %v2144 = vshrl.u32 %v963, 16
        %v2146 = vrot.slane %v2144, 4
        %v2147 = vor.u32 %v2146, %v2142
        %v2148 = vrot.slane %v2147, 4
        %v2150 = vshll.u32 %v964, 16
        %v2152 = vrot.slane %v2150, 5
        %v2153 = vsel %vm1080, %v2148, %v2152
        %v2154 = vunpack.c.l.b16 %v2143
        %v2155 = vunpack.c.l.b16 %v2153
        %v2156 = vpack.c.b16 %v2155, %v2154
        %2157 = vrot.lane.b32.xlu0 %v1499, 28
        %v2158 = vpop.permute.xlu0 %2157
        %2159 = vrot.lane.b32.xlu0 %v1500, 28
        %v2160 = vpop.permute.xlu0 %2159
        %2161 = vrot.lane.b32.xlu0 %v1501, 28
        %v2162 = vpop.permute.xlu0 %2161
        %2163 = vrot.lane.b32.xlu0 %v1502, 28
        %v2164 = vpop.permute.xlu0 %2163
        %2165 = vrot.lane.b32.xlu0 %v1503, 28
        %v2166 = vpop.permute.xlu0 %2165
        %2167 = vrot.lane.b32.xlu0 %v1504, 28
        %v2168 = vpop.permute.xlu0 %2167
        %2169 = vrot.lane.b32.xlu0 %v1505, 28
        %v2170 = vpop.permute.xlu0 %2169
        %2171 = vrot.lane.b32.xlu0 %v1506, 28
        %v2172 = vpop.permute.xlu0 %2171
        %2173 = vrot.lane.b32.xlu0 %v1507, 28
        %v2174 = vpop.permute.xlu0 %2173
        %2175 = vrot.lane.b32.xlu0 %v1508, 28
        %v2176 = vpop.permute.xlu0 %2175
        %2177 = vrot.lane.b32.xlu0 %v1509, 28
        %v2178 = vpop.permute.xlu0 %2177
        %2179 = vrot.lane.b32.xlu0 %v1510, 28
        %v2180 = vpop.permute.xlu0 %2179
        %2181 = vrot.lane.b32.xlu0 %v1511, 28
        %v2182 = vpop.permute.xlu0 %2181
        %2183 = vrot.lane.b32.xlu0 %v1512, 28
        %v2184 = vpop.permute.xlu0 %2183
        %2185 = vrot.lane.b32.xlu0 %v1918, 28
        %v2186 = vpop.permute.xlu0 %2185
        %2187 = vrot.lane.b32.xlu0 %v2156, 28
        %v2188 = vpop.permute.xlu0 %2187
        %vm2205 = vcmask 261344
        %2206 = vst.msk [vmem:[#allocation3] sm:$0xff] %vm2205, %v2158
        %2207 = vst.msk [vmem:[#allocation3 + $0x8] sm:$0xff] %vm2205, %v2160
        %2208 = vst.msk [vmem:[#allocation3 + $0x10] sm:$0xff] %vm2205, %v2162
        %2209 = vst.msk [vmem:[#allocation3 + $0x18] sm:$0xff] %vm2205, %v2164
        %2210 = vst.msk [vmem:[#allocation3 + $0x20] sm:$0xff] %vm2205, %v2166
        %2211 = vst.msk [vmem:[#allocation3 + $0x28] sm:$0xff] %vm2205, %v2168
        %2212 = vst.msk [vmem:[#allocation3 + $0x30] sm:$0xff] %vm2205, %v2170
        %2213 = vst.msk [vmem:[#allocation3 + $0x38] sm:$0xff] %vm2205, %v2172
        %2214 = vst.msk [vmem:[#allocation3 + $0x40] sm:$0xff] %vm2205, %v2174
        %2215 = vst.msk [vmem:[#allocation3 + $0x48] sm:$0xff] %vm2205, %v2176
        %2216 = vst.msk [vmem:[#allocation3 + $0x50] sm:$0xff] %vm2205, %v2178
        %2217 = vst.msk [vmem:[#allocation3 + $0x58] sm:$0xff] %vm2205, %v2180
        %2218 = vst.msk [vmem:[#allocation3 + $0x60] sm:$0xff] %vm2205, %v2182
        %2219 = vst.msk [vmem:[#allocation3 + $0x68] sm:$0xff] %vm2205, %v2184
        %2220 = vst.msk [vmem:[#allocation3 + $0x70] sm:$0xff] %vm2205, %v2186
        %2221 = vst.msk [vmem:[#allocation3 + $0x78] sm:$0xff] %vm2205, %v2188
        %v2223 = vrot.slane %v962, 5
        %v2224 = vrot.slane %v2223, 4
        %v2225 = vrot.slane %v963, 5
        %v2226 = vsel %vm1596, %v2224, %v2225
        %v2227 = vrot.slane %v2225, 4
        %v2228 = vrot.slane %v964, 5
        %v2229 = vsel %vm1596, %v2227, %v2228
        %v2230 = vunpack.c.l.b16 %v2226
        %v2231 = vunpack.c.l.b16 %v2229
        %v2232 = vpack.c.b16 %v2231, %v2230
        %2233 = vrot.lane.b32.xlu0 %v1743, 32
        %v2234 = vpop.permute.xlu0 %2233
        %2235 = vrot.lane.b32.xlu0 %v1744, 32
        %v2236 = vpop.permute.xlu0 %2235
        %2237 = vrot.lane.b32.xlu0 %v1745, 32
        %v2238 = vpop.permute.xlu0 %2237
        %2239 = vrot.lane.b32.xlu0 %v1746, 32
        %v2240 = vpop.permute.xlu0 %2239
        %2241 = vrot.lane.b32.xlu0 %v1747, 32
        %v2242 = vpop.permute.xlu0 %2241
        %2243 = vrot.lane.b32.xlu0 %v1748, 32
        %v2244 = vpop.permute.xlu0 %2243
        %2245 = vrot.lane.b32.xlu0 %v1749, 32
        %v2246 = vpop.permute.xlu0 %2245
        %2247 = vrot.lane.b32.xlu0 %v1750, 32
        %v2248 = vpop.permute.xlu0 %2247
        %2249 = vrot.lane.b32.xlu0 %v1751, 32
        %v2250 = vpop.permute.xlu0 %2249
        %2251 = vrot.lane.b32.xlu0 %v1752, 32
        %v2252 = vpop.permute.xlu0 %2251
        %2253 = vrot.lane.b32.xlu0 %v1753, 32
        %v2254 = vpop.permute.xlu0 %2253
        %2255 = vrot.lane.b32.xlu0 %v1754, 32
        %v2256 = vpop.permute.xlu0 %2255
        %2257 = vrot.lane.b32.xlu0 %v1755, 32
        %v2258 = vpop.permute.xlu0 %2257
        %2259 = vrot.lane.b32.xlu0 %v1756, 32
        %v2260 = vpop.permute.xlu0 %2259
        %2261 = vrot.lane.b32.xlu0 %v1994, 32
        %v2262 = vpop.permute.xlu0 %2261
        %2263 = vrot.lane.b32.xlu0 %v2232, 32
        %v2264 = vpop.permute.xlu0 %2263
        %vm2281 = vcmask 294144
        %2282 = vst.msk [vmem:[#allocation3] sm:$0xff] %vm2281, %v2234
        %2283 = vst.msk [vmem:[#allocation3 + $0x8] sm:$0xff] %vm2281, %v2236
        %2284 = vst.msk [vmem:[#allocation3 + $0x10] sm:$0xff] %vm2281, %v2238
        %2285 = vst.msk [vmem:[#allocation3 + $0x18] sm:$0xff] %vm2281, %v2240
        %2286 = vst.msk [vmem:[#allocation3 + $0x20] sm:$0xff] %vm2281, %v2242
        %2287 = vst.msk [vmem:[#allocation3 + $0x28] sm:$0xff] %vm2281, %v2244
        %2288 = vst.msk [vmem:[#allocation3 + $0x30] sm:$0xff] %vm2281, %v2246
        %2289 = vst.msk [vmem:[#allocation3 + $0x38] sm:$0xff] %vm2281, %v2248
        %2290 = vst.msk [vmem:[#allocation3 + $0x40] sm:$0xff] %vm2281, %v2250
        %2291 = vst.msk [vmem:[#allocation3 + $0x48] sm:$0xff] %vm2281, %v2252
        %2292 = vst.msk [vmem:[#allocation3 + $0x50] sm:$0xff] %vm2281, %v2254
        %2293 = vst.msk [vmem:[#allocation3 + $0x58] sm:$0xff] %vm2281, %v2256
        %2294 = vst.msk [vmem:[#allocation3 + $0x60] sm:$0xff] %vm2281, %v2258
        %2295 = vst.msk [vmem:[#allocation3 + $0x68] sm:$0xff] %vm2281, %v2260
        %2296 = vst.msk [vmem:[#allocation3 + $0x70] sm:$0xff] %vm2281, %v2262
        %2297 = vst.msk [vmem:[#allocation3 + $0x78] sm:$0xff] %vm2281, %v2264
        %v2298 = vld [vmem:[#allocation3] sm:$0xff]
        %v2299 = vld [vmem:[#allocation3 + $0x8] sm:$0xff]
        %v2300 = vld [vmem:[#allocation3 + $0x10] sm:$0xff]
        %v2301 = vld [vmem:[#allocation3 + $0x18] sm:$0xff]
        %v2302 = vld [vmem:[#allocation3 + $0x20] sm:$0xff]
        %v2303 = vld [vmem:[#allocation3 + $0x28] sm:$0xff]
        %v2304 = vld [vmem:[#allocation3 + $0x30] sm:$0xff]
        %v2305 = vld [vmem:[#allocation3 + $0x38] sm:$0xff]
        %v2306 = vld [vmem:[#allocation3 + $0x40] sm:$0xff]
        %v2307 = vld [vmem:[#allocation3 + $0x48] sm:$0xff]
        %v2308 = vld [vmem:[#allocation3 + $0x50] sm:$0xff]
        %v2309 = vld [vmem:[#allocation3 + $0x58] sm:$0xff]
        %v2310 = vld [vmem:[#allocation3 + $0x60] sm:$0xff]
        %v2311 = vld [vmem:[#allocation3 + $0x68] sm:$0xff]
        %v2312 = vld [vmem:[#allocation3 + $0x70] sm:$0xff]
        %v2313 = vld [vmem:[#allocation3 + $0x78] sm:$0xff]
        %v2314 = vld [vmem:[%s1] sm:$0xf]
        %v2315 = vld [vmem:[%s1 + $0x4] sm:$0xf]
        %v2316 = vld [vmem:[%s1 + $0x8] sm:$0xf]
        %v2317 = vld [vmem:[%s1 + $0xc] sm:$0xf]
        %v2318 = vld [vmem:[%s1 + $0x10] sm:$0x3]
        %v2319 = vld [vmem:[%s2] sm:$0x1]
        %v2321 = vlaneseq
        %v2322 = vshrl.u32 %v2321, 7
        %v2323 = vsub.s32 0, %v2322
        %v2324 = vrot.slane %v2319, %v2323
        %v2331 = vunpack.c.l.b16 %v2314
        %v2332 = vunpack.c.l.b16 %v2315
        %v2333 = vunpack.c.l.b16 %v2316
        %v2334 = vunpack.c.l.b16 %v2317
        %v2335 = vunpack.c.l.b16 %v2318
        %v2336 = vpack.c.b16 %v2332, %v2331
        %v2337 = vpack.c.b16 %v2334, %v2333
        %v2338 = vpack.c.b16 %v2335, %v2335
        %vm2341 = vcmask 293888
        %v2343 = vsel %vm2341, %v2298, 0
        %v2346 = vsel %vm2341, %v2299, 0
        %v2349 = vsel %vm2341, %v2300, 0
        %v2352 = vsel %vm2341, %v2301, 0
        %v2355 = vsel %vm2341, %v2302, 0
        %v2358 = vsel %vm2341, %v2303, 0
        %v2361 = vsel %vm2341, %v2304, 0
        %v2364 = vsel %vm2341, %v2305, 0
        %v2367 = vsel %vm2341, %v2306, 0
        %v2370 = vsel %vm2341, %v2307, 0
        %v2373 = vsel %vm2341, %v2308, 0
        %v2376 = vsel %vm2341, %v2309, 0
        %v2379 = vsel %vm2341, %v2310, 0
        %v2382 = vsel %vm2341, %v2311, 0
        %v2385 = vsel %vm2341, %v2312, 0
        %v2388 = vsel %vm2341, %v2313, 0
        %vm2390 = vcmask 1041408
        %v2392 = vsel %vm2390, %v2338, 0
        %2394 = vmatprep.subr.bf16.mxu0 0
        %2395 = vmatpush1.bf16.msra.mxu0 %v2336
        %2396 = vmatprep.subr.bf16.mxu0 0
        %2397 = vmatpush1.bf16.msra.mxu0 %v2337
        %2398 = vmatprep.subr.bf16.mxu0 0
        %2399 = vmatpush1.bf16.msra.mxu0 %v2392
        %2400 = vmatprep.subr.bf16.mxu0 0
        %2401 = vmatpush1.bf16.msra.mxu0 0
        %2402 = vmatprep.subr.bf16.mxu0 0
        %2403 = vmatpush1.bf16.msra.mxu0 0
        %2404 = vmatprep.subr.bf16.mxu0 0
        %2405 = vmatpush1.bf16.msra.mxu0 0
        %2406 = vmatprep.subr.bf16.mxu0 0
        %2407 = vmatpush1.bf16.msra.mxu0 0
        %2408 = vmatprep.subr.bf16.mxu0 0
        %2409 = vmatpush1.bf16.msra.mxu0 0
        %2410 = vmatprep.subr.bf16.mxu0 0
        %2411 = vmatpush1.bf16.msra.mxu0 0
        %2412 = vmatprep.subr.bf16.mxu0 0
        %2413 = vmatpush1.bf16.msra.mxu0 0
        %2414 = vmatprep.subr.bf16.mxu0 0
        %2415 = vmatpush1.bf16.msra.mxu0 0
        %2416 = vmatprep.subr.bf16.mxu0 0
        %2417 = vmatpush1.bf16.msra.mxu0 0
        %2418 = vmatprep.subr.bf16.mxu0 0
        %2419 = vmatpush1.bf16.msra.mxu0 0
        %2420 = vmatprep.subr.bf16.mxu0 0
        %2421 = vmatpush1.bf16.msra.mxu0 0
        %2422 = vmatprep.subr.bf16.mxu0 0
        %2423 = vmatpush1.bf16.msra.mxu0 0
        %2424 = vmatprep.subr.bf16.mxu0 0
        %2425 = vmatpush1.bf16.msra.mxu0 0
        %2426 = vmatprep.mubr.bf16.mxu0 0
        %2427 = vmatmul.mubr.bf16.gmra.mrb[0].mxu0 %v2343
        %v2428 = vpop.f32.mrb[0].mxu0
        %v2429 = vadd.f32 %v2324, %v2428
        %v2430 = vpop.f32.mrb[0].mxu0
        %v2431 = vpop.f32.mrb[0].mxu0
        %v2432 = vadd.f32 %v2324, %v2431
        %v2433 = vpop.f32.mrb[0].mxu0
        %2434 = vmatprep.mubr.bf16.mxu0 0
        %2435 = vmatmul.mubr.bf16.gmra.mrb[0].mxu0 %v2346
        %v2436 = vpop.f32.mrb[0].mxu0
        %v2437 = vadd.f32 %v2324, %v2436
        %v2438 = vpop.f32.mrb[0].mxu0
        %v2439 = vpop.f32.mrb[0].mxu0
        %v2440 = vadd.f32 %v2324, %v2439
        %v2441 = vpop.f32.mrb[0].mxu0
        %2442 = vmatprep.mubr.bf16.mxu0 0
        %2443 = vmatmul.mubr.bf16.gmra.mrb[0].mxu0 %v2349
        %v2444 = vpop.f32.mrb[0].mxu0
        %v2445 = vadd.f32 %v2324, %v2444
        %v2446 = vpop.f32.mrb[0].mxu0
        %v2447 = vpop.f32.mrb[0].mxu0
        %v2448 = vadd.f32 %v2324, %v2447
        %v2449 = vpop.f32.mrb[0].mxu0
        %2450 = vmatprep.mubr.bf16.mxu0 0
        %2451 = vmatmul.mubr.bf16.gmra.mrb[0].mxu0 %v2352
        %v2452 = vpop.f32.mrb[0].mxu0
        %v2453 = vadd.f32 %v2324, %v2452
        %v2454 = vpop.f32.mrb[0].mxu0
        %v2455 = vpop.f32.mrb[0].mxu0
        %v2456 = vadd.f32 %v2324, %v2455
        %v2457 = vpop.f32.mrb[0].mxu0
        %2458 = vmatprep.mubr.bf16.mxu0 0
        %2459 = vmatmul.mubr.bf16.gmra.mrb[0].mxu0 %v2355
        %v2460 = vpop.f32.mrb[0].mxu0
        %v2461 = vadd.f32 %v2324, %v2460
        %v2462 = vpop.f32.mrb[0].mxu0
        %v2463 = vpop.f32.mrb[0].mxu0
        %v2464 = vadd.f32 %v2324, %v2463
        %v2465 = vpop.f32.mrb[0].mxu0
        %2466 = vmatprep.mubr.bf16.mxu0 0
        %2467 = vmatmul.mubr.bf16.gmra.mrb[0].mxu0 %v2358
        %v2468 = vpop.f32.mrb[0].mxu0
        %v2469 = vadd.f32 %v2324, %v2468
        %v2470 = vpop.f32.mrb[0].mxu0
        %v2471 = vpop.f32.mrb[0].mxu0
        %v2472 = vadd.f32 %v2324, %v2471
        %v2473 = vpop.f32.mrb[0].mxu0
        %2474 = vmatprep.mubr.bf16.mxu0 0
        %2475 = vmatmul.mubr.bf16.gmra.mrb[0].mxu0 %v2361
        %v2476 = vpop.f32.mrb[0].mxu0
        %v2477 = vadd.f32 %v2324, %v2476
        %v2478 = vpop.f32.mrb[0].mxu0
        %v2479 = vpop.f32.mrb[0].mxu0
        %v2480 = vadd.f32 %v2324, %v2479
        %v2481 = vpop.f32.mrb[0].mxu0
        %2482 = vmatprep.mubr.bf16.mxu0 0
        %2483 = vmatmul.mubr.bf16.gmra.mrb[0].mxu0 %v2364
        %v2484 = vpop.f32.mrb[0].mxu0
        %v2485 = vadd.f32 %v2324, %v2484
        %v2486 = vpop.f32.mrb[0].mxu0
        %v2487 = vpop.f32.mrb[0].mxu0
        %v2488 = vadd.f32 %v2324, %v2487
        %v2489 = vpop.f32.mrb[0].mxu0
        %2490 = vmatprep.mubr.bf16.mxu0 0
        %2491 = vmatmul.mubr.bf16.gmra.mrb[0].mxu0 %v2367
        %v2492 = vpop.f32.mrb[0].mxu0
        %v2493 = vadd.f32 %v2324, %v2492
        %v2494 = vpop.f32.mrb[0].mxu0
        %v2495 = vpop.f32.mrb[0].mxu0
        %v2496 = vadd.f32 %v2324, %v2495
        %v2497 = vpop.f32.mrb[0].mxu0
        %2498 = vmatprep.mubr.bf16.mxu0 0
        %2499 = vmatmul.mubr.bf16.gmra.mrb[0].mxu0 %v2370
        %v2500 = vpop.f32.mrb[0].mxu0
        %v2501 = vadd.f32 %v2324, %v2500
        %v2502 = vpop.f32.mrb[0].mxu0
        %v2503 = vpop.f32.mrb[0].mxu0
        %v2504 = vadd.f32 %v2324, %v2503
        %v2505 = vpop.f32.mrb[0].mxu0
        %2506 = vmatprep.mubr.bf16.mxu0 0
        %2507 = vmatmul.mubr.bf16.gmra.mrb[0].mxu0 %v2373
        %v2508 = vpop.f32.mrb[0].mxu0
        %v2509 = vadd.f32 %v2324, %v2508
        %v2510 = vpop.f32.mrb[0].mxu0
        %v2511 = vpop.f32.mrb[0].mxu0
        %v2512 = vadd.f32 %v2324, %v2511
        %v2513 = vpop.f32.mrb[0].mxu0
        %2514 = vmatprep.mubr.bf16.mxu0 0
        %2515 = vmatmul.mubr.bf16.gmra.mrb[0].mxu0 %v2376
        %v2516 = vpop.f32.mrb[0].mxu0
        %v2517 = vadd.f32 %v2324, %v2516
        %v2518 = vpop.f32.mrb[0].mxu0
        %v2519 = vpop.f32.mrb[0].mxu0
        %v2520 = vadd.f32 %v2324, %v2519
        %v2521 = vpop.f32.mrb[0].mxu0
        %2522 = vmatprep.mubr.bf16.mxu0 0
        %2523 = vmatmul.mubr.bf16.gmra.mrb[0].mxu0 %v2379
        %v2524 = vpop.f32.mrb[0].mxu0
        %v2525 = vadd.f32 %v2324, %v2524
        %v2526 = vpop.f32.mrb[0].mxu0
        %v2527 = vpop.f32.mrb[0].mxu0
        %v2528 = vadd.f32 %v2324, %v2527
        %v2529 = vpop.f32.mrb[0].mxu0
        %2530 = vmatprep.mubr.bf16.mxu0 0
        %2531 = vmatmul.mubr.bf16.gmra.mrb[0].mxu0 %v2382
        %v2532 = vpop.f32.mrb[0].mxu0
        %v2533 = vadd.f32 %v2324, %v2532
        %v2534 = vpop.f32.mrb[0].mxu0
        %v2535 = vpop.f32.mrb[0].mxu0
        %v2536 = vadd.f32 %v2324, %v2535
        %v2537 = vpop.f32.mrb[0].mxu0
        %2538 = vmatprep.mubr.bf16.mxu0 0
        %2539 = vmatmul.mubr.bf16.gmra.mrb[0].mxu0 %v2385
        %v2540 = vpop.f32.mrb[0].mxu0
        %v2541 = vadd.f32 %v2324, %v2540
        %v2542 = vpop.f32.mrb[0].mxu0
        %v2543 = vpop.f32.mrb[0].mxu0
        %v2544 = vadd.f32 %v2324, %v2543
        %v2545 = vpop.f32.mrb[0].mxu0
        %2546 = vmatprep.mubr.bf16.mxu0 0
        %2547 = vmatmul.mubr.bf16.gmra.mrb[0].mxu0 %v2388
        %v2548 = vpop.f32.mrb[0].mxu0
        %v2549 = vadd.f32 %v2324, %v2548
        %v2550 = vpop.f32.mrb[0].mxu0
        %v2551 = vpop.f32.mrb[0].mxu0
        %v2552 = vadd.f32 %v2324, %v2551
        %v2553 = vpop.f32.mrb[0].mxu0
        %2554 = vdwg.mxu0
        %v2555 = vmax.f32 %v2429, 0.0
        %v2556 = vmax.f32 %v2432, 0.0
        %v2557 = vmax.f32 %v2437, 0.0
        %v2558 = vmax.f32 %v2440, 0.0
        %v2559 = vmax.f32 %v2445, 0.0
        %v2560 = vmax.f32 %v2448, 0.0
        %v2561 = vmax.f32 %v2453, 0.0
        %v2562 = vmax.f32 %v2456, 0.0
        %v2563 = vmax.f32 %v2461, 0.0
        %v2564 = vmax.f32 %v2464, 0.0
        %v2565 = vmax.f32 %v2469, 0.0
        %v2566 = vmax.f32 %v2472, 0.0
        %v2567 = vmax.f32 %v2477, 0.0
        %v2568 = vmax.f32 %v2480, 0.0
        %v2569 = vmax.f32 %v2485, 0.0
        %v2570 = vmax.f32 %v2488, 0.0
        %v2571 = vmax.f32 %v2493, 0.0
        %v2572 = vmax.f32 %v2496, 0.0
        %v2573 = vmax.f32 %v2501, 0.0
        %v2574 = vmax.f32 %v2504, 0.0
        %v2575 = vmax.f32 %v2509, 0.0
        %v2576 = vmax.f32 %v2512, 0.0
        %v2577 = vmax.f32 %v2517, 0.0
        %v2578 = vmax.f32 %v2520, 0.0
        %v2579 = vmax.f32 %v2525, 0.0
        %v2580 = vmax.f32 %v2528, 0.0
        %v2581 = vmax.f32 %v2533, 0.0
        %v2582 = vmax.f32 %v2536, 0.0
        %v2583 = vmax.f32 %v2541, 0.0
        %v2584 = vmax.f32 %v2544, 0.0
        %v2585 = vmax.f32 %v2549, 0.0
        %v2586 = vmax.f32 %v2552, 0.0
        %vm2587 = vcmask 60416
        %2588 = vst.msk [vmem:[#allocation4] sm:$0xf] %vm2587, 0
        %2589 = vst.msk [vmem:[#allocation4 + $0x4] sm:$0xf] %vm2587, 0
        %vm2590 = vcmask 57344
        %2591 = vst.msk [vmem:[#allocation4 + $0x8] sm:$0x1] %vm2590, 0
        %s2592 = scalar_lea.vmem [#allocation4], 204
        %2593 = vst.msk [vmem:[%s2592] sm:$0xf] %vm2587, 0
        %2594 = vst.msk [vmem:[%s2592 + $0x4] sm:$0xf] %vm2587, 0
        %2595 = vst.msk [vmem:[%s2592 + $0x8] sm:$0x1] %vm2590, 0
        %vm2596 = vcmask 57344
        %vm2597 = vmand %vm2596, %vm234
        %v2598 = vld [vmem:[#allocation4] sm:$0x1]
        %v2599 = vsel %vm2597, 0, %v2598
        %2600 = vst [vmem:[#allocation4] sm:$0x1] %v2599
        %v2601 = vld [vmem:[#allocation4 + $0xc] sm:$0x1]
        %v2602 = vsel %vm2597, 0, %v2601
        %2603 = vst [vmem:[#allocation4 + $0xc] sm:$0x1] %v2602
        %v2604 = vld [vmem:[#allocation4 + $0x18] sm:$0x1]
        %v2605 = vsel %vm2597, 0, %v2604
        %2606 = vst [vmem:[#allocation4 + $0x18] sm:$0x1] %v2605
        %v2607 = vld [vmem:[#allocation4 + $0x24] sm:$0x1]
        %v2608 = vsel %vm2597, 0, %v2607
        %2609 = vst [vmem:[#allocation4 + $0x24] sm:$0x1] %v2608
        %v2610 = vld [vmem:[#allocation4 + $0x30] sm:$0x1]
        %v2611 = vsel %vm2597, 0, %v2610
        %2612 = vst [vmem:[#allocation4 + $0x30] sm:$0x1] %v2611
        %v2613 = vld [vmem:[#allocation4 + $0x3c] sm:$0x1]
        %v2614 = vsel %vm2597, 0, %v2613
        %2615 = vst [vmem:[#allocation4 + $0x3c] sm:$0x1] %v2614
        %v2616 = vld [vmem:[#allocation4 + $0x48] sm:$0x1]
        %v2617 = vsel %vm2597, 0, %v2616
        %2618 = vst [vmem:[#allocation4 + $0x48] sm:$0x1] %v2617
        %v2619 = vld [vmem:[#allocation4 + $0x54] sm:$0x1]
        %v2620 = vsel %vm2597, 0, %v2619
        %2621 = vst [vmem:[#allocation4 + $0x54] sm:$0x1] %v2620
        %v2622 = vld [vmem:[#allocation4 + $0x60] sm:$0x1]
        %v2623 = vsel %vm2597, 0, %v2622
        %2624 = vst [vmem:[#allocation4 + $0x60] sm:$0x1] %v2623
        %v2625 = vld [vmem:[#allocation4 + $0x6c] sm:$0x1]
        %v2626 = vsel %vm2597, 0, %v2625
        %2627 = vst [vmem:[#allocation4 + $0x6c] sm:$0x1] %v2626
        %v2628 = vld [vmem:[#allocation4 + $0x78] sm:$0x1]
        %v2629 = vsel %vm2597, 0, %v2628
        %2630 = vst [vmem:[#allocation4 + $0x78] sm:$0x1] %v2629
        %v2631 = vld [vmem:[#allocation4 + $0x84] sm:$0x1]
        %v2632 = vsel %vm2597, 0, %v2631
        %2633 = vst [vmem:[#allocation4 + $0x84] sm:$0x1] %v2632
        %v2634 = vld [vmem:[#allocation4 + $0x90] sm:$0x1]
        %v2635 = vsel %vm2597, 0, %v2634
        %2636 = vst [vmem:[#allocation4 + $0x90] sm:$0x1] %v2635
        %v2637 = vld [vmem:[#allocation4 + $0x9c] sm:$0x1]
        %v2638 = vsel %vm2597, 0, %v2637
        %2639 = vst [vmem:[#allocation4 + $0x9c] sm:$0x1] %v2638
        %v2640 = vld [vmem:[#allocation4 + $0xa8] sm:$0x1]
        %v2641 = vsel %vm2597, 0, %v2640
        %2642 = vst [vmem:[#allocation4 + $0xa8] sm:$0x1] %v2641
        %v2643 = vld [vmem:[#allocation4 + $0xb4] sm:$0x1]
        %v2644 = vsel %vm2597, 0, %v2643
        %2645 = vst [vmem:[#allocation4 + $0xb4] sm:$0x1] %v2644
        %v2646 = vld [vmem:[#allocation4 + $0xc0] sm:$0x1]
        %v2647 = vsel %vm2597, 0, %v2646
        %2648 = vst [vmem:[#allocation4 + $0xc0] sm:$0x1] %v2647
        %v2649 = vld [vmem:[#allocation4 + $0xcc] sm:$0x1]
        %v2650 = vsel %vm2597, 0, %v2649
        %2651 = vst [vmem:[#allocation4 + $0xcc] sm:$0x1] %v2650
        %vm2652 = vmand %vm2596, %vm290
        %v2653 = vld [vmem:[#allocation4 + $0x8] sm:$0x1]
        %v2654 = vsel %vm2652, 0, %v2653
        %2655 = vst [vmem:[#allocation4 + $0x8] sm:$0x1] %v2654
        %v2656 = vld [vmem:[#allocation4 + $0x14] sm:$0x1]
        %v2657 = vsel %vm2652, 0, %v2656
        %2658 = vst [vmem:[#allocation4 + $0x14] sm:$0x1] %v2657
        %v2659 = vld [vmem:[#allocation4 + $0x20] sm:$0x1]
        %v2660 = vsel %vm2652, 0, %v2659
        %2661 = vst [vmem:[#allocation4 + $0x20] sm:$0x1] %v2660
        %v2662 = vld [vmem:[#allocation4 + $0x2c] sm:$0x1]
        %v2663 = vsel %vm2652, 0, %v2662
        %2664 = vst [vmem:[#allocation4 + $0x2c] sm:$0x1] %v2663
        %v2665 = vld [vmem:[#allocation4 + $0x38] sm:$0x1]
        %v2666 = vsel %vm2652, 0, %v2665
        %2667 = vst [vmem:[#allocation4 + $0x38] sm:$0x1] %v2666
        %v2668 = vld [vmem:[#allocation4 + $0x44] sm:$0x1]
        %v2669 = vsel %vm2652, 0, %v2668
        %2670 = vst [vmem:[#allocation4 + $0x44] sm:$0x1] %v2669
        %v2671 = vld [vmem:[#allocation4 + $0x50] sm:$0x1]
        %v2672 = vsel %vm2652, 0, %v2671
        %2673 = vst [vmem:[#allocation4 + $0x50] sm:$0x1] %v2672
        %v2674 = vld [vmem:[#allocation4 + $0x5c] sm:$0x1]
        %v2675 = vsel %vm2652, 0, %v2674
        %2676 = vst [vmem:[#allocation4 + $0x5c] sm:$0x1] %v2675
        %v2677 = vld [vmem:[#allocation4 + $0x68] sm:$0x1]
        %v2678 = vsel %vm2652, 0, %v2677
        %2679 = vst [vmem:[#allocation4 + $0x68] sm:$0x1] %v2678
        %v2680 = vld [vmem:[#allocation4 + $0x74] sm:$0x1]
        %v2681 = vsel %vm2652, 0, %v2680
        %2682 = vst [vmem:[#allocation4 + $0x74] sm:$0x1] %v2681
        %v2683 = vld [vmem:[#allocation4 + $0x80] sm:$0x1]
        %v2684 = vsel %vm2652, 0, %v2683
        %2685 = vst [vmem:[#allocation4 + $0x80] sm:$0x1] %v2684
        %v2686 = vld [vmem:[#allocation4 + $0x8c] sm:$0x1]
        %v2687 = vsel %vm2652, 0, %v2686
        %2688 = vst [vmem:[#allocation4 + $0x8c] sm:$0x1] %v2687
        %v2689 = vld [vmem:[#allocation4 + $0x98] sm:$0x1]
        %v2690 = vsel %vm2652, 0, %v2689
        %2691 = vst [vmem:[#allocation4 + $0x98] sm:$0x1] %v2690
        %v2692 = vld [vmem:[#allocation4 + $0xa4] sm:$0x1]
        %v2693 = vsel %vm2652, 0, %v2692
        %2694 = vst [vmem:[#allocation4 + $0xa4] sm:$0x1] %v2693
        %v2695 = vld [vmem:[#allocation4 + $0xb0] sm:$0x1]
        %v2696 = vsel %vm2652, 0, %v2695
        %2697 = vst [vmem:[#allocation4 + $0xb0] sm:$0x1] %v2696
        %v2698 = vld [vmem:[#allocation4 + $0xbc] sm:$0x1]
        %v2699 = vsel %vm2652, 0, %v2698
        %2700 = vst [vmem:[#allocation4 + $0xbc] sm:$0x1] %v2699
        %v2701 = vld [vmem:[#allocation4 + $0xc8] sm:$0x1]
        %v2702 = vsel %vm2652, 0, %v2701
        %2703 = vst [vmem:[#allocation4 + $0xc8] sm:$0x1] %v2702
        %v2704 = vld [vmem:[#allocation4 + $0xd4] sm:$0x1]
        %v2705 = vsel %vm2652, 0, %v2704
        %2706 = vst [vmem:[#allocation4 + $0xd4] sm:$0x1] %v2705
        %v2707 = vpack.c.bf16 %v2556, %v2555
        %v2708 = vpack.c.bf16 %v2558, %v2557
        %v2709 = vpack.c.bf16 %v2560, %v2559
        %v2710 = vpack.c.bf16 %v2562, %v2561
        %v2711 = vpack.c.bf16 %v2564, %v2563
        %v2712 = vpack.c.bf16 %v2566, %v2565
        %v2713 = vpack.c.bf16 %v2568, %v2567
        %v2714 = vpack.c.bf16 %v2570, %v2569
        %v2715 = vpack.c.bf16 %v2572, %v2571
        %v2716 = vpack.c.bf16 %v2574, %v2573
        %v2717 = vpack.c.bf16 %v2576, %v2575
        %v2718 = vpack.c.bf16 %v2578, %v2577
        %v2719 = vpack.c.bf16 %v2580, %v2579
        %v2720 = vpack.c.bf16 %v2582, %v2581
        %v2721 = vpack.c.bf16 %v2584, %v2583
        %v2722 = vpack.c.bf16 %v2586, %v2585
        %v2739 = vunpack.c.l.b16 %v2707
        %v2740 = vunpack.c.h.b16 %v2707
        %v2741 = vunpack.c.l.b16 %v2708
        %v2742 = vunpack.c.h.b16 %v2708
        %v2743 = vunpack.c.l.b16 %v2709
        %v2744 = vunpack.c.h.b16 %v2709
        %v2745 = vunpack.c.l.b16 %v2710
        %v2746 = vunpack.c.h.b16 %v2710
        %v2747 = vunpack.c.l.b16 %v2711
        %v2748 = vunpack.c.h.b16 %v2711
        %v2749 = vunpack.c.l.b16 %v2712
        %v2750 = vunpack.c.h.b16 %v2712
        %v2751 = vunpack.c.l.b16 %v2713
        %v2752 = vunpack.c.h.b16 %v2713
        %v2753 = vunpack.c.l.b16 %v2714
        %v2754 = vunpack.c.h.b16 %v2714
        %v2755 = vunpack.c.l.b16 %v2715
        %v2756 = vunpack.c.h.b16 %v2715
        %v2757 = vunpack.c.l.b16 %v2716
        %v2758 = vunpack.c.h.b16 %v2716
        %v2759 = vunpack.c.l.b16 %v2717
        %v2760 = vunpack.c.h.b16 %v2717
        %v2761 = vunpack.c.l.b16 %v2718
        %v2762 = vunpack.c.h.b16 %v2718
        %v2763 = vunpack.c.l.b16 %v2719
        %v2764 = vunpack.c.h.b16 %v2719
        %v2765 = vunpack.c.l.b16 %v2720
        %v2766 = vunpack.c.h.b16 %v2720
        %v2767 = vunpack.c.l.b16 %v2721
        %v2768 = vunpack.c.h.b16 %v2721
        %v2769 = vunpack.c.l.b16 %v2722
        %v2770 = vunpack.c.h.b16 %v2722
        %v2771 = vpack.c.b16 %v2739, %v2739
        %v2772 = vpack.c.b16 %v2740, %v2740
        %v2773 = vpack.c.b16 %v2741, %v2741
        %v2774 = vpack.c.b16 %v2742, %v2742
        %v2775 = vpack.c.b16 %v2743, %v2743
        %v2776 = vpack.c.b16 %v2744, %v2744
        %v2777 = vpack.c.b16 %v2745, %v2745
        %v2778 = vpack.c.b16 %v2746, %v2746
        %v2779 = vpack.c.b16 %v2747, %v2747
        %v2780 = vpack.c.b16 %v2748, %v2748
        %v2781 = vpack.c.b16 %v2749, %v2749
        %v2782 = vpack.c.b16 %v2750, %v2750
        %v2783 = vpack.c.b16 %v2751, %v2751
        %v2784 = vpack.c.b16 %v2752, %v2752
        %v2785 = vpack.c.b16 %v2753, %v2753
        %v2786 = vpack.c.b16 %v2754, %v2754
        %v2787 = vpack.c.b16 %v2755, %v2755
        %v2788 = vpack.c.b16 %v2756, %v2756
        %v2789 = vpack.c.b16 %v2757, %v2757
        %v2790 = vpack.c.b16 %v2758, %v2758
        %v2791 = vpack.c.b16 %v2759, %v2759
        %v2792 = vpack.c.b16 %v2760, %v2760
        %v2793 = vpack.c.b16 %v2761, %v2761
        %v2794 = vpack.c.b16 %v2762, %v2762
        %v2795 = vpack.c.b16 %v2763, %v2763
        %v2796 = vpack.c.b16 %v2764, %v2764
        %v2797 = vpack.c.b16 %v2765, %v2765
        %v2798 = vpack.c.b16 %v2766, %v2766
        %v2799 = vpack.c.b16 %v2767, %v2767
        %v2800 = vpack.c.b16 %v2768, %v2768
        %v2801 = vpack.c.b16 %v2769, %v2769
        %v2802 = vpack.c.b16 %v2770, %v2770
        %v2804 = vshrl.u32 %v2771, 16
        %v2806 = vrot.slane %v2804, 7
        %v2807 = vshll.u32 %v2771, 16
        %v2809 = vor.u32 %v2806, %v2807
        %v2810 = vrot.slane %v2806, 4
        %v2812 = vshrl.u32 %v2772, 16
        %v2814 = vrot.slane %v2812, 7
        %v2815 = vshll.u32 %v2772, 16
        %v2817 = vor.u32 %v2814, %v2815
        %v2818 = vsel %vm475, %v2810, %v2817
        %v2819 = vrot.slane %v2814, 4
        %v2821 = vshrl.u32 %v2773, 16
        %v2823 = vrot.slane %v2821, 7
        %v2824 = vshll.u32 %v2773, 16
        %v2826 = vor.u32 %v2823, %v2824
        %v2827 = vrot.slane %v2823, 4
        %v2829 = vshrl.u32 %v2774, 16
        %v2831 = vrot.slane %v2829, 7
        %v2832 = vshll.u32 %v2774, 16
        %v2834 = vor.u32 %v2831, %v2832
        %v2835 = vsel %vm475, %v2827, %v2834
        %v2836 = vrot.slane %v2831, 4
        %v2838 = vshrl.u32 %v2775, 16
        %v2840 = vrot.slane %v2838, 7
        %v2841 = vshll.u32 %v2775, 16
        %v2843 = vor.u32 %v2840, %v2841
        %v2844 = vrot.slane %v2840, 4
        %v2846 = vshrl.u32 %v2776, 16
        %v2848 = vrot.slane %v2846, 7
        %v2849 = vshll.u32 %v2776, 16
        %v2851 = vor.u32 %v2848, %v2849
        %v2852 = vsel %vm475, %v2844, %v2851
        %v2853 = vrot.slane %v2848, 4
        %v2855 = vshrl.u32 %v2777, 16
        %v2857 = vrot.slane %v2855, 7
        %v2858 = vshll.u32 %v2777, 16
        %v2860 = vor.u32 %v2857, %v2858
        %v2861 = vrot.slane %v2857, 4
        %v2863 = vshrl.u32 %v2778, 16
        %v2865 = vrot.slane %v2863, 7
        %v2866 = vshll.u32 %v2778, 16
        %v2868 = vor.u32 %v2865, %v2866
        %v2869 = vsel %vm475, %v2861, %v2868
        %v2870 = vrot.slane %v2865, 4
        %v2872 = vshrl.u32 %v2779, 16
        %v2874 = vrot.slane %v2872, 7
        %v2875 = vshll.u32 %v2779, 16
        %v2877 = vor.u32 %v2874, %v2875
        %v2878 = vrot.slane %v2874, 4
        %v2880 = vshrl.u32 %v2780, 16
        %v2882 = vrot.slane %v2880, 7
        %v2883 = vshll.u32 %v2780, 16
        %v2885 = vor.u32 %v2882, %v2883
        %v2886 = vsel %vm475, %v2878, %v2885
        %v2887 = vrot.slane %v2882, 4
        %v2889 = vshrl.u32 %v2781, 16
        %v2891 = vrot.slane %v2889, 7
        %v2892 = vshll.u32 %v2781, 16
        %v2894 = vor.u32 %v2891, %v2892
        %v2895 = vrot.slane %v2891, 4
        %v2897 = vshrl.u32 %v2782, 16
        %v2899 = vrot.slane %v2897, 7
        %v2900 = vshll.u32 %v2782, 16
        %v2902 = vor.u32 %v2899, %v2900
        %v2903 = vsel %vm475, %v2895, %v2902
        %v2904 = vrot.slane %v2899, 4
        %v2906 = vshrl.u32 %v2783, 16
        %v2908 = vrot.slane %v2906, 7
        %v2909 = vshll.u32 %v2783, 16
        %v2911 = vor.u32 %v2908, %v2909
        %v2912 = vrot.slane %v2908, 4
        %v2914 = vshrl.u32 %v2784, 16
        %v2916 = vrot.slane %v2914, 7
        %v2917 = vshll.u32 %v2784, 16
        %v2919 = vor.u32 %v2916, %v2917
        %v2920 = vsel %vm475, %v2912, %v2919
        %v2921 = vrot.slane %v2916, 4
        %v2923 = vshrl.u32 %v2785, 16
        %v2925 = vrot.slane %v2923, 7
        %v2926 = vshll.u32 %v2785, 16
        %v2928 = vor.u32 %v2925, %v2926
        %v2929 = vrot.slane %v2925, 4
        %v2931 = vshrl.u32 %v2786, 16
        %v2933 = vrot.slane %v2931, 7
        %v2934 = vshll.u32 %v2786, 16
        %v2936 = vor.u32 %v2933, %v2934
        %v2937 = vsel %vm475, %v2929, %v2936
        %v2938 = vrot.slane %v2933, 4
        %v2940 = vshrl.u32 %v2787, 16
        %v2942 = vrot.slane %v2940, 7
        %v2943 = vshll.u32 %v2787, 16
        %v2945 = vor.u32 %v2942, %v2943
        %v2946 = vrot.slane %v2942, 4
        %v2948 = vshrl.u32 %v2788, 16
        %v2950 = vrot.slane %v2948, 7
        %v2951 = vshll.u32 %v2788, 16
        %v2953 = vor.u32 %v2950, %v2951
        %v2954 = vsel %vm475, %v2946, %v2953
        %v2955 = vrot.slane %v2950, 4
        %v2957 = vshrl.u32 %v2789, 16
        %v2959 = vrot.slane %v2957, 7
        %v2960 = vshll.u32 %v2789, 16
        %v2962 = vor.u32 %v2959, %v2960
        %v2963 = vrot.slane %v2959, 4
        %v2965 = vshrl.u32 %v2790, 16
        %v2967 = vrot.slane %v2965, 7
        %v2968 = vshll.u32 %v2790, 16
        %v2970 = vor.u32 %v2967, %v2968
        %v2971 = vsel %vm475, %v2963, %v2970
        %v2972 = vrot.slane %v2967, 4
        %v2974 = vshrl.u32 %v2791, 16
        %v2976 = vrot.slane %v2974, 7
        %v2977 = vshll.u32 %v2791, 16
        %v2979 = vor.u32 %v2976, %v2977
        %v2980 = vrot.slane %v2976, 4
        %v2982 = vshrl.u32 %v2792, 16
        %v2984 = vrot.slane %v2982, 7
        %v2985 = vshll.u32 %v2792, 16
        %v2987 = vor.u32 %v2984, %v2985
        %v2988 = vsel %vm475, %v2980, %v2987
        %v2989 = vrot.slane %v2984, 4
        %v2991 = vshrl.u32 %v2793, 16
        %v2993 = vrot.slane %v2991, 7
        %v2994 = vshll.u32 %v2793, 16
        %v2996 = vor.u32 %v2993, %v2994
        %v2997 = vrot.slane %v2993, 4
        %v2999 = vshrl.u32 %v2794, 16
        %v3001 = vrot.slane %v2999, 7
        %v3002 = vshll.u32 %v2794, 16
        %v3004 = vor.u32 %v3001, %v3002
        %v3005 = vsel %vm475, %v2997, %v3004
        %v3006 = vrot.slane %v3001, 4
        %v3008 = vshrl.u32 %v2795, 16
        %v3010 = vrot.slane %v3008, 7
        %v3011 = vshll.u32 %v2795, 16
        %v3013 = vor.u32 %v3010, %v3011
        %v3014 = vrot.slane %v3010, 4
        %v3016 = vshrl.u32 %v2796, 16
        %v3018 = vrot.slane %v3016, 7
        %v3019 = vshll.u32 %v2796, 16
        %v3021 = vor.u32 %v3018, %v3019
        %v3022 = vsel %vm475, %v3014, %v3021
        %v3023 = vrot.slane %v3018, 4
        %v3025 = vshrl.u32 %v2797, 16
        %v3027 = vrot.slane %v3025, 7
        %v3028 = vshll.u32 %v2797, 16
        %v3030 = vor.u32 %v3027, %v3028
        %v3031 = vrot.slane %v3027, 4
        %v3033 = vshrl.u32 %v2798, 16
        %v3035 = vrot.slane %v3033, 7
        %v3036 = vshll.u32 %v2798, 16
        %v3038 = vor.u32 %v3035, %v3036
        %v3039 = vsel %vm475, %v3031, %v3038
        %v3040 = vrot.slane %v3035, 4
        %v3042 = vshrl.u32 %v2799, 16
        %v3044 = vrot.slane %v3042, 7
        %v3045 = vshll.u32 %v2799, 16
        %v3047 = vor.u32 %v3044, %v3045
        %v3048 = vrot.slane %v3044, 4
        %v3050 = vshrl.u32 %v2800, 16
        %v3052 = vrot.slane %v3050, 7
        %v3053 = vshll.u32 %v2800, 16
        %v3055 = vor.u32 %v3052, %v3053
        %v3056 = vsel %vm475, %v3048, %v3055
        %v3057 = vrot.slane %v3052, 4
        %v3059 = vshrl.u32 %v2801, 16
        %v3061 = vrot.slane %v3059, 7
        %v3062 = vshll.u32 %v2801, 16
        %v3064 = vor.u32 %v3061, %v3062
        %v3065 = vrot.slane %v3061, 4
        %v3067 = vshrl.u32 %v2802, 16
        %v3069 = vrot.slane %v3067, 7
        %v3070 = vshll.u32 %v2802, 16
        %v3072 = vor.u32 %v3069, %v3070
        %v3073 = vsel %vm475, %v3065, %v3072
        %v3074 = vrot.slane %v3069, 4
        %s3123 = scalar_lea.vmem [#allocation4], 12
        %vm3124 = vcmask 60416
        %vm3125 = vmand %vm3124, %vm290
        %v3126 = vld [vmem:[%s3123] sm:$0xf]
        %v3127 = vsel %vm3125, %v2809, %v3126
        %3128 = vst [vmem:[%s3123] sm:$0xf] %v3127
        %3129 = vst.msk [vmem:[%s3123 + $0x4] sm:$0xf] %vm2587, %v2818
        %v3130 = vld [vmem:[%s3123 + $0x8] sm:$0x1]
        %v3131 = vsel %vm2597, %v2819, %v3130
        %3132 = vst [vmem:[%s3123 + $0x8] sm:$0x1] %v3131
        %v3133 = vld [vmem:[%s3123 + $0xc] sm:$0xf]
        %v3134 = vsel %vm3125, %v2826, %v3133
        %3135 = vst [vmem:[%s3123 + $0xc] sm:$0xf] %v3134
        %3136 = vst.msk [vmem:[%s3123 + $0x10] sm:$0xf] %vm2587, %v2835
        %v3137 = vld [vmem:[%s3123 + $0x14] sm:$0x1]
        %v3138 = vsel %vm2597, %v2836, %v3137
        %3139 = vst [vmem:[%s3123 + $0x14] sm:$0x1] %v3138
        %v3140 = vld [vmem:[%s3123 + $0x18] sm:$0xf]
        %v3141 = vsel %vm3125, %v2843, %v3140
        %3142 = vst [vmem:[%s3123 + $0x18] sm:$0xf] %v3141
        %3143 = vst.msk [vmem:[%s3123 + $0x1c] sm:$0xf] %vm2587, %v2852
        %v3144 = vld [vmem:[%s3123 + $0x20] sm:$0x1]
        %v3145 = vsel %vm2597, %v2853, %v3144
        %3146 = vst [vmem:[%s3123 + $0x20] sm:$0x1] %v3145
        %v3147 = vld [vmem:[%s3123 + $0x24] sm:$0xf]
        %v3148 = vsel %vm3125, %v2860, %v3147
        %3149 = vst [vmem:[%s3123 + $0x24] sm:$0xf] %v3148
        %3150 = vst.msk [vmem:[%s3123 + $0x28] sm:$0xf] %vm2587, %v2869
        %v3151 = vld [vmem:[%s3123 + $0x2c] sm:$0x1]
        %v3152 = vsel %vm2597, %v2870, %v3151
        %3153 = vst [vmem:[%s3123 + $0x2c] sm:$0x1] %v3152
        %v3154 = vld [vmem:[%s3123 + $0x30] sm:$0xf]
        %v3155 = vsel %vm3125, %v2877, %v3154
        %3156 = vst [vmem:[%s3123 + $0x30] sm:$0xf] %v3155
        %3157 = vst.msk [vmem:[%s3123 + $0x34] sm:$0xf] %vm2587, %v2886
        %v3158 = vld [vmem:[%s3123 + $0x38] sm:$0x1]
        %v3159 = vsel %vm2597, %v2887, %v3158
        %3160 = vst [vmem:[%s3123 + $0x38] sm:$0x1] %v3159
        %v3161 = vld [vmem:[%s3123 + $0x3c] sm:$0xf]
        %v3162 = vsel %vm3125, %v2894, %v3161
        %3163 = vst [vmem:[%s3123 + $0x3c] sm:$0xf] %v3162
        %3164 = vst.msk [vmem:[%s3123 + $0x40] sm:$0xf] %vm2587, %v2903
        %v3165 = vld [vmem:[%s3123 + $0x44] sm:$0x1]
        %v3166 = vsel %vm2597, %v2904, %v3165
        %3167 = vst [vmem:[%s3123 + $0x44] sm:$0x1] %v3166
        %v3168 = vld [vmem:[%s3123 + $0x48] sm:$0xf]
        %v3169 = vsel %vm3125, %v2911, %v3168
        %3170 = vst [vmem:[%s3123 + $0x48] sm:$0xf] %v3169
        %3171 = vst.msk [vmem:[%s3123 + $0x4c] sm:$0xf] %vm2587, %v2920
        %v3172 = vld [vmem:[%s3123 + $0x50] sm:$0x1]
        %v3173 = vsel %vm2597, %v2921, %v3172
        %3174 = vst [vmem:[%s3123 + $0x50] sm:$0x1] %v3173
        %v3175 = vld [vmem:[%s3123 + $0x54] sm:$0xf]
        %v3176 = vsel %vm3125, %v2928, %v3175
        %3177 = vst [vmem:[%s3123 + $0x54] sm:$0xf] %v3176
        %3178 = vst.msk [vmem:[%s3123 + $0x58] sm:$0xf] %vm2587, %v2937
        %v3179 = vld [vmem:[%s3123 + $0x5c] sm:$0x1]
        %v3180 = vsel %vm2597, %v2938, %v3179
        %3181 = vst [vmem:[%s3123 + $0x5c] sm:$0x1] %v3180
        %v3182 = vld [vmem:[%s3123 + $0x60] sm:$0xf]
        %v3183 = vsel %vm3125, %v2945, %v3182
        %3184 = vst [vmem:[%s3123 + $0x60] sm:$0xf] %v3183
        %3185 = vst.msk [vmem:[%s3123 + $0x64] sm:$0xf] %vm2587, %v2954
        %v3186 = vld [vmem:[%s3123 + $0x68] sm:$0x1]
        %v3187 = vsel %vm2597, %v2955, %v3186
        %3188 = vst [vmem:[%s3123 + $0x68] sm:$0x1] %v3187
        %v3189 = vld [vmem:[%s3123 + $0x6c] sm:$0xf]
        %v3190 = vsel %vm3125, %v2962, %v3189
        %3191 = vst [vmem:[%s3123 + $0x6c] sm:$0xf] %v3190
        %3192 = vst.msk [vmem:[%s3123 + $0x70] sm:$0xf] %vm2587, %v2971
        %v3193 = vld [vmem:[%s3123 + $0x74] sm:$0x1]
        %v3194 = vsel %vm2597, %v2972, %v3193
        %3195 = vst [vmem:[%s3123 + $0x74] sm:$0x1] %v3194
        %v3196 = vld [vmem:[%s3123 + $0x78] sm:$0xf]
        %v3197 = vsel %vm3125, %v2979, %v3196
        %3198 = vst [vmem:[%s3123 + $0x78] sm:$0xf] %v3197
        %3199 = vst.msk [vmem:[%s3123 + $0x7c] sm:$0xf] %vm2587, %v2988
        %v3200 = vld [vmem:[%s3123 + $0x80] sm:$0x1]
        %v3201 = vsel %vm2597, %v2989, %v3200
        %3202 = vst [vmem:[%s3123 + $0x80] sm:$0x1] %v3201
        %v3203 = vld [vmem:[%s3123 + $0x84] sm:$0xf]
        %v3204 = vsel %vm3125, %v2996, %v3203
        %3205 = vst [vmem:[%s3123 + $0x84] sm:$0xf] %v3204
        %3206 = vst.msk [vmem:[%s3123 + $0x88] sm:$0xf] %vm2587, %v3005
        %v3207 = vld [vmem:[%s3123 + $0x8c] sm:$0x1]
        %v3208 = vsel %vm2597, %v3006, %v3207
        %3209 = vst [vmem:[%s3123 + $0x8c] sm:$0x1] %v3208
        %v3210 = vld [vmem:[%s3123 + $0x90] sm:$0xf]
        %v3211 = vsel %vm3125, %v3013, %v3210
        %3212 = vst [vmem:[%s3123 + $0x90] sm:$0xf] %v3211
        %3213 = vst.msk [vmem:[%s3123 + $0x94] sm:$0xf] %vm2587, %v3022
        %v3214 = vld [vmem:[%s3123 + $0x98] sm:$0x1]
        %v3215 = vsel %vm2597, %v3023, %v3214
        %3216 = vst [vmem:[%s3123 + $0x98] sm:$0x1] %v3215
        %v3217 = vld [vmem:[%s3123 + $0x9c] sm:$0xf]
        %v3218 = vsel %vm3125, %v3030, %v3217
        %3219 = vst [vmem:[%s3123 + $0x9c] sm:$0xf] %v3218
        %3220 = vst.msk [vmem:[%s3123 + $0xa0] sm:$0xf] %vm2587, %v3039
        %v3221 = vld [vmem:[%s3123 + $0xa4] sm:$0x1]
        %v3222 = vsel %vm2597, %v3040, %v3221
        %3223 = vst [vmem:[%s3123 + $0xa4] sm:$0x1] %v3222
        %v3224 = vld [vmem:[%s3123 + $0xa8] sm:$0xf]
        %v3225 = vsel %vm3125, %v3047, %v3224
        %3226 = vst [vmem:[%s3123 + $0xa8] sm:$0xf] %v3225
        %3227 = vst.msk [vmem:[%s3123 + $0xac] sm:$0xf] %vm2587, %v3056
        %v3228 = vld [vmem:[%s3123 + $0xb0] sm:$0x1]
        %v3229 = vsel %vm2597, %v3057, %v3228
        %3230 = vst [vmem:[%s3123 + $0xb0] sm:$0x1] %v3229
        %v3231 = vld [vmem:[%s3123 + $0xb4] sm:$0xf]
        %v3232 = vsel %vm3125, %v3064, %v3231
        %3233 = vst [vmem:[%s3123 + $0xb4] sm:$0xf] %v3232
        %3234 = vst.msk [vmem:[%s3123 + $0xb8] sm:$0xf] %vm2587, %v3073
        %v3235 = vld [vmem:[%s3123 + $0xbc] sm:$0x1]
        %v3236 = vsel %vm2597, %v3074, %v3235
        %3237 = vst [vmem:[%s3123 + $0xbc] sm:$0x1] %v3236
        %v3238 = vld [vmem:[#allocation4] sm:$0xf]
        %v3239 = vld [vmem:[#allocation4 + $0x4] sm:$0xf]
        %v3240 = vld [vmem:[#allocation4 + $0x8] sm:$0x1]
        %v3241 = vld [vmem:[#allocation4 + $0xc] sm:$0xf]
        %v3242 = vld [vmem:[#allocation4 + $0x10] sm:$0xf]
        %v3243 = vld [vmem:[#allocation4 + $0x14] sm:$0x1]
        %v3244 = vld [vmem:[#allocation4 + $0x18] sm:$0xf]
        %v3245 = vld [vmem:[#allocation4 + $0x1c] sm:$0xf]
        %v3246 = vld [vmem:[#allocation4 + $0x20] sm:$0x1]
        %v3247 = vld [vmem:[#allocation4 + $0x24] sm:$0xf]
        %v3248 = vld [vmem:[#allocation4 + $0x28] sm:$0xf]
        %v3249 = vld [vmem:[#allocation4 + $0x2c] sm:$0x1]
        %v3250 = vld [vmem:[#allocation4 + $0x30] sm:$0xf]
        %v3251 = vld [vmem:[#allocation4 + $0x34] sm:$0xf]
        %v3252 = vld [vmem:[#allocation4 + $0x38] sm:$0x1]
        %v3253 = vld [vmem:[#allocation4 + $0x3c] sm:$0xf]
        %v3254 = vld [vmem:[#allocation4 + $0x40] sm:$0xf]
        %v3255 = vld [vmem:[#allocation4 + $0x44] sm:$0x1]
        %v3256 = vld [vmem:[#allocation4 + $0x48] sm:$0xf]
        %v3257 = vld [vmem:[#allocation4 + $0x4c] sm:$0xf]
        %v3258 = vld [vmem:[#allocation4 + $0x50] sm:$0x1]
        %v3259 = vld [vmem:[#allocation4 + $0x54] sm:$0xf]
        %v3260 = vld [vmem:[#allocation4 + $0x58] sm:$0xf]
        %v3261 = vld [vmem:[#allocation4 + $0x5c] sm:$0x1]
        %v3262 = vld [vmem:[#allocation4 + $0x60] sm:$0xf]
        %v3263 = vld [vmem:[#allocation4 + $0x64] sm:$0xf]
        %v3264 = vld [vmem:[#allocation4 + $0x68] sm:$0x1]
        %v3265 = vld [vmem:[#allocation4 + $0x6c] sm:$0xf]
        %v3266 = vld [vmem:[#allocation4 + $0x70] sm:$0xf]
        %v3267 = vld [vmem:[#allocation4 + $0x74] sm:$0x1]
        %v3268 = vld [vmem:[#allocation4 + $0x78] sm:$0xf]
        %v3269 = vld [vmem:[#allocation4 + $0x7c] sm:$0xf]
        %v3270 = vld [vmem:[#allocation4 + $0x80] sm:$0x1]
        %v3271 = vld [vmem:[#allocation4 + $0x84] sm:$0xf]
        %v3272 = vld [vmem:[#allocation4 + $0x88] sm:$0xf]
        %v3273 = vld [vmem:[#allocation4 + $0x8c] sm:$0x1]
        %v3274 = vld [vmem:[#allocation4 + $0x90] sm:$0xf]
        %v3275 = vld [vmem:[#allocation4 + $0x94] sm:$0xf]
        %v3276 = vld [vmem:[#allocation4 + $0x98] sm:$0x1]
        %v3277 = vld [vmem:[#allocation4 + $0x9c] sm:$0xf]
        %v3278 = vld [vmem:[#allocation4 + $0xa0] sm:$0xf]
        %v3279 = vld [vmem:[#allocation4 + $0xa4] sm:$0x1]
        %v3280 = vld [vmem:[#allocation4 + $0xa8] sm:$0xf]
        %v3281 = vld [vmem:[#allocation4 + $0xac] sm:$0xf]
        %v3282 = vld [vmem:[#allocation4 + $0xb0] sm:$0x1]
        %v3283 = vld [vmem:[#allocation4 + $0xb4] sm:$0xf]
        %v3284 = vld [vmem:[#allocation4 + $0xb8] sm:$0xf]
        %v3285 = vld [vmem:[#allocation4 + $0xbc] sm:$0x1]
        %v3286 = vld [vmem:[#allocation4 + $0xc0] sm:$0xf]
        %v3287 = vld [vmem:[#allocation4 + $0xc4] sm:$0xf]
        %v3288 = vld [vmem:[#allocation4 + $0xc8] sm:$0x1]
        %v3289 = vld [vmem:[#allocation4 + $0xcc] sm:$0xf]
        %v3290 = vld [vmem:[#allocation4 + $0xd0] sm:$0xf]
        %v3291 = vld [vmem:[#allocation4 + $0xd4] sm:$0x1]
        %v3324 = vunpack.c.l.b16 %v3238
        %v3325 = vunpack.c.l.b16 %v3239
        %v3326 = vunpack.c.l.b16 %v3241
        %v3327 = vunpack.c.l.b16 %v3242
        %v3328 = vunpack.c.l.b16 %v3244
        %v3329 = vunpack.c.l.b16 %v3245
        %v3330 = vunpack.c.l.b16 %v3247
        %v3331 = vunpack.c.l.b16 %v3248
        %v3332 = vunpack.c.l.b16 %v3250
        %v3333 = vunpack.c.l.b16 %v3251
        %v3334 = vunpack.c.l.b16 %v3253
        %v3335 = vunpack.c.l.b16 %v3254
        %v3336 = vunpack.c.l.b16 %v3256
        %v3337 = vunpack.c.l.b16 %v3257
        %v3338 = vunpack.c.l.b16 %v3259
        %v3339 = vunpack.c.l.b16 %v3260
        %v3340 = vunpack.c.l.b16 %v3262
        %v3341 = vunpack.c.l.b16 %v3263
        %v3342 = vunpack.c.l.b16 %v3265
        %v3343 = vunpack.c.l.b16 %v3266
        %v3344 = vunpack.c.l.b16 %v3268
        %v3345 = vunpack.c.l.b16 %v3269
        %v3346 = vunpack.c.l.b16 %v3271
        %v3347 = vunpack.c.l.b16 %v3272
        %v3348 = vunpack.c.l.b16 %v3274
        %v3349 = vunpack.c.l.b16 %v3275
        %v3350 = vunpack.c.l.b16 %v3277
        %v3351 = vunpack.c.l.b16 %v3278
        %v3352 = vunpack.c.l.b16 %v3280
        %v3353 = vunpack.c.l.b16 %v3281
        %v3354 = vunpack.c.l.b16 %v3283
        %v3355 = vunpack.c.l.b16 %v3284
        %v3356 = vpack.c.b16 %v3325, %v3324
        %v3357 = vpack.c.b16 %v3327, %v3326
        %v3358 = vpack.c.b16 %v3329, %v3328
        %v3359 = vpack.c.b16 %v3331, %v3330
        %v3360 = vpack.c.b16 %v3333, %v3332
        %v3361 = vpack.c.b16 %v3335, %v3334
        %v3362 = vpack.c.b16 %v3337, %v3336
        %v3363 = vpack.c.b16 %v3339, %v3338
        %v3364 = vpack.c.b16 %v3341, %v3340
        %v3365 = vpack.c.b16 %v3343, %v3342
        %v3366 = vpack.c.b16 %v3345, %v3344
        %v3367 = vpack.c.b16 %v3347, %v3346
        %v3368 = vpack.c.b16 %v3349, %v3348
        %v3369 = vpack.c.b16 %v3351, %v3350
        %v3370 = vpack.c.b16 %v3353, %v3352
        %v3371 = vpack.c.b16 %v3355, %v3354
        %vm3388 = vcmask 64512
        %3389 = vst.msk [vmem:[#allocation5] sm:$0xff] %vm3388, %v3356
        %3390 = vst.msk [vmem:[#allocation5 + $0x8] sm:$0xff] %vm3388, %v3357
        %3391 = vst.msk [vmem:[#allocation5 + $0x10] sm:$0xff] %vm3388, %v3358
        %3392 = vst.msk [vmem:[#allocation5 + $0x18] sm:$0xff] %vm3388, %v3359
        %3393 = vst.msk [vmem:[#allocation5 + $0x20] sm:$0xff] %vm3388, %v3360
        %3394 = vst.msk [vmem:[#allocation5 + $0x28] sm:$0xff] %vm3388, %v3361
        %3395 = vst.msk [vmem:[#allocation5 + $0x30] sm:$0xff] %vm3388, %v3362
        %3396 = vst.msk [vmem:[#allocation5 + $0x38] sm:$0xff] %vm3388, %v3363
        %3397 = vst.msk [vmem:[#allocation5 + $0x40] sm:$0xff] %vm3388, %v3364
        %3398 = vst.msk [vmem:[#allocation5 + $0x48] sm:$0xff] %vm3388, %v3365
        %3399 = vst.msk [vmem:[#allocation5 + $0x50] sm:$0xff] %vm3388, %v3366
        %3400 = vst.msk [vmem:[#allocation5 + $0x58] sm:$0xff] %vm3388, %v3367
        %3401 = vst.msk [vmem:[#allocation5 + $0x60] sm:$0xff] %vm3388, %v3368
        %3402 = vst.msk [vmem:[#allocation5 + $0x68] sm:$0xff] %vm3388, %v3369
        %3403 = vst.msk [vmem:[#allocation5 + $0x70] sm:$0xff] %vm3388, %v3370
        %3404 = vst.msk [vmem:[#allocation5 + $0x78] sm:$0xff] %vm3388, %v3371
        %v3406 = vshrl.u32 %v3238, 16
        %v3408 = vrot.slane %v3406, 4
        %v3409 = vshll.u32 %v3238, 16
        %v3411 = vrot.slane %v3409, 5
        %v3412 = vor.u32 %v3408, %v3411
        %v3413 = vrot.slane %v3412, 4
        %v3415 = vshll.u32 %v3239, 16
        %v3417 = vrot.slane %v3415, 5
        %v3418 = vsel %vm1080, %v3413, %v3417
        %v3419 = vshrl.u32 %v3239, 16
        %v3421 = vrot.slane %v3419, 4
        %v3422 = vor.u32 %v3421, %v3417
        %v3423 = vrot.slane %v3422, 4
        %v3425 = vshll.u32 %v3240, 16
        %v3427 = vrot.slane %v3425, 5
        %v3428 = vsel %vm1080, %v3423, %v3427
        %v3430 = vshrl.u32 %v3241, 16
        %v3432 = vrot.slane %v3430, 4
        %v3433 = vshll.u32 %v3241, 16
        %v3435 = vrot.slane %v3433, 5
        %v3436 = vor.u32 %v3432, %v3435
        %v3437 = vrot.slane %v3436, 4
        %v3439 = vshll.u32 %v3242, 16
        %v3441 = vrot.slane %v3439, 5
        %v3442 = vsel %vm1080, %v3437, %v3441
        %v3443 = vshrl.u32 %v3242, 16
        %v3445 = vrot.slane %v3443, 4
        %v3446 = vor.u32 %v3445, %v3441
        %v3447 = vrot.slane %v3446, 4
        %v3449 = vshll.u32 %v3243, 16
        %v3451 = vrot.slane %v3449, 5
        %v3452 = vsel %vm1080, %v3447, %v3451
        %v3454 = vshrl.u32 %v3244, 16
        %v3456 = vrot.slane %v3454, 4
        %v3457 = vshll.u32 %v3244, 16
        %v3459 = vrot.slane %v3457, 5
        %v3460 = vor.u32 %v3456, %v3459
        %v3461 = vrot.slane %v3460, 4
        %v3463 = vshll.u32 %v3245, 16
        %v3465 = vrot.slane %v3463, 5
        %v3466 = vsel %vm1080, %v3461, %v3465
        %v3467 = vshrl.u32 %v3245, 16
        %v3469 = vrot.slane %v3467, 4
        %v3470 = vor.u32 %v3469, %v3465
        %v3471 = vrot.slane %v3470, 4
        %v3473 = vshll.u32 %v3246, 16
        %v3475 = vrot.slane %v3473, 5
        %v3476 = vsel %vm1080, %v3471, %v3475
        %v3478 = vshrl.u32 %v3247, 16
        %v3480 = vrot.slane %v3478, 4
        %v3481 = vshll.u32 %v3247, 16
        %v3483 = vrot.slane %v3481, 5
        %v3484 = vor.u32 %v3480, %v3483
        %v3485 = vrot.slane %v3484, 4
        %v3487 = vshll.u32 %v3248, 16
        %v3489 = vrot.slane %v3487, 5
        %v3490 = vsel %vm1080, %v3485, %v3489
        %v3491 = vshrl.u32 %v3248, 16
        %v3493 = vrot.slane %v3491, 4
        %v3494 = vor.u32 %v3493, %v3489
        %v3495 = vrot.slane %v3494, 4
        %v3497 = vshll.u32 %v3249, 16
        %v3499 = vrot.slane %v3497, 5
        %v3500 = vsel %vm1080, %v3495, %v3499
        %v3502 = vshrl.u32 %v3250, 16
        %v3504 = vrot.slane %v3502, 4
        %v3505 = vshll.u32 %v3250, 16
        %v3507 = vrot.slane %v3505, 5
        %v3508 = vor.u32 %v3504, %v3507
        %v3509 = vrot.slane %v3508, 4
        %v3511 = vshll.u32 %v3251, 16
        %v3513 = vrot.slane %v3511, 5
        %v3514 = vsel %vm1080, %v3509, %v3513
        %v3515 = vshrl.u32 %v3251, 16
        %v3517 = vrot.slane %v3515, 4
        %v3518 = vor.u32 %v3517, %v3513
        %v3519 = vrot.slane %v3518, 4
        %v3521 = vshll.u32 %v3252, 16
        %v3523 = vrot.slane %v3521, 5
        %v3524 = vsel %vm1080, %v3519, %v3523
        %v3526 = vshrl.u32 %v3253, 16
        %v3528 = vrot.slane %v3526, 4
        %v3529 = vshll.u32 %v3253, 16
        %v3531 = vrot.slane %v3529, 5
        %v3532 = vor.u32 %v3528, %v3531
        %v3533 = vrot.slane %v3532, 4
        %v3535 = vshll.u32 %v3254, 16
        %v3537 = vrot.slane %v3535, 5
        %v3538 = vsel %vm1080, %v3533, %v3537
        %v3539 = vshrl.u32 %v3254, 16
        %v3541 = vrot.slane %v3539, 4
        %v3542 = vor.u32 %v3541, %v3537
        %v3543 = vrot.slane %v3542, 4
        %v3545 = vshll.u32 %v3255, 16
        %v3547 = vrot.slane %v3545, 5
        %v3548 = vsel %vm1080, %v3543, %v3547
        %v3550 = vshrl.u32 %v3256, 16
        %v3552 = vrot.slane %v3550, 4
        %v3553 = vshll.u32 %v3256, 16
        %v3555 = vrot.slane %v3553, 5
        %v3556 = vor.u32 %v3552, %v3555
        %v3557 = vrot.slane %v3556, 4
        %v3559 = vshll.u32 %v3257, 16
        %v3561 = vrot.slane %v3559, 5
        %v3562 = vsel %vm1080, %v3557, %v3561
        %v3563 = vshrl.u32 %v3257, 16
        %v3565 = vrot.slane %v3563, 4
        %v3566 = vor.u32 %v3565, %v3561
        %v3567 = vrot.slane %v3566, 4
        %v3569 = vshll.u32 %v3258, 16
        %v3571 = vrot.slane %v3569, 5
        %v3572 = vsel %vm1080, %v3567, %v3571
        %v3574 = vshrl.u32 %v3259, 16
        %v3576 = vrot.slane %v3574, 4
        %v3577 = vshll.u32 %v3259, 16
        %v3579 = vrot.slane %v3577, 5
        %v3580 = vor.u32 %v3576, %v3579
        %v3581 = vrot.slane %v3580, 4
        %v3583 = vshll.u32 %v3260, 16
        %v3585 = vrot.slane %v3583, 5
        %v3586 = vsel %vm1080, %v3581, %v3585
        %v3587 = vshrl.u32 %v3260, 16
        %v3589 = vrot.slane %v3587, 4
        %v3590 = vor.u32 %v3589, %v3585
        %v3591 = vrot.slane %v3590, 4
        %v3593 = vshll.u32 %v3261, 16
        %v3595 = vrot.slane %v3593, 5
        %v3596 = vsel %vm1080, %v3591, %v3595
        %v3598 = vshrl.u32 %v3262, 16
        %v3600 = vrot.slane %v3598, 4
        %v3601 = vshll.u32 %v3262, 16
        %v3603 = vrot.slane %v3601, 5
        %v3604 = vor.u32 %v3600, %v3603
        %v3605 = vrot.slane %v3604, 4
        %v3607 = vshll.u32 %v3263, 16
        %v3609 = vrot.slane %v3607, 5
        %v3610 = vsel %vm1080, %v3605, %v3609
        %v3611 = vshrl.u32 %v3263, 16
        %v3613 = vrot.slane %v3611, 4
        %v3614 = vor.u32 %v3613, %v3609
        %v3615 = vrot.slane %v3614, 4
        %v3617 = vshll.u32 %v3264, 16
        %v3619 = vrot.slane %v3617, 5
        %v3620 = vsel %vm1080, %v3615, %v3619
        %v3622 = vshrl.u32 %v3265, 16
        %v3624 = vrot.slane %v3622, 4
        %v3625 = vshll.u32 %v3265, 16
        %v3627 = vrot.slane %v3625, 5
        %v3628 = vor.u32 %v3624, %v3627
        %v3629 = vrot.slane %v3628, 4
        %v3631 = vshll.u32 %v3266, 16
        %v3633 = vrot.slane %v3631, 5
        %v3634 = vsel %vm1080, %v3629, %v3633
        %v3635 = vshrl.u32 %v3266, 16
        %v3637 = vrot.slane %v3635, 4
        %v3638 = vor.u32 %v3637, %v3633
        %v3639 = vrot.slane %v3638, 4
        %v3641 = vshll.u32 %v3267, 16
        %v3643 = vrot.slane %v3641, 5
        %v3644 = vsel %vm1080, %v3639, %v3643
        %v3646 = vshrl.u32 %v3268, 16
        %v3648 = vrot.slane %v3646, 4
        %v3649 = vshll.u32 %v3268, 16
        %v3651 = vrot.slane %v3649, 5
        %v3652 = vor.u32 %v3648, %v3651
        %v3653 = vrot.slane %v3652, 4
        %v3655 = vshll.u32 %v3269, 16
        %v3657 = vrot.slane %v3655, 5
        %v3658 = vsel %vm1080, %v3653, %v3657
        %v3659 = vshrl.u32 %v3269, 16
        %v3661 = vrot.slane %v3659, 4
        %v3662 = vor.u32 %v3661, %v3657
        %v3663 = vrot.slane %v3662, 4
        %v3665 = vshll.u32 %v3270, 16
        %v3667 = vrot.slane %v3665, 5
        %v3668 = vsel %vm1080, %v3663, %v3667
        %v3670 = vshrl.u32 %v3271, 16
        %v3672 = vrot.slane %v3670, 4
        %v3673 = vshll.u32 %v3271, 16
        %v3675 = vrot.slane %v3673, 5
        %v3676 = vor.u32 %v3672, %v3675
        %v3677 = vrot.slane %v3676, 4
        %v3679 = vshll.u32 %v3272, 16
        %v3681 = vrot.slane %v3679, 5
        %v3682 = vsel %vm1080, %v3677, %v3681
        %v3683 = vshrl.u32 %v3272, 16
        %v3685 = vrot.slane %v3683, 4
        %v3686 = vor.u32 %v3685, %v3681
        %v3687 = vrot.slane %v3686, 4
        %v3689 = vshll.u32 %v3273, 16
        %v3691 = vrot.slane %v3689, 5
        %v3692 = vsel %vm1080, %v3687, %v3691
        %v3694 = vshrl.u32 %v3274, 16
        %v3696 = vrot.slane %v3694, 4
        %v3697 = vshll.u32 %v3274, 16
        %v3699 = vrot.slane %v3697, 5
        %v3700 = vor.u32 %v3696, %v3699
        %v3701 = vrot.slane %v3700, 4
        %v3703 = vshll.u32 %v3275, 16
        %v3705 = vrot.slane %v3703, 5
        %v3706 = vsel %vm1080, %v3701, %v3705
        %v3707 = vshrl.u32 %v3275, 16
        %v3709 = vrot.slane %v3707, 4
        %v3710 = vor.u32 %v3709, %v3705
        %v3711 = vrot.slane %v3710, 4
        %v3713 = vshll.u32 %v3276, 16
        %v3715 = vrot.slane %v3713, 5
        %v3716 = vsel %vm1080, %v3711, %v3715
        %v3718 = vshrl.u32 %v3277, 16
        %v3720 = vrot.slane %v3718, 4
        %v3721 = vshll.u32 %v3277, 16
        %v3723 = vrot.slane %v3721, 5
        %v3724 = vor.u32 %v3720, %v3723
        %v3725 = vrot.slane %v3724, 4
        %v3727 = vshll.u32 %v3278, 16
        %v3729 = vrot.slane %v3727, 5
        %v3730 = vsel %vm1080, %v3725, %v3729
        %v3731 = vshrl.u32 %v3278, 16
        %v3733 = vrot.slane %v3731, 4
        %v3734 = vor.u32 %v3733, %v3729
        %v3735 = vrot.slane %v3734, 4
        %v3737 = vshll.u32 %v3279, 16
        %v3739 = vrot.slane %v3737, 5
        %v3740 = vsel %vm1080, %v3735, %v3739
        %v3742 = vshrl.u32 %v3280, 16
        %v3744 = vrot.slane %v3742, 4
        %v3745 = vshll.u32 %v3280, 16
        %v3747 = vrot.slane %v3745, 5
        %v3748 = vor.u32 %v3744, %v3747
        %v3749 = vrot.slane %v3748, 4
        %v3751 = vshll.u32 %v3281, 16
        %v3753 = vrot.slane %v3751, 5
        %v3754 = vsel %vm1080, %v3749, %v3753
        %v3755 = vshrl.u32 %v3281, 16
        %v3757 = vrot.slane %v3755, 4
        %v3758 = vor.u32 %v3757, %v3753
        %v3759 = vrot.slane %v3758, 4
        %v3761 = vshll.u32 %v3282, 16
        %v3763 = vrot.slane %v3761, 5
        %v3764 = vsel %vm1080, %v3759, %v3763
        %v3766 = vshrl.u32 %v3283, 16
        %v3768 = vrot.slane %v3766, 4
        %v3769 = vshll.u32 %v3283, 16
        %v3771 = vrot.slane %v3769, 5
        %v3772 = vor.u32 %v3768, %v3771
        %v3773 = vrot.slane %v3772, 4
        %v3775 = vshll.u32 %v3284, 16
        %v3777 = vrot.slane %v3775, 5
        %v3778 = vsel %vm1080, %v3773, %v3777
        %v3779 = vshrl.u32 %v3284, 16
        %v3781 = vrot.slane %v3779, 4
        %v3782 = vor.u32 %v3781, %v3777
        %v3783 = vrot.slane %v3782, 4
        %v3785 = vshll.u32 %v3285, 16
        %v3787 = vrot.slane %v3785, 5
        %v3788 = vsel %vm1080, %v3783, %v3787
        %v3789 = vunpack.c.l.b16 %v3418
        %v3790 = vunpack.c.l.b16 %v3428
        %v3791 = vunpack.c.l.b16 %v3442
        %v3792 = vunpack.c.l.b16 %v3452
        %v3793 = vunpack.c.l.b16 %v3466
        %v3794 = vunpack.c.l.b16 %v3476
        %v3795 = vunpack.c.l.b16 %v3490
        %v3796 = vunpack.c.l.b16 %v3500
        %v3797 = vunpack.c.l.b16 %v3514
        %v3798 = vunpack.c.l.b16 %v3524
        %v3799 = vunpack.c.l.b16 %v3538
        %v3800 = vunpack.c.l.b16 %v3548
        %v3801 = vunpack.c.l.b16 %v3562
        %v3802 = vunpack.c.l.b16 %v3572
        %v3803 = vunpack.c.l.b16 %v3586
        %v3804 = vunpack.c.l.b16 %v3596
        %v3805 = vunpack.c.l.b16 %v3610
        %v3806 = vunpack.c.l.b16 %v3620
        %v3807 = vunpack.c.l.b16 %v3634
        %v3808 = vunpack.c.l.b16 %v3644
        %v3809 = vunpack.c.l.b16 %v3658
        %v3810 = vunpack.c.l.b16 %v3668
        %v3811 = vunpack.c.l.b16 %v3682
        %v3812 = vunpack.c.l.b16 %v3692
        %v3813 = vunpack.c.l.b16 %v3706
        %v3814 = vunpack.c.l.b16 %v3716
        %v3815 = vunpack.c.l.b16 %v3730
        %v3816 = vunpack.c.l.b16 %v3740
        %v3817 = vunpack.c.l.b16 %v3754
        %v3818 = vunpack.c.l.b16 %v3764
        %v3819 = vunpack.c.l.b16 %v3778
        %v3820 = vunpack.c.l.b16 %v3788
        %v3821 = vpack.c.b16 %v3790, %v3789
        %v3822 = vpack.c.b16 %v3792, %v3791
        %v3823 = vpack.c.b16 %v3794, %v3793
        %v3824 = vpack.c.b16 %v3796, %v3795
        %v3825 = vpack.c.b16 %v3798, %v3797
        %v3826 = vpack.c.b16 %v3800, %v3799
        %v3827 = vpack.c.b16 %v3802, %v3801
        %v3828 = vpack.c.b16 %v3804, %v3803
        %v3829 = vpack.c.b16 %v3806, %v3805
        %v3830 = vpack.c.b16 %v3808, %v3807
        %v3831 = vpack.c.b16 %v3810, %v3809
        %v3832 = vpack.c.b16 %v3812, %v3811
        %v3833 = vpack.c.b16 %v3814, %v3813
        %v3834 = vpack.c.b16 %v3816, %v3815
        %v3835 = vpack.c.b16 %v3818, %v3817
        %v3836 = vpack.c.b16 %v3820, %v3819
        %3837 = vrot.lane.b32.xlu0 %v3821, 8
        %v3838 = vpop.permute.xlu0 %3837
        %3839 = vrot.lane.b32.xlu0 %v3822, 8
        %v3840 = vpop.permute.xlu0 %3839
        %3841 = vrot.lane.b32.xlu0 %v3823, 8
        %v3842 = vpop.permute.xlu0 %3841
        %3843 = vrot.lane.b32.xlu0 %v3824, 8
        %v3844 = vpop.permute.xlu0 %3843
        %3845 = vrot.lane.b32.xlu0 %v3825, 8
        %v3846 = vpop.permute.xlu0 %3845
        %3847 = vrot.lane.b32.xlu0 %v3826, 8
        %v3848 = vpop.permute.xlu0 %3847
        %3849 = vrot.lane.b32.xlu0 %v3827, 8
        %v3850 = vpop.permute.xlu0 %3849
        %3851 = vrot.lane.b32.xlu0 %v3828, 8
        %v3852 = vpop.permute.xlu0 %3851
        %3853 = vrot.lane.b32.xlu0 %v3829, 8
        %v3854 = vpop.permute.xlu0 %3853
        %3855 = vrot.lane.b32.xlu0 %v3830, 8
        %v3856 = vpop.permute.xlu0 %3855
        %3857 = vrot.lane.b32.xlu0 %v3831, 8
        %v3858 = vpop.permute.xlu0 %3857
        %3859 = vrot.lane.b32.xlu0 %v3832, 8
        %v3860 = vpop.permute.xlu0 %3859
        %3861 = vrot.lane.b32.xlu0 %v3833, 8
        %v3862 = vpop.permute.xlu0 %3861
        %3863 = vrot.lane.b32.xlu0 %v3834, 8
        %v3864 = vpop.permute.xlu0 %3863
        %3865 = vrot.lane.b32.xlu0 %v3835, 8
        %v3866 = vpop.permute.xlu0 %3865
        %3867 = vrot.lane.b32.xlu0 %v3836, 8
        %v3868 = vpop.permute.xlu0 %3867
        %vm3885 = vcmask 130112
        %3886 = vst.msk [vmem:[#allocation5] sm:$0xff] %vm3885, %v3838
        %3887 = vst.msk [vmem:[#allocation5 + $0x8] sm:$0xff] %vm3885, %v3840
        %3888 = vst.msk [vmem:[#allocation5 + $0x10] sm:$0xff] %vm3885, %v3842
        %3889 = vst.msk [vmem:[#allocation5 + $0x18] sm:$0xff] %vm3885, %v3844
        %3890 = vst.msk [vmem:[#allocation5 + $0x20] sm:$0xff] %vm3885, %v3846
        %3891 = vst.msk [vmem:[#allocation5 + $0x28] sm:$0xff] %vm3885, %v3848
        %3892 = vst.msk [vmem:[#allocation5 + $0x30] sm:$0xff] %vm3885, %v3850
        %3893 = vst.msk [vmem:[#allocation5 + $0x38] sm:$0xff] %vm3885, %v3852
        %3894 = vst.msk [vmem:[#allocation5 + $0x40] sm:$0xff] %vm3885, %v3854
        %3895 = vst.msk [vmem:[#allocation5 + $0x48] sm:$0xff] %vm3885, %v3856
        %3896 = vst.msk [vmem:[#allocation5 + $0x50] sm:$0xff] %vm3885, %v3858
        %3897 = vst.msk [vmem:[#allocation5 + $0x58] sm:$0xff] %vm3885, %v3860
        %3898 = vst.msk [vmem:[#allocation5 + $0x60] sm:$0xff] %vm3885, %v3862
        %3899 = vst.msk [vmem:[#allocation5 + $0x68] sm:$0xff] %vm3885, %v3864
        %3900 = vst.msk [vmem:[#allocation5 + $0x70] sm:$0xff] %vm3885, %v3866
        %3901 = vst.msk [vmem:[#allocation5 + $0x78] sm:$0xff] %vm3885, %v3868
        %v3918 = vrot.slane %v3238, 5
        %v3919 = vrot.slane %v3918, 4
        %v3920 = vrot.slane %v3239, 5
        %v3921 = vsel %vm1596, %v3919, %v3920
        %v3922 = vrot.slane %v3920, 4
        %v3923 = vrot.slane %v3240, 5
        %v3924 = vsel %vm1596, %v3922, %v3923
        %v3925 = vrot.slane %v3241, 5
        %v3926 = vrot.slane %v3925, 4
        %v3927 = vrot.slane %v3242, 5
        %v3928 = vsel %vm1596, %v3926, %v3927
        %v3929 = vrot.slane %v3927, 4
        %v3930 = vrot.slane %v3243, 5
        %v3931 = vsel %vm1596, %v3929, %v3930
        %v3932 = vrot.slane %v3244, 5
        %v3933 = vrot.slane %v3932, 4
        %v3934 = vrot.slane %v3245, 5
        %v3935 = vsel %vm1596, %v3933, %v3934
        %v3936 = vrot.slane %v3934, 4
        %v3937 = vrot.slane %v3246, 5
        %v3938 = vsel %vm1596, %v3936, %v3937
        %v3939 = vrot.slane %v3247, 5
        %v3940 = vrot.slane %v3939, 4
        %v3941 = vrot.slane %v3248, 5
        %v3942 = vsel %vm1596, %v3940, %v3941
        %v3943 = vrot.slane %v3941, 4
        %v3944 = vrot.slane %v3249, 5
        %v3945 = vsel %vm1596, %v3943, %v3944
        %v3946 = vrot.slane %v3250, 5
        %v3947 = vrot.slane %v3946, 4
        %v3948 = vrot.slane %v3251, 5
        %v3949 = vsel %vm1596, %v3947, %v3948
        %v3950 = vrot.slane %v3948, 4
        %v3951 = vrot.slane %v3252, 5
        %v3952 = vsel %vm1596, %v3950, %v3951
        %v3953 = vrot.slane %v3253, 5
        %v3954 = vrot.slane %v3953, 4
        %v3955 = vrot.slane %v3254, 5
        %v3956 = vsel %vm1596, %v3954, %v3955
        %v3957 = vrot.slane %v3955, 4
        %v3958 = vrot.slane %v3255, 5
        %v3959 = vsel %vm1596, %v3957, %v3958
        %v3960 = vrot.slane %v3256, 5
        %v3961 = vrot.slane %v3960, 4
        %v3962 = vrot.slane %v3257, 5
        %v3963 = vsel %vm1596, %v3961, %v3962
        %v3964 = vrot.slane %v3962, 4
        %v3965 = vrot.slane %v3258, 5
        %v3966 = vsel %vm1596, %v3964, %v3965
        %v3967 = vrot.slane %v3259, 5
        %v3968 = vrot.slane %v3967, 4
        %v3969 = vrot.slane %v3260, 5
        %v3970 = vsel %vm1596, %v3968, %v3969
        %v3971 = vrot.slane %v3969, 4
        %v3972 = vrot.slane %v3261, 5
        %v3973 = vsel %vm1596, %v3971, %v3972
        %v3974 = vrot.slane %v3262, 5
        %v3975 = vrot.slane %v3974, 4
        %v3976 = vrot.slane %v3263, 5
        %v3977 = vsel %vm1596, %v3975, %v3976
        %v3978 = vrot.slane %v3976, 4
        %v3979 = vrot.slane %v3264, 5
        %v3980 = vsel %vm1596, %v3978, %v3979
        %v3981 = vrot.slane %v3265, 5
        %v3982 = vrot.slane %v3981, 4
        %v3983 = vrot.slane %v3266, 5
        %v3984 = vsel %vm1596, %v3982, %v3983
        %v3985 = vrot.slane %v3983, 4
        %v3986 = vrot.slane %v3267, 5
        %v3987 = vsel %vm1596, %v3985, %v3986
        %v3988 = vrot.slane %v3268, 5
        %v3989 = vrot.slane %v3988, 4
        %v3990 = vrot.slane %v3269, 5
        %v3991 = vsel %vm1596, %v3989, %v3990
        %v3992 = vrot.slane %v3990, 4
        %v3993 = vrot.slane %v3270, 5
        %v3994 = vsel %vm1596, %v3992, %v3993
        %v3995 = vrot.slane %v3271, 5
        %v3996 = vrot.slane %v3995, 4
        %v3997 = vrot.slane %v3272, 5
        %v3998 = vsel %vm1596, %v3996, %v3997
        %v3999 = vrot.slane %v3997, 4
        %v4000 = vrot.slane %v3273, 5
        %v4001 = vsel %vm1596, %v3999, %v4000
        %v4002 = vrot.slane %v3274, 5
        %v4003 = vrot.slane %v4002, 4
        %v4004 = vrot.slane %v3275, 5
        %v4005 = vsel %vm1596, %v4003, %v4004
        %v4006 = vrot.slane %v4004, 4
        %v4007 = vrot.slane %v3276, 5
        %v4008 = vsel %vm1596, %v4006, %v4007
        %v4009 = vrot.slane %v3277, 5
        %v4010 = vrot.slane %v4009, 4
        %v4011 = vrot.slane %v3278, 5
        %v4012 = vsel %vm1596, %v4010, %v4011
        %v4013 = vrot.slane %v4011, 4
        %v4014 = vrot.slane %v3279, 5
        %v4015 = vsel %vm1596, %v4013, %v4014
        %v4016 = vrot.slane %v3280, 5
        %v4017 = vrot.slane %v4016, 4
        %v4018 = vrot.slane %v3281, 5
        %v4019 = vsel %vm1596, %v4017, %v4018
        %v4020 = vrot.slane %v4018, 4
        %v4021 = vrot.slane %v3282, 5
        %v4022 = vsel %vm1596, %v4020, %v4021
        %v4023 = vrot.slane %v3283, 5
        %v4024 = vrot.slane %v4023, 4
        %v4025 = vrot.slane %v3284, 5
        %v4026 = vsel %vm1596, %v4024, %v4025
        %v4027 = vrot.slane %v4025, 4
        %v4028 = vrot.slane %v3285, 5
        %v4029 = vsel %vm1596, %v4027, %v4028
        %v4030 = vunpack.c.l.b16 %v3921
        %v4031 = vunpack.c.l.b16 %v3924
        %v4032 = vunpack.c.l.b16 %v3928
        %v4033 = vunpack.c.l.b16 %v3931
        %v4034 = vunpack.c.l.b16 %v3935
        %v4035 = vunpack.c.l.b16 %v3938
        %v4036 = vunpack.c.l.b16 %v3942
        %v4037 = vunpack.c.l.b16 %v3945
        %v4038 = vunpack.c.l.b16 %v3949
        %v4039 = vunpack.c.l.b16 %v3952
        %v4040 = vunpack.c.l.b16 %v3956
        %v4041 = vunpack.c.l.b16 %v3959
        %v4042 = vunpack.c.l.b16 %v3963
        %v4043 = vunpack.c.l.b16 %v3966
        %v4044 = vunpack.c.l.b16 %v3970
        %v4045 = vunpack.c.l.b16 %v3973
        %v4046 = vunpack.c.l.b16 %v3977
        %v4047 = vunpack.c.l.b16 %v3980
        %v4048 = vunpack.c.l.b16 %v3984
        %v4049 = vunpack.c.l.b16 %v3987
        %v4050 = vunpack.c.l.b16 %v3991
        %v4051 = vunpack.c.l.b16 %v3994
        %v4052 = vunpack.c.l.b16 %v3998
        %v4053 = vunpack.c.l.b16 %v4001
        %v4054 = vunpack.c.l.b16 %v4005
        %v4055 = vunpack.c.l.b16 %v4008
        %v4056 = vunpack.c.l.b16 %v4012
        %v4057 = vunpack.c.l.b16 %v4015
        %v4058 = vunpack.c.l.b16 %v4019
        %v4059 = vunpack.c.l.b16 %v4022
        %v4060 = vunpack.c.l.b16 %v4026
        %v4061 = vunpack.c.l.b16 %v4029
        %v4062 = vpack.c.b16 %v4031, %v4030
        %v4063 = vpack.c.b16 %v4033, %v4032
        %v4064 = vpack.c.b16 %v4035, %v4034
        %v4065 = vpack.c.b16 %v4037, %v4036
        %v4066 = vpack.c.b16 %v4039, %v4038
        %v4067 = vpack.c.b16 %v4041, %v4040
        %v4068 = vpack.c.b16 %v4043, %v4042
        %v4069 = vpack.c.b16 %v4045, %v4044
        %v4070 = vpack.c.b16 %v4047, %v4046
        %v4071 = vpack.c.b16 %v4049, %v4048
        %v4072 = vpack.c.b16 %v4051, %v4050
        %v4073 = vpack.c.b16 %v4053, %v4052
        %v4074 = vpack.c.b16 %v4055, %v4054
        %v4075 = vpack.c.b16 %v4057, %v4056
        %v4076 = vpack.c.b16 %v4059, %v4058
        %v4077 = vpack.c.b16 %v4061, %v4060
        %4078 = vrot.lane.b32.xlu0 %v4062, 16
        %v4079 = vpop.permute.xlu0 %4078
        %4080 = vrot.lane.b32.xlu0 %v4063, 16
        %v4081 = vpop.permute.xlu0 %4080
        %4082 = vrot.lane.b32.xlu0 %v4064, 16
        %v4083 = vpop.permute.xlu0 %4082
        %4084 = vrot.lane.b32.xlu0 %v4065, 16
        %v4085 = vpop.permute.xlu0 %4084
        %4086 = vrot.lane.b32.xlu0 %v4066, 16
        %v4087 = vpop.permute.xlu0 %4086
        %4088 = vrot.lane.b32.xlu0 %v4067, 16
        %v4089 = vpop.permute.xlu0 %4088
        %4090 = vrot.lane.b32.xlu0 %v4068, 16
        %v4091 = vpop.permute.xlu0 %4090
        %4092 = vrot.lane.b32.xlu0 %v4069, 16
        %v4093 = vpop.permute.xlu0 %4092
        %4094 = vrot.lane.b32.xlu0 %v4070, 16
        %v4095 = vpop.permute.xlu0 %4094
        %4096 = vrot.lane.b32.xlu0 %v4071, 16
        %v4097 = vpop.permute.xlu0 %4096
        %4098 = vrot.lane.b32.xlu0 %v4072, 16
        %v4099 = vpop.permute.xlu0 %4098
        %4100 = vrot.lane.b32.xlu0 %v4073, 16
        %v4101 = vpop.permute.xlu0 %4100
        %4102 = vrot.lane.b32.xlu0 %v4074, 16
        %v4103 = vpop.permute.xlu0 %4102
        %4104 = vrot.lane.b32.xlu0 %v4075, 16
        %v4105 = vpop.permute.xlu0 %4104
        %4106 = vrot.lane.b32.xlu0 %v4076, 16
        %v4107 = vpop.permute.xlu0 %4106
        %4108 = vrot.lane.b32.xlu0 %v4077, 16
        %v4109 = vpop.permute.xlu0 %4108
        %vm4126 = vcmask 195712
        %4127 = vst.msk [vmem:[#allocation5] sm:$0xff] %vm4126, %v4079
        %4128 = vst.msk [vmem:[#allocation5 + $0x8] sm:$0xff] %vm4126, %v4081
        %4129 = vst.msk [vmem:[#allocation5 + $0x10] sm:$0xff] %vm4126, %v4083
        %4130 = vst.msk [vmem:[#allocation5 + $0x18] sm:$0xff] %vm4126, %v4085
        %4131 = vst.msk [vmem:[#allocation5 + $0x20] sm:$0xff] %vm4126, %v4087
        %4132 = vst.msk [vmem:[#allocation5 + $0x28] sm:$0xff] %vm4126, %v4089
        %4133 = vst.msk [vmem:[#allocation5 + $0x30] sm:$0xff] %vm4126, %v4091
        %4134 = vst.msk [vmem:[#allocation5 + $0x38] sm:$0xff] %vm4126, %v4093
        %4135 = vst.msk [vmem:[#allocation5 + $0x40] sm:$0xff] %vm4126, %v4095
        %4136 = vst.msk [vmem:[#allocation5 + $0x48] sm:$0xff] %vm4126, %v4097
        %4137 = vst.msk [vmem:[#allocation5 + $0x50] sm:$0xff] %vm4126, %v4099
        %4138 = vst.msk [vmem:[#allocation5 + $0x58] sm:$0xff] %vm4126, %v4101
        %4139 = vst.msk [vmem:[#allocation5 + $0x60] sm:$0xff] %vm4126, %v4103
        %4140 = vst.msk [vmem:[#allocation5 + $0x68] sm:$0xff] %vm4126, %v4105
        %4141 = vst.msk [vmem:[#allocation5 + $0x70] sm:$0xff] %vm4126, %v4107
        %4142 = vst.msk [vmem:[#allocation5 + $0x78] sm:$0xff] %vm4126, %v4109
        %v4145 = vunpack.c.l.b16 %v3286
        %v4146 = vunpack.c.l.b16 %v3287
        %v4147 = vpack.c.b16 %v4146, %v4145
        %4148 = vrot.lane.b32.xlu0 %v3357, 24
        %v4149 = vpop.permute.xlu0 %4148
        %4150 = vrot.lane.b32.xlu0 %v3358, 24
        %v4151 = vpop.permute.xlu0 %4150
        %4152 = vrot.lane.b32.xlu0 %v3359, 24
        %v4153 = vpop.permute.xlu0 %4152
        %4154 = vrot.lane.b32.xlu0 %v3360, 24
        %v4155 = vpop.permute.xlu0 %4154
        %4156 = vrot.lane.b32.xlu0 %v3361, 24
        %v4157 = vpop.permute.xlu0 %4156
        %4158 = vrot.lane.b32.xlu0 %v3362, 24
        %v4159 = vpop.permute.xlu0 %4158
        %4160 = vrot.lane.b32.xlu0 %v3363, 24
        %v4161 = vpop.permute.xlu0 %4160
        %4162 = vrot.lane.b32.xlu0 %v3364, 24
        %v4163 = vpop.permute.xlu0 %4162
        %4164 = vrot.lane.b32.xlu0 %v3365, 24
        %v4165 = vpop.permute.xlu0 %4164
        %4166 = vrot.lane.b32.xlu0 %v3366, 24
        %v4167 = vpop.permute.xlu0 %4166
        %4168 = vrot.lane.b32.xlu0 %v3367, 24
        %v4169 = vpop.permute.xlu0 %4168
        %4170 = vrot.lane.b32.xlu0 %v3368, 24
        %v4171 = vpop.permute.xlu0 %4170
        %4172 = vrot.lane.b32.xlu0 %v3369, 24
        %v4173 = vpop.permute.xlu0 %4172
        %4174 = vrot.lane.b32.xlu0 %v3370, 24
        %v4175 = vpop.permute.xlu0 %4174
        %4176 = vrot.lane.b32.xlu0 %v3371, 24
        %v4177 = vpop.permute.xlu0 %4176
        %4178 = vrot.lane.b32.xlu0 %v4147, 24
        %v4179 = vpop.permute.xlu0 %4178
        %vm4196 = vcmask 261312
        %4197 = vst.msk [vmem:[#allocation5] sm:$0xff] %vm4196, %v4149
        %4198 = vst.msk [vmem:[#allocation5 + $0x8] sm:$0xff] %vm4196, %v4151
        %4199 = vst.msk [vmem:[#allocation5 + $0x10] sm:$0xff] %vm4196, %v4153
        %4200 = vst.msk [vmem:[#allocation5 + $0x18] sm:$0xff] %vm4196, %v4155
        %4201 = vst.msk [vmem:[#allocation5 + $0x20] sm:$0xff] %vm4196, %v4157
        %4202 = vst.msk [vmem:[#allocation5 + $0x28] sm:$0xff] %vm4196, %v4159
        %4203 = vst.msk [vmem:[#allocation5 + $0x30] sm:$0xff] %vm4196, %v4161
        %4204 = vst.msk [vmem:[#allocation5 + $0x38] sm:$0xff] %vm4196, %v4163
        %4205 = vst.msk [vmem:[#allocation5 + $0x40] sm:$0xff] %vm4196, %v4165
        %4206 = vst.msk [vmem:[#allocation5 + $0x48] sm:$0xff] %vm4196, %v4167
        %4207 = vst.msk [vmem:[#allocation5 + $0x50] sm:$0xff] %vm4196, %v4169
        %4208 = vst.msk [vmem:[#allocation5 + $0x58] sm:$0xff] %vm4196, %v4171
        %4209 = vst.msk [vmem:[#allocation5 + $0x60] sm:$0xff] %vm4196, %v4173
        %4210 = vst.msk [vmem:[#allocation5 + $0x68] sm:$0xff] %vm4196, %v4175
        %4211 = vst.msk [vmem:[#allocation5 + $0x70] sm:$0xff] %vm4196, %v4177
        %4212 = vst.msk [vmem:[#allocation5 + $0x78] sm:$0xff] %vm4196, %v4179
        %v4214 = vshrl.u32 %v3286, 16
        %v4216 = vrot.slane %v4214, 4
        %v4217 = vshll.u32 %v3286, 16
        %v4219 = vrot.slane %v4217, 5
        %v4220 = vor.u32 %v4216, %v4219
        %v4221 = vrot.slane %v4220, 4
        %v4223 = vshll.u32 %v3287, 16
        %v4225 = vrot.slane %v4223, 5
        %v4226 = vsel %vm1080, %v4221, %v4225
        %v4227 = vshrl.u32 %v3287, 16
        %v4229 = vrot.slane %v4227, 4
        %v4230 = vor.u32 %v4229, %v4225
        %v4231 = vrot.slane %v4230, 4
        %v4233 = vshll.u32 %v3288, 16
        %v4235 = vrot.slane %v4233, 5
        %v4236 = vsel %vm1080, %v4231, %v4235
        %v4237 = vunpack.c.l.b16 %v4226
        %v4238 = vunpack.c.l.b16 %v4236
        %v4239 = vpack.c.b16 %v4238, %v4237
        %4240 = vrot.lane.b32.xlu0 %v3822, 32
        %v4241 = vpop.permute.xlu0 %4240
        %4242 = vrot.lane.b32.xlu0 %v3823, 32
        %v4243 = vpop.permute.xlu0 %4242
        %4244 = vrot.lane.b32.xlu0 %v3824, 32
        %v4245 = vpop.permute.xlu0 %4244
        %4246 = vrot.lane.b32.xlu0 %v3825, 32
        %v4247 = vpop.permute.xlu0 %4246
        %4248 = vrot.lane.b32.xlu0 %v3826, 32
        %v4249 = vpop.permute.xlu0 %4248
        %4250 = vrot.lane.b32.xlu0 %v3827, 32
        %v4251 = vpop.permute.xlu0 %4250
        %4252 = vrot.lane.b32.xlu0 %v3828, 32
        %v4253 = vpop.permute.xlu0 %4252
        %4254 = vrot.lane.b32.xlu0 %v3829, 32
        %v4255 = vpop.permute.xlu0 %4254
        %4256 = vrot.lane.b32.xlu0 %v3830, 32
        %v4257 = vpop.permute.xlu0 %4256
        %4258 = vrot.lane.b32.xlu0 %v3831, 32
        %v4259 = vpop.permute.xlu0 %4258
        %4260 = vrot.lane.b32.xlu0 %v3832, 32
        %v4261 = vpop.permute.xlu0 %4260
        %4262 = vrot.lane.b32.xlu0 %v3833, 32
        %v4263 = vpop.permute.xlu0 %4262
        %4264 = vrot.lane.b32.xlu0 %v3834, 32
        %v4265 = vpop.permute.xlu0 %4264
        %4266 = vrot.lane.b32.xlu0 %v3835, 32
        %v4267 = vpop.permute.xlu0 %4266
        %4268 = vrot.lane.b32.xlu0 %v3836, 32
        %v4269 = vpop.permute.xlu0 %4268
        %4270 = vrot.lane.b32.xlu0 %v4239, 32
        %v4271 = vpop.permute.xlu0 %4270
        %vm4288 = vcmask 326912
        %4289 = vst.msk [vmem:[#allocation5] sm:$0xff] %vm4288, %v4241
        %4290 = vst.msk [vmem:[#allocation5 + $0x8] sm:$0xff] %vm4288, %v4243
        %4291 = vst.msk [vmem:[#allocation5 + $0x10] sm:$0xff] %vm4288, %v4245
        %4292 = vst.msk [vmem:[#allocation5 + $0x18] sm:$0xff] %vm4288, %v4247
        %4293 = vst.msk [vmem:[#allocation5 + $0x20] sm:$0xff] %vm4288, %v4249
        %4294 = vst.msk [vmem:[#allocation5 + $0x28] sm:$0xff] %vm4288, %v4251
        %4295 = vst.msk [vmem:[#allocation5 + $0x30] sm:$0xff] %vm4288, %v4253
        %4296 = vst.msk [vmem:[#allocation5 + $0x38] sm:$0xff] %vm4288, %v4255
        %4297 = vst.msk [vmem:[#allocation5 + $0x40] sm:$0xff] %vm4288, %v4257
        %4298 = vst.msk [vmem:[#allocation5 + $0x48] sm:$0xff] %vm4288, %v4259
        %4299 = vst.msk [vmem:[#allocation5 + $0x50] sm:$0xff] %vm4288, %v4261
        %4300 = vst.msk [vmem:[#allocation5 + $0x58] sm:$0xff] %vm4288, %v4263
        %4301 = vst.msk [vmem:[#allocation5 + $0x60] sm:$0xff] %vm4288, %v4265
        %4302 = vst.msk [vmem:[#allocation5 + $0x68] sm:$0xff] %vm4288, %v4267
        %4303 = vst.msk [vmem:[#allocation5 + $0x70] sm:$0xff] %vm4288, %v4269
        %4304 = vst.msk [vmem:[#allocation5 + $0x78] sm:$0xff] %vm4288, %v4271
        %v4306 = vrot.slane %v3286, 5
        %v4307 = vrot.slane %v4306, 4
        %v4308 = vrot.slane %v3287, 5
        %v4309 = vsel %vm1596, %v4307, %v4308
        %v4310 = vrot.slane %v4308, 4
        %v4311 = vrot.slane %v3288, 5
        %v4312 = vsel %vm1596, %v4310, %v4311
        %v4313 = vunpack.c.l.b16 %v4309
        %v4314 = vunpack.c.l.b16 %v4312
        %v4315 = vpack.c.b16 %v4314, %v4313
        %4316 = vrot.lane.b32.xlu0 %v4063, 40
        %v4317 = vpop.permute.xlu0 %4316
        %4318 = vrot.lane.b32.xlu0 %v4064, 40
        %v4319 = vpop.permute.xlu0 %4318
        %4320 = vrot.lane.b32.xlu0 %v4065, 40
        %v4321 = vpop.permute.xlu0 %4320
        %4322 = vrot.lane.b32.xlu0 %v4066, 40
        %v4323 = vpop.permute.xlu0 %4322
        %4324 = vrot.lane.b32.xlu0 %v4067, 40
        %v4325 = vpop.permute.xlu0 %4324
        %4326 = vrot.lane.b32.xlu0 %v4068, 40
        %v4327 = vpop.permute.xlu0 %4326
        %4328 = vrot.lane.b32.xlu0 %v4069, 40
        %v4329 = vpop.permute.xlu0 %4328
        %4330 = vrot.lane.b32.xlu0 %v4070, 40
        %v4331 = vpop.permute.xlu0 %4330
        %4332 = vrot.lane.b32.xlu0 %v4071, 40
        %v4333 = vpop.permute.xlu0 %4332
        %4334 = vrot.lane.b32.xlu0 %v4072, 40
        %v4335 = vpop.permute.xlu0 %4334
        %4336 = vrot.lane.b32.xlu0 %v4073, 40
        %v4337 = vpop.permute.xlu0 %4336
        %4338 = vrot.lane.b32.xlu0 %v4074, 40
        %v4339 = vpop.permute.xlu0 %4338
        %4340 = vrot.lane.b32.xlu0 %v4075, 40
        %v4341 = vpop.permute.xlu0 %4340
        %4342 = vrot.lane.b32.xlu0 %v4076, 40
        %v4343 = vpop.permute.xlu0 %4342
        %4344 = vrot.lane.b32.xlu0 %v4077, 40
        %v4345 = vpop.permute.xlu0 %4344
        %4346 = vrot.lane.b32.xlu0 %v4315, 40
        %v4347 = vpop.permute.xlu0 %4346
        %vm4364 = vcmask 392512
        %4365 = vst.msk [vmem:[#allocation5] sm:$0xff] %vm4364, %v4317
        %4366 = vst.msk [vmem:[#allocation5 + $0x8] sm:$0xff] %vm4364, %v4319
        %4367 = vst.msk [vmem:[#allocation5 + $0x10] sm:$0xff] %vm4364, %v4321
        %4368 = vst.msk [vmem:[#allocation5 + $0x18] sm:$0xff] %vm4364, %v4323
        %4369 = vst.msk [vmem:[#allocation5 + $0x20] sm:$0xff] %vm4364, %v4325
        %4370 = vst.msk [vmem:[#allocation5 + $0x28] sm:$0xff] %vm4364, %v4327
        %4371 = vst.msk [vmem:[#allocation5 + $0x30] sm:$0xff] %vm4364, %v4329
        %4372 = vst.msk [vmem:[#allocation5 + $0x38] sm:$0xff] %vm4364, %v4331
        %4373 = vst.msk [vmem:[#allocation5 + $0x40] sm:$0xff] %vm4364, %v4333
        %4374 = vst.msk [vmem:[#allocation5 + $0x48] sm:$0xff] %vm4364, %v4335
        %4375 = vst.msk [vmem:[#allocation5 + $0x50] sm:$0xff] %vm4364, %v4337
        %4376 = vst.msk [vmem:[#allocation5 + $0x58] sm:$0xff] %vm4364, %v4339
        %4377 = vst.msk [vmem:[#allocation5 + $0x60] sm:$0xff] %vm4364, %v4341
        %4378 = vst.msk [vmem:[#allocation5 + $0x68] sm:$0xff] %vm4364, %v4343
        %4379 = vst.msk [vmem:[#allocation5 + $0x70] sm:$0xff] %vm4364, %v4345
        %4380 = vst.msk [vmem:[#allocation5 + $0x78] sm:$0xff] %vm4364, %v4347
        %v4383 = vunpack.c.l.b16 %v3289
        %v4384 = vunpack.c.l.b16 %v3290
        %v4385 = vpack.c.b16 %v4384, %v4383
        %4386 = vrot.lane.b32.xlu0 %v3358, 48
        %v4387 = vpop.permute.xlu0 %4386
        %4388 = vrot.lane.b32.xlu0 %v3359, 48
        %v4389 = vpop.permute.xlu0 %4388
        %4390 = vrot.lane.b32.xlu0 %v3360, 48
        %v4391 = vpop.permute.xlu0 %4390
        %4392 = vrot.lane.b32.xlu0 %v3361, 48
        %v4393 = vpop.permute.xlu0 %4392
        %4394 = vrot.lane.b32.xlu0 %v3362, 48
        %v4395 = vpop.permute.xlu0 %4394
        %4396 = vrot.lane.b32.xlu0 %v3363, 48
        %v4397 = vpop.permute.xlu0 %4396
        %4398 = vrot.lane.b32.xlu0 %v3364, 48
        %v4399 = vpop.permute.xlu0 %4398
        %4400 = vrot.lane.b32.xlu0 %v3365, 48
        %v4401 = vpop.permute.xlu0 %4400
        %4402 = vrot.lane.b32.xlu0 %v3366, 48
        %v4403 = vpop.permute.xlu0 %4402
        %4404 = vrot.lane.b32.xlu0 %v3367, 48
        %v4405 = vpop.permute.xlu0 %4404
        %4406 = vrot.lane.b32.xlu0 %v3368, 48
        %v4407 = vpop.permute.xlu0 %4406
        %4408 = vrot.lane.b32.xlu0 %v3369, 48
        %v4409 = vpop.permute.xlu0 %4408
        %4410 = vrot.lane.b32.xlu0 %v3370, 48
        %v4411 = vpop.permute.xlu0 %4410
        %4412 = vrot.lane.b32.xlu0 %v3371, 48
        %v4413 = vpop.permute.xlu0 %4412
        %4414 = vrot.lane.b32.xlu0 %v4147, 48
        %v4415 = vpop.permute.xlu0 %4414
        %4416 = vrot.lane.b32.xlu0 %v4385, 48
        %v4417 = vpop.permute.xlu0 %4416
        %vm4434 = vcmask 458112
        %4435 = vst.msk [vmem:[#allocation5] sm:$0xff] %vm4434, %v4387
        %4436 = vst.msk [vmem:[#allocation5 + $0x8] sm:$0xff] %vm4434, %v4389
        %4437 = vst.msk [vmem:[#allocation5 + $0x10] sm:$0xff] %vm4434, %v4391
        %4438 = vst.msk [vmem:[#allocation5 + $0x18] sm:$0xff] %vm4434, %v4393
        %4439 = vst.msk [vmem:[#allocation5 + $0x20] sm:$0xff] %vm4434, %v4395
        %4440 = vst.msk [vmem:[#allocation5 + $0x28] sm:$0xff] %vm4434, %v4397
        %4441 = vst.msk [vmem:[#allocation5 + $0x30] sm:$0xff] %vm4434, %v4399
        %4442 = vst.msk [vmem:[#allocation5 + $0x38] sm:$0xff] %vm4434, %v4401
        %4443 = vst.msk [vmem:[#allocation5 + $0x40] sm:$0xff] %vm4434, %v4403
        %4444 = vst.msk [vmem:[#allocation5 + $0x48] sm:$0xff] %vm4434, %v4405
        %4445 = vst.msk [vmem:[#allocation5 + $0x50] sm:$0xff] %vm4434, %v4407
        %4446 = vst.msk [vmem:[#allocation5 + $0x58] sm:$0xff] %vm4434, %v4409
        %4447 = vst.msk [vmem:[#allocation5 + $0x60] sm:$0xff] %vm4434, %v4411
        %4448 = vst.msk [vmem:[#allocation5 + $0x68] sm:$0xff] %vm4434, %v4413
        %4449 = vst.msk [vmem:[#allocation5 + $0x70] sm:$0xff] %vm4434, %v4415
        %4450 = vst.msk [vmem:[#allocation5 + $0x78] sm:$0xff] %vm4434, %v4417
        %v4452 = vshrl.u32 %v3289, 16
        %v4454 = vrot.slane %v4452, 4
        %v4455 = vshll.u32 %v3289, 16
        %v4457 = vrot.slane %v4455, 5
        %v4458 = vor.u32 %v4454, %v4457
        %v4459 = vrot.slane %v4458, 4
        %v4461 = vshll.u32 %v3290, 16
        %v4463 = vrot.slane %v4461, 5
        %v4464 = vsel %vm1080, %v4459, %v4463
        %v4465 = vshrl.u32 %v3290, 16
        %v4467 = vrot.slane %v4465, 4
        %v4468 = vor.u32 %v4467, %v4463
        %v4469 = vrot.slane %v4468, 4
        %v4471 = vshll.u32 %v3291, 16
        %v4473 = vrot.slane %v4471, 5
        %v4474 = vsel %vm1080, %v4469, %v4473
        %v4475 = vunpack.c.l.b16 %v4464
        %v4476 = vunpack.c.l.b16 %v4474
        %v4477 = vpack.c.b16 %v4476, %v4475
        %4478 = vrot.lane.b32.xlu0 %v3823, 56
        %v4479 = vpop.permute.xlu0 %4478
        %4480 = vrot.lane.b32.xlu0 %v3824, 56
        %v4481 = vpop.permute.xlu0 %4480
        %4482 = vrot.lane.b32.xlu0 %v3825, 56
        %v4483 = vpop.permute.xlu0 %4482
        %4484 = vrot.lane.b32.xlu0 %v3826, 56
        %v4485 = vpop.permute.xlu0 %4484
        %4486 = vrot.lane.b32.xlu0 %v3827, 56
        %v4487 = vpop.permute.xlu0 %4486
        %4488 = vrot.lane.b32.xlu0 %v3828, 56
        %v4489 = vpop.permute.xlu0 %4488
        %4490 = vrot.lane.b32.xlu0 %v3829, 56
        %v4491 = vpop.permute.xlu0 %4490
        %4492 = vrot.lane.b32.xlu0 %v3830, 56
        %v4493 = vpop.permute.xlu0 %4492
        %4494 = vrot.lane.b32.xlu0 %v3831, 56
        %v4495 = vpop.permute.xlu0 %4494
        %4496 = vrot.lane.b32.xlu0 %v3832, 56
        %v4497 = vpop.permute.xlu0 %4496
        %4498 = vrot.lane.b32.xlu0 %v3833, 56
        %v4499 = vpop.permute.xlu0 %4498
        %4500 = vrot.lane.b32.xlu0 %v3834, 56
        %v4501 = vpop.permute.xlu0 %4500
        %4502 = vrot.lane.b32.xlu0 %v3835, 56
        %v4503 = vpop.permute.xlu0 %4502
        %4504 = vrot.lane.b32.xlu0 %v3836, 56
        %v4505 = vpop.permute.xlu0 %4504
        %4506 = vrot.lane.b32.xlu0 %v4239, 56
        %v4507 = vpop.permute.xlu0 %4506
        %4508 = vrot.lane.b32.xlu0 %v4477, 56
        %v4509 = vpop.permute.xlu0 %4508
        %vm4526 = vcmask 523712
        %4527 = vst.msk [vmem:[#allocation5] sm:$0xff] %vm4526, %v4479
        %4528 = vst.msk [vmem:[#allocation5 + $0x8] sm:$0xff] %vm4526, %v4481
        %4529 = vst.msk [vmem:[#allocation5 + $0x10] sm:$0xff] %vm4526, %v4483
        %4530 = vst.msk [vmem:[#allocation5 + $0x18] sm:$0xff] %vm4526, %v4485
        %4531 = vst.msk [vmem:[#allocation5 + $0x20] sm:$0xff] %vm4526, %v4487
        %4532 = vst.msk [vmem:[#allocation5 + $0x28] sm:$0xff] %vm4526, %v4489
        %4533 = vst.msk [vmem:[#allocation5 + $0x30] sm:$0xff] %vm4526, %v4491
        %4534 = vst.msk [vmem:[#allocation5 + $0x38] sm:$0xff] %vm4526, %v4493
        %4535 = vst.msk [vmem:[#allocation5 + $0x40] sm:$0xff] %vm4526, %v4495
        %4536 = vst.msk [vmem:[#allocation5 + $0x48] sm:$0xff] %vm4526, %v4497
        %4537 = vst.msk [vmem:[#allocation5 + $0x50] sm:$0xff] %vm4526, %v4499
        %4538 = vst.msk [vmem:[#allocation5 + $0x58] sm:$0xff] %vm4526, %v4501
        %4539 = vst.msk [vmem:[#allocation5 + $0x60] sm:$0xff] %vm4526, %v4503
        %4540 = vst.msk [vmem:[#allocation5 + $0x68] sm:$0xff] %vm4526, %v4505
        %4541 = vst.msk [vmem:[#allocation5 + $0x70] sm:$0xff] %vm4526, %v4507
        %4542 = vst.msk [vmem:[#allocation5 + $0x78] sm:$0xff] %vm4526, %v4509
        %v4544 = vrot.slane %v3289, 5
        %v4545 = vrot.slane %v4544, 4
        %v4546 = vrot.slane %v3290, 5
        %v4547 = vsel %vm1596, %v4545, %v4546
        %v4548 = vrot.slane %v4546, 4
        %v4549 = vrot.slane %v3291, 5
        %v4550 = vsel %vm1596, %v4548, %v4549
        %v4551 = vunpack.c.l.b16 %v4547
        %v4552 = vunpack.c.l.b16 %v4550
        %v4553 = vpack.c.b16 %v4552, %v4551
        %4554 = vrot.lane.b32.xlu0 %v4064, 64
        %v4555 = vpop.permute.xlu0 %4554
        %4556 = vrot.lane.b32.xlu0 %v4065, 64
        %v4557 = vpop.permute.xlu0 %4556
        %4558 = vrot.lane.b32.xlu0 %v4066, 64
        %v4559 = vpop.permute.xlu0 %4558
        %4560 = vrot.lane.b32.xlu0 %v4067, 64
        %v4561 = vpop.permute.xlu0 %4560
        %4562 = vrot.lane.b32.xlu0 %v4068, 64
        %v4563 = vpop.permute.xlu0 %4562
        %4564 = vrot.lane.b32.xlu0 %v4069, 64
        %v4565 = vpop.permute.xlu0 %4564
        %4566 = vrot.lane.b32.xlu0 %v4070, 64
        %v4567 = vpop.permute.xlu0 %4566
        %4568 = vrot.lane.b32.xlu0 %v4071, 64
        %v4569 = vpop.permute.xlu0 %4568
        %4570 = vrot.lane.b32.xlu0 %v4072, 64
        %v4571 = vpop.permute.xlu0 %4570
        %4572 = vrot.lane.b32.xlu0 %v4073, 64
        %v4573 = vpop.permute.xlu0 %4572
        %4574 = vrot.lane.b32.xlu0 %v4074, 64
        %v4575 = vpop.permute.xlu0 %4574
        %4576 = vrot.lane.b32.xlu0 %v4075, 64
        %v4577 = vpop.permute.xlu0 %4576
        %4578 = vrot.lane.b32.xlu0 %v4076, 64
        %v4579 = vpop.permute.xlu0 %4578
        %4580 = vrot.lane.b32.xlu0 %v4077, 64
        %v4581 = vpop.permute.xlu0 %4580
        %4582 = vrot.lane.b32.xlu0 %v4315, 64
        %v4583 = vpop.permute.xlu0 %4582
        %4584 = vrot.lane.b32.xlu0 %v4553, 64
        %v4585 = vpop.permute.xlu0 %4584
        %vm4602 = vcmask 589312
        %4603 = vst.msk [vmem:[#allocation5] sm:$0xff] %vm4602, %v4555
        %4604 = vst.msk [vmem:[#allocation5 + $0x8] sm:$0xff] %vm4602, %v4557
        %4605 = vst.msk [vmem:[#allocation5 + $0x10] sm:$0xff] %vm4602, %v4559
        %4606 = vst.msk [vmem:[#allocation5 + $0x18] sm:$0xff] %vm4602, %v4561
        %4607 = vst.msk [vmem:[#allocation5 + $0x20] sm:$0xff] %vm4602, %v4563
        %4608 = vst.msk [vmem:[#allocation5 + $0x28] sm:$0xff] %vm4602, %v4565
        %4609 = vst.msk [vmem:[#allocation5 + $0x30] sm:$0xff] %vm4602, %v4567
        %4610 = vst.msk [vmem:[#allocation5 + $0x38] sm:$0xff] %vm4602, %v4569
        %4611 = vst.msk [vmem:[#allocation5 + $0x40] sm:$0xff] %vm4602, %v4571
        %4612 = vst.msk [vmem:[#allocation5 + $0x48] sm:$0xff] %vm4602, %v4573
        %4613 = vst.msk [vmem:[#allocation5 + $0x50] sm:$0xff] %vm4602, %v4575
        %4614 = vst.msk [vmem:[#allocation5 + $0x58] sm:$0xff] %vm4602, %v4577
        %4615 = vst.msk [vmem:[#allocation5 + $0x60] sm:$0xff] %vm4602, %v4579
        %4616 = vst.msk [vmem:[#allocation5 + $0x68] sm:$0xff] %vm4602, %v4581
        %4617 = vst.msk [vmem:[#allocation5 + $0x70] sm:$0xff] %vm4602, %v4583
        %4618 = vst.msk [vmem:[#allocation5 + $0x78] sm:$0xff] %vm4602, %v4585
        %v4619 = vld [vmem:[#allocation5] sm:$0xff]
        %v4620 = vld [vmem:[#allocation5 + $0x8] sm:$0xff]
        %v4621 = vld [vmem:[#allocation5 + $0x10] sm:$0xff]
        %v4622 = vld [vmem:[#allocation5 + $0x18] sm:$0xff]
        %v4623 = vld [vmem:[#allocation5 + $0x20] sm:$0xff]
        %v4624 = vld [vmem:[#allocation5 + $0x28] sm:$0xff]
        %v4625 = vld [vmem:[#allocation5 + $0x30] sm:$0xff]
        %v4626 = vld [vmem:[#allocation5 + $0x38] sm:$0xff]
        %v4627 = vld [vmem:[#allocation5 + $0x40] sm:$0xff]
        %v4628 = vld [vmem:[#allocation5 + $0x48] sm:$0xff]
        %v4629 = vld [vmem:[#allocation5 + $0x50] sm:$0xff]
        %v4630 = vld [vmem:[#allocation5 + $0x58] sm:$0xff]
        %v4631 = vld [vmem:[#allocation5 + $0x60] sm:$0xff]
        %v4632 = vld [vmem:[#allocation5 + $0x68] sm:$0xff]
        %v4633 = vld [vmem:[#allocation5 + $0x70] sm:$0xff]
        %v4634 = vld [vmem:[#allocation5 + $0x78] sm:$0xff]
        %v4635 = vld [vmem:[%s3] sm:$0xf]
        %v4636 = vld [vmem:[%s3 + $0x4] sm:$0xf]
        %v4637 = vld [vmem:[%s3 + $0x8] sm:$0xf]
        %v4638 = vld [vmem:[%s3 + $0xc] sm:$0xf]
        %v4639 = vld [vmem:[%s3 + $0x10] sm:$0xf]
        %v4640 = vld [vmem:[%s3 + $0x14] sm:$0xf]
        %v4641 = vld [vmem:[%s3 + $0x18] sm:$0xf]
        %v4642 = vld [vmem:[%s3 + $0x1c] sm:$0xf]
        %v4643 = vld [vmem:[%s3 + $0x20] sm:$0xf]
        %v4644 = vld [vmem:[%s4] sm:$0x1]
        %v4646 = vlaneseq
        %v4647 = vshrl.u32 %v4646, 7
        %v4648 = vsub.s32 0, %v4647
        %v4649 = vrot.slane %v4644, %v4648
        %v4660 = vunpack.c.l.b16 %v4635
        %v4661 = vunpack.c.l.b16 %v4636
        %v4662 = vunpack.c.l.b16 %v4637
        %v4663 = vunpack.c.l.b16 %v4638
        %v4664 = vunpack.c.l.b16 %v4639
        %v4665 = vunpack.c.l.b16 %v4640
        %v4666 = vunpack.c.l.b16 %v4641
        %v4667 = vunpack.c.l.b16 %v4642
        %v4668 = vunpack.c.l.b16 %v4643
        %v4669 = vpack.c.b16 %v4661, %v4660
        %v4670 = vpack.c.b16 %v4663, %v4662
        %v4671 = vpack.c.b16 %v4665, %v4664
        %v4672 = vpack.c.b16 %v4667, %v4666
        %v4673 = vpack.c.b16 %v4668, %v4668
        %vm4678 = vcmask 588800
        %v4680 = vsel %vm4678, %v4619, 0
        %v4683 = vsel %vm4678, %v4620, 0
        %v4686 = vsel %vm4678, %v4621, 0
        %v4689 = vsel %vm4678, %v4622, 0
        %v4692 = vsel %vm4678, %v4623, 0
        %v4695 = vsel %vm4678, %v4624, 0
        %v4698 = vsel %vm4678, %v4625, 0
        %v4701 = vsel %vm4678, %v4626, 0
        %v4704 = vsel %vm4678, %v4627, 0
        %v4707 = vsel %vm4678, %v4628, 0
        %v4710 = vsel %vm4678, %v4629, 0
        %v4713 = vsel %vm4678, %v4630, 0
        %v4716 = vsel %vm4678, %v4631, 0
        %v4719 = vsel %vm4678, %v4632, 0
        %v4722 = vsel %vm4678, %v4633, 0
        %v4725 = vsel %vm4678, %v4634, 0
        %vm4727 = vcmask 1043456
        %v4729 = vsel %vm4727, %v4673, 0
        %4731 = vmatprep.subr.bf16.mxu0 0
        %4732 = vmatpush1.bf16.msra.mxu0 %v4669
        %4733 = vmatprep.subr.bf16.mxu0 0
        %4734 = vmatpush1.bf16.msra.mxu0 %v4670
        %4735 = vmatprep.subr.bf16.mxu0 0
        %4736 = vmatpush1.bf16.msra.mxu0 %v4671
        %4737 = vmatprep.subr.bf16.mxu0 0
        %4738 = vmatpush1.bf16.msra.mxu0 %v4672
        %4739 = vmatprep.subr.bf16.mxu0 0
        %4740 = vmatpush1.bf16.msra.mxu0 %v4729
        %4741 = vmatprep.subr.bf16.mxu0 0
        %4742 = vmatpush1.bf16.msra.mxu0 0
        %4743 = vmatprep.subr.bf16.mxu0 0
        %4744 = vmatpush1.bf16.msra.mxu0 0
        %4745 = vmatprep.subr.bf16.mxu0 0
        %4746 = vmatpush1.bf16.msra.mxu0 0
        %4747 = vmatprep.subr.bf16.mxu0 0
        %4748 = vmatpush1.bf16.msra.mxu0 0
        %4749 = vmatprep.subr.bf16.mxu0 0
        %4750 = vmatpush1.bf16.msra.mxu0 0
        %4751 = vmatprep.subr.bf16.mxu0 0
        %4752 = vmatpush1.bf16.msra.mxu0 0
        %4753 = vmatprep.subr.bf16.mxu0 0
        %4754 = vmatpush1.bf16.msra.mxu0 0
        %4755 = vmatprep.subr.bf16.mxu0 0
        %4756 = vmatpush1.bf16.msra.mxu0 0
        %4757 = vmatprep.subr.bf16.mxu0 0
        %4758 = vmatpush1.bf16.msra.mxu0 0
        %4759 = vmatprep.subr.bf16.mxu0 0
        %4760 = vmatpush1.bf16.msra.mxu0 0
        %4761 = vmatprep.subr.bf16.mxu0 0
        %4762 = vmatpush1.bf16.msra.mxu0 0
        %4763 = vmatprep.mubr.bf16.mxu0 0
        %4764 = vmatmul.mubr.bf16.gmra.mrb[0].mxu0 %v4680
        %v4765 = vpop.f32.mrb[0].mxu0
        %v4766 = vadd.f32 %v4649, %v4765
        %v4767 = vpop.f32.mrb[0].mxu0
        %v4768 = vpop.f32.mrb[0].mxu0
        %v4769 = vadd.f32 %v4649, %v4768
        %v4770 = vpop.f32.mrb[0].mxu0
        %4771 = vmatprep.mubr.bf16.mxu0 0
        %4772 = vmatmul.mubr.bf16.gmra.mrb[0].mxu0 %v4683
        %v4773 = vpop.f32.mrb[0].mxu0
        %v4774 = vadd.f32 %v4649, %v4773
        %v4775 = vpop.f32.mrb[0].mxu0
        %v4776 = vpop.f32.mrb[0].mxu0
        %v4777 = vadd.f32 %v4649, %v4776
        %v4778 = vpop.f32.mrb[0].mxu0
        %4779 = vmatprep.mubr.bf16.mxu0 0
        %4780 = vmatmul.mubr.bf16.gmra.mrb[0].mxu0 %v4686
        %v4781 = vpop.f32.mrb[0].mxu0
        %v4782 = vadd.f32 %v4649, %v4781
        %v4783 = vpop.f32.mrb[0].mxu0
        %v4784 = vpop.f32.mrb[0].mxu0
        %v4785 = vadd.f32 %v4649, %v4784
        %v4786 = vpop.f32.mrb[0].mxu0
        %4787 = vmatprep.mubr.bf16.mxu0 0
        %4788 = vmatmul.mubr.bf16.gmra.mrb[0].mxu0 %v4689
        %v4789 = vpop.f32.mrb[0].mxu0
        %v4790 = vadd.f32 %v4649, %v4789
        %v4791 = vpop.f32.mrb[0].mxu0
        %v4792 = vpop.f32.mrb[0].mxu0
        %v4793 = vadd.f32 %v4649, %v4792
        %v4794 = vpop.f32.mrb[0].mxu0
        %4795 = vmatprep.mubr.bf16.mxu0 0
        %4796 = vmatmul.mubr.bf16.gmra.mrb[0].mxu0 %v4692
        %v4797 = vpop.f32.mrb[0].mxu0
        %v4798 = vadd.f32 %v4649, %v4797
        %v4799 = vpop.f32.mrb[0].mxu0
        %v4800 = vpop.f32.mrb[0].mxu0
        %v4801 = vadd.f32 %v4649, %v4800
        %v4802 = vpop.f32.mrb[0].mxu0
        %4803 = vmatprep.mubr.bf16.mxu0 0
        %4804 = vmatmul.mubr.bf16.gmra.mrb[0].mxu0 %v4695
        %v4805 = vpop.f32.mrb[0].mxu0
        %v4806 = vadd.f32 %v4649, %v4805
        %v4807 = vpop.f32.mrb[0].mxu0
        %v4808 = vpop.f32.mrb[0].mxu0
        %v4809 = vadd.f32 %v4649, %v4808
        %v4810 = vpop.f32.mrb[0].mxu0
        %4811 = vmatprep.mubr.bf16.mxu0 0
        %4812 = vmatmul.mubr.bf16.gmra.mrb[0].mxu0 %v4698
        %v4813 = vpop.f32.mrb[0].mxu0
        %v4814 = vadd.f32 %v4649, %v4813
        %v4815 = vpop.f32.mrb[0].mxu0
        %v4816 = vpop.f32.mrb[0].mxu0
        %v4817 = vadd.f32 %v4649, %v4816
        %v4818 = vpop.f32.mrb[0].mxu0
        %4819 = vmatprep.mubr.bf16.mxu0 0
        %4820 = vmatmul.mubr.bf16.gmra.mrb[0].mxu0 %v4701
        %v4821 = vpop.f32.mrb[0].mxu0
        %v4822 = vadd.f32 %v4649, %v4821
        %v4823 = vpop.f32.mrb[0].mxu0
        %v4824 = vpop.f32.mrb[0].mxu0
        %v4825 = vadd.f32 %v4649, %v4824
        %v4826 = vpop.f32.mrb[0].mxu0
        %4827 = vmatprep.mubr.bf16.mxu0 0
        %4828 = vmatmul.mubr.bf16.gmra.mrb[0].mxu0 %v4704
        %v4829 = vpop.f32.mrb[0].mxu0
        %v4830 = vadd.f32 %v4649, %v4829
        %v4831 = vpop.f32.mrb[0].mxu0
        %v4832 = vpop.f32.mrb[0].mxu0
        %v4833 = vadd.f32 %v4649, %v4832
        %v4834 = vpop.f32.mrb[0].mxu0
        %4835 = vmatprep.mubr.bf16.mxu0 0
        %4836 = vmatmul.mubr.bf16.gmra.mrb[0].mxu0 %v4707
        %v4837 = vpop.f32.mrb[0].mxu0
        %v4838 = vadd.f32 %v4649, %v4837
        %v4839 = vpop.f32.mrb[0].mxu0
        %v4840 = vpop.f32.mrb[0].mxu0
        %v4841 = vadd.f32 %v4649, %v4840
        %v4842 = vpop.f32.mrb[0].mxu0
        %4843 = vmatprep.mubr.bf16.mxu0 0
        %4844 = vmatmul.mubr.bf16.gmra.mrb[0].mxu0 %v4710
        %v4845 = vpop.f32.mrb[0].mxu0
        %v4846 = vadd.f32 %v4649, %v4845
        %v4847 = vpop.f32.mrb[0].mxu0
        %v4848 = vpop.f32.mrb[0].mxu0
        %v4849 = vadd.f32 %v4649, %v4848
        %v4850 = vpop.f32.mrb[0].mxu0
        %4851 = vmatprep.mubr.bf16.mxu0 0
        %4852 = vmatmul.mubr.bf16.gmra.mrb[0].mxu0 %v4713
        %v4853 = vpop.f32.mrb[0].mxu0
        %v4854 = vadd.f32 %v4649, %v4853
        %v4855 = vpop.f32.mrb[0].mxu0
        %v4856 = vpop.f32.mrb[0].mxu0
        %v4857 = vadd.f32 %v4649, %v4856
        %v4858 = vpop.f32.mrb[0].mxu0
        %4859 = vmatprep.mubr.bf16.mxu0 0
        %4860 = vmatmul.mubr.bf16.gmra.mrb[0].mxu0 %v4716
        %v4861 = vpop.f32.mrb[0].mxu0
        %v4862 = vadd.f32 %v4649, %v4861
        %v4863 = vpop.f32.mrb[0].mxu0
        %v4864 = vpop.f32.mrb[0].mxu0
        %v4865 = vadd.f32 %v4649, %v4864
        %v4866 = vpop.f32.mrb[0].mxu0
        %4867 = vmatprep.mubr.bf16.mxu0 0
        %4868 = vmatmul.mubr.bf16.gmra.mrb[0].mxu0 %v4719
        %v4869 = vpop.f32.mrb[0].mxu0
        %v4870 = vadd.f32 %v4649, %v4869
        %v4871 = vpop.f32.mrb[0].mxu0
        %v4872 = vpop.f32.mrb[0].mxu0
        %v4873 = vadd.f32 %v4649, %v4872
        %v4874 = vpop.f32.mrb[0].mxu0
        %4875 = vmatprep.mubr.bf16.mxu0 0
        %4876 = vmatmul.mubr.bf16.gmra.mrb[0].mxu0 %v4722
        %v4877 = vpop.f32.mrb[0].mxu0
        %v4878 = vadd.f32 %v4649, %v4877
        %v4879 = vpop.f32.mrb[0].mxu0
        %v4880 = vpop.f32.mrb[0].mxu0
        %v4881 = vadd.f32 %v4649, %v4880
        %v4882 = vpop.f32.mrb[0].mxu0
        %4883 = vmatprep.mubr.bf16.mxu0 0
        %4884 = vmatmul.mubr.bf16.gmra.mrb[0].mxu0 %v4725
        %v4885 = vpop.f32.mrb[0].mxu0
        %v4886 = vadd.f32 %v4649, %v4885
        %v4887 = vpop.f32.mrb[0].mxu0
        %v4888 = vpop.f32.mrb[0].mxu0
        %v4889 = vadd.f32 %v4649, %v4888
        %v4890 = vpop.f32.mrb[0].mxu0
        %4891 = vdwg.mxu0
        %v4892 = vmax.f32 %v4766, 0.0
        %v4893 = vmax.f32 %v4769, 0.0
        %v4894 = vmax.f32 %v4774, 0.0
        %v4895 = vmax.f32 %v4777, 0.0
        %v4896 = vmax.f32 %v4782, 0.0
        %v4897 = vmax.f32 %v4785, 0.0
        %v4898 = vmax.f32 %v4790, 0.0
        %v4899 = vmax.f32 %v4793, 0.0
        %v4900 = vmax.f32 %v4798, 0.0
        %v4901 = vmax.f32 %v4801, 0.0
        %v4902 = vmax.f32 %v4806, 0.0
        %v4903 = vmax.f32 %v4809, 0.0
        %v4904 = vmax.f32 %v4814, 0.0
        %v4905 = vmax.f32 %v4817, 0.0
        %v4906 = vmax.f32 %v4822, 0.0
        %v4907 = vmax.f32 %v4825, 0.0
        %v4908 = vmax.f32 %v4830, 0.0
        %v4909 = vmax.f32 %v4833, 0.0
        %v4910 = vmax.f32 %v4838, 0.0
        %v4911 = vmax.f32 %v4841, 0.0
        %v4912 = vmax.f32 %v4846, 0.0
        %v4913 = vmax.f32 %v4849, 0.0
        %v4914 = vmax.f32 %v4854, 0.0
        %v4915 = vmax.f32 %v4857, 0.0
        %v4916 = vmax.f32 %v4862, 0.0
        %v4917 = vmax.f32 %v4865, 0.0
        %v4918 = vmax.f32 %v4870, 0.0
        %v4919 = vmax.f32 %v4873, 0.0
        %v4920 = vmax.f32 %v4878, 0.0
        %v4921 = vmax.f32 %v4881, 0.0
        %v4922 = vmax.f32 %v4886, 0.0
        %v4923 = vmax.f32 %v4889, 0.0
        %4924 = vxpose.xlu0.b32.start [1/16] %v4892, 128
        %4925 = vxpose.xlu0.b32.cont [2/16] %v4893, 128
        %4926 = vxpose.xlu0.b32.cont [3/16] %v4894, 128
        %4927 = vxpose.xlu0.b32.cont [4/16] %v4895, 128
        %4928 = vxpose.xlu0.b32.cont [5/16] %v4896, 128
        %4929 = vxpose.xlu0.b32.cont [6/16] %v4897, 128
        %4930 = vxpose.xlu0.b32.cont [7/16] %v4898, 128
        %4931 = vxpose.xlu0.b32.cont [8/16] %v4899, 128
        %4932 = vxpose.xlu0.b32.cont [9/16] %v4900, 128
        %4933 = vxpose.xlu0.b32.cont [10/16] %v4901, 128
        %4934 = vxpose.xlu0.b32.cont [11/16] %v4902, 128
        %4935 = vxpose.xlu0.b32.cont [12/16] %v4903, 128
        %4936 = vxpose.xlu0.b32.cont [13/16] %v4904, 128
        %4937 = vxpose.xlu0.b32.cont [14/16] %v4905, 128
        %4938 = vxpose.xlu0.b32.cont [15/16] %v4906, 128
        %4939 = vxpose.xlu0.b32.end [16/16] %v4907, 128
        %v4940 = vpop.trf.xlu0
        %v4941 = vpop.trf.xlu0
        %v4942 = vpop.trf.xlu0
        %v4943 = vpop.trf.xlu0
        %v4944 = vpop.trf.xlu0
        %v4945 = vpop.trf.xlu0
        %v4946 = vpop.trf.xlu0
        %v4947 = vpop.trf.xlu0
        %v4948 = vpop.trf.xlu0
        %v4949 = vpop.trf.xlu0
        %v4950 = vpop.trf.xlu0
        %v4951 = vpop.trf.xlu0
        %v4952 = vpop.trf.xlu0
        %v4953 = vpop.trf.xlu0
        %v4954 = vpop.trf.xlu0
        %v4955 = vpop.trf.xlu0
        %4956 = vxpose.xlu0.b32.start [1/16] %v4908, 128
        %4957 = vxpose.xlu0.b32.cont [2/16] %v4909, 128
        %4958 = vxpose.xlu0.b32.cont [3/16] %v4910, 128
        %4959 = vxpose.xlu0.b32.cont [4/16] %v4911, 128
        %4960 = vxpose.xlu0.b32.cont [5/16] %v4912, 128
        %4961 = vxpose.xlu0.b32.cont [6/16] %v4913, 128
        %4962 = vxpose.xlu0.b32.cont [7/16] %v4914, 128
        %4963 = vxpose.xlu0.b32.cont [8/16] %v4915, 128
        %4964 = vxpose.xlu0.b32.cont [9/16] %v4916, 128
        %4965 = vxpose.xlu0.b32.cont [10/16] %v4917, 128
        %4966 = vxpose.xlu0.b32.cont [11/16] %v4918, 128
        %4967 = vxpose.xlu0.b32.cont [12/16] %v4919, 128
        %4968 = vxpose.xlu0.b32.cont [13/16] %v4920, 128
        %4969 = vxpose.xlu0.b32.cont [14/16] %v4921, 128
        %4970 = vxpose.xlu0.b32.cont [15/16] %v4922, 128
        %4971 = vxpose.xlu0.b32.end [16/16] %v4923, 128
        %v4972 = vpop.trf.xlu0
        %v4973 = vpop.trf.xlu0
        %v4974 = vpop.trf.xlu0
        %v4975 = vpop.trf.xlu0
        %v4976 = vpop.trf.xlu0
        %v4977 = vpop.trf.xlu0
        %v4978 = vpop.trf.xlu0
        %v4979 = vpop.trf.xlu0
        %v4980 = vpop.trf.xlu0
        %v4981 = vpop.trf.xlu0
        %v4982 = vpop.trf.xlu0
        %v4983 = vpop.trf.xlu0
        %v4984 = vpop.trf.xlu0
        %v4985 = vpop.trf.xlu0
        %v4986 = vpop.trf.xlu0
        %v4987 = vpop.trf.xlu0
        %4988 = vst [vmem:[%s217] sm:$0xff] %v4940
        %4989 = vst [vmem:[%s217 + $0x8] sm:$0xff] %v4972
        %s4990 = sand.u32 %s137, 1
        %s4991 = scalar_lea.sflag [#allocation7], %s4990
        %s4992 = sand.u32 %s137, 1
        %s4993 = smul.addr %s4992, 16
        %s4994 = scalar_lea.vmem [#allocation6], %s4993
        // Predicated region
        $region41: #{tpu_custom_call.1} parent=39 // pred_check
          %p4995 = pneg %p147
        $region42: #{tpu_custom_call.1} parent=39 // pred_check_branch
          %4997 = sbr.rel (%p4995) target = $region44
        $region43: #{tpu_custom_call.1} parent=39 // pred_region
          %s4999 = ssub.s32 256, 256
          %5000 = vsyncadd %s4991, %s4999
          %s5001 = smul.addr %s19, 2
          %s5002 = smul.addr %s5001, 128
          %s5003 = scalar_lea.hbm %s5, %s5002
          %s5005 = sshll.u32 %s4994, 4
          %s5006 = int_to_ptr.vmem [resolvable:$true] %s5005
          %5008 = dma.vmem_to_hbm [thread:$0]  %s5006, 256, %s5003, %s4991
        $region44: #{tpu_custom_call.1} parent=39 // pred_fallthru
          _
      $region40: #{tpu_custom_call.1} parent=5 // pred_fallthru
        _
      %p5009 = scmp.le.s32.totalorder 2, %s14
      // Predicated region
      $region45: #{tpu_custom_call.1} parent=5 // pred_check
        %p5010 = pneg %p5009
      $region46: #{tpu_custom_call.1} parent=5 // pred_check_branch
        %5012 = sbr.rel (%p5010) target = $region48
      $region47: #{tpu_custom_call.1} parent=5 // pred_region
        %s5013 = ssub.s32 %s14, 2
        // Predicated region
        $region49: #{tpu_custom_call.1} parent=47 // pred_check
          %p5014 = pneg %p153
        $region50: #{tpu_custom_call.1} parent=47 // pred_check_branch
          %5016 = sbr.rel (%p5014) target = $region52
        $region51: #{tpu_custom_call.1} parent=47 // pred_region
          %s5017 = sand.u32 %s138, 1
          %s5018 = scalar_lea.sflag [#allocation7], %s5017
          %s5019 = sand.u32 %s138, 1
          %s5020 = smul.addr %s5019, 16
          %s5021 = scalar_lea.vmem [#allocation6], %s5020
          %5022 = dma.done %s5018, 256
        $region52: #{tpu_custom_call.1} parent=47 // pred_fallthru
          _
      $region48: #{tpu_custom_call.1} parent=5 // pred_fallthru
        _
    $region6: #{tpu_custom_call.1} parent=1 // loop_footer
      %s18 = sadd.s32 1, %s14
    $region7: #{tpu_custom_call.1} parent=1 // loop_footer_branch
      %13 = sbr.rel target = $region3
    $region8: #{tpu_custom_call.1} parent=1 // loop_exit
      _
    %5023 = vsyncpa [#allocation7], 1
    %s5024 = scalar_lea.sflag [#allocation7], 1
    %5025 = vsyncpa %s5024, 1

</llo_original>
